<compile_context>
chip_gen: v5e
topology: v5e:2x2
jax: 0.10.0
libtpu: 0.0.40
codegen_flags: <defaults>
</compile_context>

<pallas_src>
import functools

import jax
import jax.numpy as jnp
from jax import lax
from jax.experimental import pallas as pl
from jax.experimental.pallas import tpu as pltpu

_EPS = 1e-5  # nn.BatchNorm2d default eps
_F32 = jnp.float32
_BF16 = jnp.bfloat16


def _round_up(x, m):
    return (x + m - 1) // m * m


# ---------------------------------------------------------------------------
# Pass A: conv1 (pre-im2col'd, single matmul) + fused skip 1x1, per-image stats
# ---------------------------------------------------------------------------
def _conv1_skip_kernel(p_ref, w_ref, y1_ref, s_ref, st_ref, *, cp):
    # (HW, Kp) bf16 x (Kp, 2*Cp) bf16 -> (HW, 2*Cp) f32 : [conv1 | skip]
    acc = jnp.dot(p_ref[...], w_ref[...], preferred_element_type=jnp.float32)
    y1_ref[...] = acc[:, :cp].astype(y1_ref.dtype)      # 128-aligned lane split: free
    s_ref[...] = acc[:, cp:].astype(s_ref.dtype)
    ssum = jnp.sum(acc, axis=0, keepdims=True)
    ssq = jnp.sum(acc * acc, axis=0, keepdims=True)
    st_ref[...] = jnp.concatenate([ssum, ssq], axis=0).reshape(st_ref.shape)


# ---------------------------------------------------------------------------
# Pass B: BN1 + ReLU, conv2 as 3 matmuls with K=3*Cp from kx-prefused scratch
# ---------------------------------------------------------------------------
def _bn1_relu_conv2_kernel(y1_ref, ab1_ref, w2_ref, y2_ref, st_ref, hcat, *, H, W):
    CP = y1_ref.shape[-1]
    HW = H * W

    # BN1 affine (precomputed scale/shift) + ReLU in f32, cast to bf16 for MXU.
    h1 = jnp.maximum(
        y1_ref[...].astype(jnp.float32) * ab1_ref[0:1, :] + ab1_ref[1:2, :], 0.0)
    h1 = h1.astype(hcat.dtype).reshape(H, W, CP)

    # Re-zero halo strips every step (grid axis is "parallel": no cross-step state).
    zrow = jnp.zeros((1, W, 3 * CP), hcat.dtype)
    zcol = jnp.zeros((H, 1, CP), hcat.dtype)
    hcat[0:1, :, :] = zrow
    hcat[H + 1:H + 2, :, :] = zrow
    hcat[1:H + 1, 0:1, 0:CP] = zcol
    hcat[1:H + 1, W - 1:W, 2 * CP:3 * CP] = zcol

    # Three kx-shifted copies of h1, lane-concatenated: hcat[y', x, kx*CP+ci]
    # = h1pad[y', x+kx, ci]. Matmul reads below are then fully aligned.
    hcat[1:H + 1, 1:W, 0:CP] = h1[:, 0:W - 1, :]
    hcat[1:H + 1, :, CP:2 * CP] = h1
    hcat[1:H + 1, 0:W - 1, 2 * CP:3 * CP] = h1[:, 1:W, :]

    acc = jnp.zeros((HW, CP), jnp.float32)
    for ky in range(3):
        patch = hcat[ky:ky + H, :, :].reshape(HW, 3 * CP)
        acc = acc + jnp.dot(patch, w2_ref[ky], preferred_element_type=jnp.float32)

    y2_ref[...] = acc.astype(y2_ref.dtype)
    ssum = jnp.sum(acc, axis=0, keepdims=True)
    ssq = jnp.sum(acc * acc, axis=0, keepdims=True)
    st_ref[...] = jnp.concatenate([ssum, ssq], axis=0).reshape(st_ref.shape)


# ---------------------------------------------------------------------------
# Pass C: BN2(main) + BN(skip) + residual add + final ReLU (pure elementwise)
# ---------------------------------------------------------------------------
def _bn2_skip_add_relu_kernel(y2_ref, s_ref, ab_ref, o_ref):
    main = y2_ref[...].astype(jnp.float32) * ab_ref[0:1, :] + ab_ref[1:2, :]
    skip = s_ref[...].astype(jnp.float32) * ab_ref[2:3, :] + ab_ref[3:4, :]
    o_ref[...] = jnp.maximum(main + skip, 0.0).astype(o_ref.dtype)


# ---------------------------------------------------------------------------
# Wrapper
# ---------------------------------------------------------------------------
def mock_residual_block_forward(x_nchw, params):
    n, cin, h, w = x_nchw.shape
    cout = params["w1"].shape[0]
    cp = _round_up(cout, 128)           # lane-dense channel padding
    k_im = 9 * cin
    kp = _round_up(k_im, 128)           # lane-dense im2col K
    hw = h * w
    m = n * hw
    # NOTE: per-image tiles assume H*W and (H+2)*W*3*Cp fit VMEM comfortably; for
    # very large images the same structure would tile rows of H with a 1-row halo.

    # ---- wrapper-side im2col for conv1 (cin is tiny) ----
    x_nhwc = jnp.transpose(x_nchw, (0, 2, 3, 1)).astype(_F32)
    xpad = jnp.pad(x_nhwc, ((0, 0), (1, 1), (1, 1), (0, 0)))
    taps = [xpad[:, ky:ky + h, kx:kx + w, :] for ky in range(3) for kx in range(3)]
    patches = jnp.concatenate(taps, axis=-1).reshape(m, k_im)
    patches = jnp.pad(patches, ((0, 0), (0, kp - k_im))).astype(_BF16)

    # conv1 + skip 1x1 fused into one (Kp, 2*Cp) weight; skip uses the center-tap rows.
    # Skip bias is dropped: it cancels exactly under train-mode BatchNorm.
    w1_rows = jnp.transpose(params["w1"], (2, 3, 1, 0)).reshape(k_im, cout).astype(_F32)
    w_all = jnp.zeros((kp, 2 * cp), _F32)
    w_all = w_all.at[:k_im, :cout].set(w1_rows)
    w_all = w_all.at[4 * cin:5 * cin, cp:cp + cout].set(params["ws"][:, :, 0, 0].T.astype(_F32))
    w_all = w_all.astype(_BF16)

    # conv2 weights regrouped per-ky with the 3 kx taps lane-concatenated: (3, 3*Cp, Cp).
    w2_t = jnp.transpose(params["w2"], (2, 3, 1, 0)).astype(_F32)   # (ky, kx, ci, co)
    w2k = jnp.zeros((3, 3 * cp, cp), _F32)
    for ky in range(3):
        for kx in range(3):
            w2k = w2k.at[ky, kx * cp:kx * cp + cout, :cout].set(w2_t[ky, kx])
    w2k = w2k.astype(_BF16)

    # ---- pass A ----
    y1, s, st_a = pl.pallas_call(
        functools.partial(_conv1_skip_kernel, cp=cp),
        grid=(n,),
        in_specs=[
            pl.BlockSpec((hw, kp), lambda i: (i, 0)),
            pl.BlockSpec((kp, 2 * cp), lambda i: (0, 0)),
        ],
        out_specs=(
            pl.BlockSpec((hw, cp), lambda i: (i, 0)),
            pl.BlockSpec((hw, cp), lambda i: (i, 0)),
            pl.BlockSpec((1, 2, 2 * cp), lambda i: (i, 0, 0)),
        ),
        out_shape=(
            jax.ShapeDtypeStruct((m, cp), _BF16),
            jax.ShapeDtypeStruct((m, cp), _BF16),
            jax.ShapeDtypeStruct((n, 2, 2 * cp), _F32),
        ),
        compiler_params=pltpu.CompilerParams(dimension_semantics=("parallel",)),
    )(patches, w_all)

    # ---- O(C) BN finalize glue: batch mean / biased var -> scale & shift rows ----
    cnt = jnp.float32(m)

    def _padc(v):
        return jnp.zeros((cp,), _F32).at[:cout].set(v.astype(_F32))

    def _affine(s_row, sq_row, gamma, beta):
        mean = s_row / cnt
        var = sq_row / cnt - mean * mean
        a = gamma * lax.rsqrt(var + _EPS)
        return a, beta - mean * a

    tot_a = jnp.sum(st_a, axis=0)                                   # (2, 2*cp)
    a1, c1 = _affine(tot_a[0, :cp], tot_a[1, :cp], _padc(params["g1"]), _padc(params["b1"]))
    a_s, c_s = _affine(tot_a[0, cp:], tot_a[1, cp:], _padc(params["gs"]), _padc(params["bbs"]))
    ab1 = jnp.stack([a1, c1], axis=0)                               # (2, cp)

    # ---- pass B ----
    y2, st_b = pl.pallas_call(
        functools.partial(_bn1_relu_conv2_kernel, H=h, W=w),
        grid=(n,),
        in_specs=[
            pl.BlockSpec((hw, cp), lambda i: (i, 0)),
            pl.BlockSpec((2, cp), lambda i: (0, 0)),
            pl.BlockSpec((3, 3 * cp, cp), lambda i: (0, 0, 0)),
        ],
        out_specs=(
            pl.BlockSpec((hw, cp), lambda i: (i, 0)),
            pl.BlockSpec((1, 2, cp), lambda i: (i, 0, 0)),
        ),
        out_shape=(
            jax.ShapeDtypeStruct((m, cp), _BF16),
            jax.ShapeDtypeStruct((n, 2, cp), _F32),
        ),
        scratch_shapes=[pltpu.VMEM((h + 2, w, 3 * cp), _BF16)],     # kx-prefused halo buffer
        compiler_params=pltpu.CompilerParams(dimension_semantics=("parallel",)),
    )(y1, ab1, w2k)

    tot_b = jnp.sum(st_b, axis=0)                                   # (2, cp)
    a2, c2 = _affine(tot_b[0], tot_b[1], _padc(params["g2"]), _padc(params["b2"]))
    abx = jnp.stack([a2, c2, a_s, c_s], axis=0)                     # (4, cp)

    # ---- pass C ----
    out2d = pl.pallas_call(
        _bn2_skip_add_relu_kernel,
        grid=(n,),
        in_specs=[
            pl.BlockSpec((hw, cp), lambda i: (i, 0)),
            pl.BlockSpec((hw, cp), lambda i: (i, 0)),
            pl.BlockSpec((4, cp), lambda i: (0, 0)),
        ],
        out_specs=pl.BlockSpec((hw, cp), lambda i: (i, 0)),
        out_shape=jax.ShapeDtypeStruct((m, cp), _F32),
        compiler_params=pltpu.CompilerParams(dimension_semantics=("parallel",)),
    )(y2, s, abx)

    out_nhwc = out2d.reshape(n, h, w, cp)[:, :, :, :cout]
    return jnp.transpose(out_nhwc, (0, 3, 1, 2))                    # back to NCHW


# ---------------------------------------------------------------------------
# Pure-JAX reference (mirrors the PyTorch forward, train-mode BN, keeps bias)
# ---------------------------------------------------------------------------
def _reference(x, params):
    def conv(xx, ww, pad):
        return lax.conv_general_dilated(
            xx, ww, (1, 1), [(pad, pad), (pad, pad)],
            dimension_numbers=("NCHW", "OIHW", "NCHW"))

    def bn(y, g, b):
        mu = jnp.mean(y, axis=(0, 2, 3), keepdims=True)
        var = jnp.mean((y - mu) ** 2, axis=(0, 2, 3), keepdims=True)
        return (y - mu) * lax.rsqrt(var + _EPS) * g.reshape(1, -1, 1, 1) + b.reshape(1, -1, 1, 1)

    hmid = jax.nn.relu(bn(conv(x, params["w1"], 1), params["g1"], params["b1"]))
    main = bn(conv(hmid, params["w2"], 1), params["g2"], params["b2"])
    skip = bn(conv(x, params["ws"], 0) + params["bs"].reshape(1, -1, 1, 1),
              params["gs"], params["bbs"])
    return jax.nn.relu(main + skip)


if __name__ == "__main__":
    N, C_IN, C_OUT, H, W = 2, 4, 8, 16, 16   # c_in != c_out -> skip path has 1x1 conv + BN

    ks = jax.random.split(jax.random.PRNGKey(0), 11)
    params = {
        "w1":  0.1 * jax.random.normal(ks[0], (C_OUT, C_IN, 3, 3), jnp.float32),
        "g1":  1.0 + 0.1 * jax.random.normal(ks[1], (C_OUT,), jnp.float32),
        "b1":  0.1 * jax.random.normal(ks[2], (C_OUT,), jnp.float32),
        "w2":  0.1 * jax.random.normal(ks[3], (C_OUT, C_OUT, 3, 3), jnp.float32),
        "g2":  1.0 + 0.1 * jax.random.normal(ks[4], (C_OUT,), jnp.float32),
        "b2":  0.1 * jax.random.normal(ks[5], (C_OUT,), jnp.float32),
        "ws":  0.1 * jax.random.normal(ks[6], (C_OUT, C_IN, 1, 1), jnp.float32),
        "bs":  0.1 * jax.random.normal(ks[7], (C_OUT,), jnp.float32),
        "gs":  1.0 + 0.1 * jax.random.normal(ks[8], (C_OUT,), jnp.float32),
        "bbs": 0.1 * jax.random.normal(ks[9], (C_OUT,), jnp.float32),
    }
    x = jax.random.normal(ks[10], (N, C_IN, H, W), jnp.float32)

    fwd = jax.jit(mock_residual_block_forward)
    out = jax.block_until_ready(fwd(x, params))
    ref = jax.block_until_ready(_reference(x, params))

    assert out.shape == (N, C_OUT, H, W), out.shape
    # bf16 MXU operands + two BatchNorm normalizations amplify rounding vs the
    # pure-f32 reference; 5e-2 is a comfortable bound for bf16 verification.
    assert jnp.allclose(out, ref, atol=5e-2, rtol=5e-2), float(jnp.max(jnp.abs(out - ref)))
    print("KERNEL_OK")
</pallas_src>

<mosaic_0001>
module attributes {stable_mosaic.version = 11 : i64} {
  func.func @_conv1_skip_kernel(%arg0: i32, %arg1: memref<256x128xbf16, #tpu.memory_space<vmem>>, %arg2: memref<128x256xbf16, #tpu.memory_space<vmem>>, %arg3: memref<256x128xbf16, #tpu.memory_space<vmem>>, %arg4: memref<256x128xbf16, #tpu.memory_space<vmem>>, %arg5: memref<1x2x256xf32, #tpu.memory_space<vmem>>) attributes {dimension_semantics = [#tpu.dimension_semantics<parallel>], iteration_bounds = array<i64: 2>, scalar_prefetch = 0 : i64, scratch_operands = 0 : i64, tpu.core_type = #tpu.core_type<tc>, window_params = [{transform_indices = @transform_0, window_bounds = array<i64: 256, 128>}, {pipeline_mode = #tpu.pipeline_mode<synchronous>, transform_indices = @transform_1, window_bounds = array<i64: 128, 256>}, {transform_indices = @transform_2, window_bounds = array<i64: 256, 128>}, {transform_indices = @transform_3, window_bounds = array<i64: 256, 128>}, {transform_indices = @transform_4, window_bounds = array<i64: 1, 2, 256>}]} {
    %c0 = arith.constant 0 : index
    %c0_0 = arith.constant 0 : index
    %0 = vector.load %arg1[%c0, %c0_0] : memref<256x128xbf16, #tpu.memory_space<vmem>>, vector<256x128xbf16>
    %c0_1 = arith.constant 0 : index
    %c0_2 = arith.constant 0 : index
    %1 = vector.load %arg2[%c0_1, %c0_2] : memref<128x256xbf16, #tpu.memory_space<vmem>>, vector<128x256xbf16>
    %cst = arith.constant dense<0.000000e+00> : vector<256x256xf32>
    %2 = tpu.matmul %0, %1, %cst {dimension_numbers = #tpu.dot_dimension_numbers<[1], [0], [0], [1], [0, 0, 1, 1], [], []>} : vector<256x128xbf16>, vector<128x256xbf16>, vector<256x256xf32> -> vector<256x256xf32>
    %3 = vector.extract_strided_slice %2 {offsets = [0, 0], sizes = [256, 128], strides = [1, 1]} : vector<256x256xf32> to vector<256x128xf32>
    %4 = arith.truncf %3 : vector<256x128xf32> to vector<256x128xbf16>
    %c0_3 = arith.constant 0 : index
    %c0_4 = arith.constant 0 : index
    %5 = vector.load %arg3[%c0_3, %c0_4] : memref<256x128xbf16, #tpu.memory_space<vmem>>, vector<256x128xbf16>
    tpu.vector_store %arg3[%c0_3, %c0_4], %4 {strides = array<i32>} : memref<256x128xbf16, #tpu.memory_space<vmem>>, vector<256x128xbf16>,
    %6 = vector.extract_strided_slice %2 {offsets = [0, 128], sizes = [256, 128], strides = [1, 1]} : vector<256x256xf32> to vector<256x128xf32>
    %7 = arith.truncf %6 : vector<256x128xf32> to vector<256x128xbf16>
    %c0_5 = arith.constant 0 : index
    %c0_6 = arith.constant 0 : index
    %8 = vector.load %arg4[%c0_5, %c0_6] : memref<256x128xbf16, #tpu.memory_space<vmem>>, vector<256x128xbf16>
    tpu.vector_store %arg4[%c0_5, %c0_6], %7 {strides = array<i32>} : memref<256x128xbf16, #tpu.memory_space<vmem>>, vector<256x128xbf16>,
    %cst_7 = arith.constant dense<0.000000e+00> : vector<256xf32>
    %9 = vector.multi_reduction <add>, %2, %cst_7 [0] : vector<256x256xf32> to vector<256xf32>
    %10 = vector.shape_cast %9 : vector<256xf32> to vector<1x256xf32>
    %11 = arith.mulf %2, %2 : vector<256x256xf32>
    %cst_8 = arith.constant dense<0.000000e+00> : vector<256xf32>
    %12 = vector.multi_reduction <add>, %11, %cst_8 [0] : vector<256x256xf32> to vector<256xf32>
    %13 = vector.shape_cast %12 : vector<256xf32> to vector<1x256xf32>
    %14 = tpu.concatenate %10, %13 in 0 : vector<1x256xf32>, vector<1x256xf32> -> vector<2x256xf32>
    %15 = vector.shape_cast %14 : vector<2x256xf32> to vector<1x2x256xf32>
    %c0_9 = arith.constant 0 : index
    %c0_10 = arith.constant 0 : index
    %c0_11 = arith.constant 0 : index
    %16 = vector.load %arg5[%c0_9, %c0_10, %c0_11] : memref<1x2x256xf32, #tpu.memory_space<vmem>>, vector<1x2x256xf32>
    tpu.vector_store %arg5[%c0_9, %c0_10, %c0_11], %15 {strides = array<i32>} : memref<1x2x256xf32, #tpu.memory_space<vmem>>, vector<1x2x256xf32>,
    return
  }
  func.func @transform_0(%arg0: i32) -> (i32, i32) {
    %c0_i32 = arith.constant 0 : i32
    %c0_i32_0 = arith.constant 0 : i32
    return %arg0, %c0_i32 : i32, i32
  }
  func.func @transform_1(%arg0: i32) -> (i32, i32) {
    %c0_i32 = arith.constant 0 : i32
    %c0_i32_0 = arith.constant 0 : i32
    %c0_i32_1 = arith.constant 0 : i32
    return %c0_i32, %c0_i32_0 : i32, i32
  }
  func.func @transform_2(%arg0: i32) -> (i32, i32) {
    %c0_i32 = arith.constant 0 : i32
    %c0_i32_0 = arith.constant 0 : i32
    return %arg0, %c0_i32 : i32, i32
  }
  func.func @transform_3(%arg0: i32) -> (i32, i32) {
    %c0_i32 = arith.constant 0 : i32
    %c0_i32_0 = arith.constant 0 : i32
    return %arg0, %c0_i32 : i32, i32
  }
  func.func @transform_4(%arg0: i32) -> (i32, i32, i32) {
    %c0_i32 = arith.constant 0 : i32
    %c0_i32_0 = arith.constant 0 : i32
    %c0_i32_1 = arith.constant 0 : i32
    return %arg0, %c0_i32, %c0_i32_0 : i32, i32, i32
  }
}

module attributes {stable_mosaic.version = 11 : i64} {
  func.func @_bn1_relu_conv2_kernel(%arg0: i32, %arg1: memref<256x128xbf16, #tpu.memory_space<vmem>>, %arg2: memref<2x128xf32, #tpu.memory_space<vmem>>, %arg3: memref<3x384x128xbf16, #tpu.memory_space<vmem>>, %arg4: memref<256x128xbf16, #tpu.memory_space<vmem>>, %arg5: memref<1x2x128xf32, #tpu.memory_space<vmem>>, %arg6: memref<18x16x384xbf16, #tpu.memory_space<vmem>>) attributes {dimension_semantics = [#tpu.dimension_semantics<parallel>], iteration_bounds = array<i64: 2>, scalar_prefetch = 0 : i64, scratch_operands = 1 : i64, tpu.core_type = #tpu.core_type<tc>, window_params = [{transform_indices = @transform_0, window_bounds = array<i64: 256, 128>}, {pipeline_mode = #tpu.pipeline_mode<synchronous>, transform_indices = @transform_1, window_bounds = array<i64: 2, 128>}, {pipeline_mode = #tpu.pipeline_mode<synchronous>, transform_indices = @transform_2, window_bounds = array<i64: 3, 384, 128>}, {transform_indices = @transform_3, window_bounds = array<i64: 256, 128>}, {transform_indices = @transform_4, window_bounds = array<i64: 1, 2, 128>}]} {
    %c0 = arith.constant 0 : index
    %c0_0 = arith.constant 0 : index
    %0 = vector.load %arg1[%c0, %c0_0] : memref<256x128xbf16, #tpu.memory_space<vmem>>, vector<256x128xbf16>
    %1 = arith.extf %0 : vector<256x128xbf16> to vector<256x128xf32>
    %c0_1 = arith.constant 0 : index
    %c0_2 = arith.constant 0 : index
    %2 = vector.load %arg2[%c0_1, %c0_2] : memref<2x128xf32, #tpu.memory_space<vmem>>, vector<1x128xf32>
    %3 = vector.broadcast %2 : vector<1x128xf32> to vector<256x128xf32>
    %4 = arith.mulf %1, %3 : vector<256x128xf32>
    %c1 = arith.constant 1 : index
    %c0_3 = arith.constant 0 : index
    %5 = vector.load %arg2[%c1, %c0_3] : memref<2x128xf32, #tpu.memory_space<vmem>>, vector<1x128xf32>
    %6 = vector.broadcast %5 : vector<1x128xf32> to vector<256x128xf32>
    %7 = arith.addf %4, %6 : vector<256x128xf32>
    %cst = arith.constant 0.000000e+00 : f32
    %8 = vector.broadcast %cst : f32 to vector<256x128xf32>
    %9 = arith.maximumf %7, %8 : vector<256x128xf32>
    %10 = arith.truncf %9 : vector<256x128xf32> to vector<256x128xbf16>
    %11 = vector.shape_cast %10 : vector<256x128xbf16> to vector<16x16x128xbf16>
    %cst_4 = arith.constant 0.000000e+00 : bf16
    %12 = vector.broadcast %cst_4 : bf16 to vector<1x16x384xbf16>
    %cst_5 = arith.constant 0.000000e+00 : bf16
    %13 = vector.broadcast %cst_5 : bf16 to vector<16x1x128xbf16>
    %c0_6 = arith.constant 0 : index
    %c0_7 = arith.constant 0 : index
    %c0_8 = arith.constant 0 : index
    %14 = vector.load %arg6[%c0_6, %c0_7, %c0_8] : memref<18x16x384xbf16, #tpu.memory_space<vmem>>, vector<1x16x384xbf16>
    tpu.vector_store %arg6[%c0_6, %c0_7, %c0_8], %12 {strides = array<i32>} : memref<18x16x384xbf16, #tpu.memory_space<vmem>>, vector<1x16x384xbf16>,
    %c17 = arith.constant 17 : index
    %c0_9 = arith.constant 0 : index
    %c0_10 = arith.constant 0 : index
    %15 = vector.load %arg6[%c17, %c0_9, %c0_10] : memref<18x16x384xbf16, #tpu.memory_space<vmem>>, vector<1x16x384xbf16>
    tpu.vector_store %arg6[%c17, %c0_9, %c0_10], %12 {strides = array<i32>} : memref<18x16x384xbf16, #tpu.memory_space<vmem>>, vector<1x16x384xbf16>,
    %c1_11 = arith.constant 1 : index
    %c0_12 = arith.constant 0 : index
    %c0_13 = arith.constant 0 : index
    %16 = vector.load %arg6[%c1_11, %c0_12, %c0_13] : memref<18x16x384xbf16, #tpu.memory_space<vmem>>, vector<16x1x128xbf16>
    tpu.vector_store %arg6[%c1_11, %c0_12, %c0_13], %13 {strides = array<i32>} : memref<18x16x384xbf16, #tpu.memory_space<vmem>>, vector<16x1x128xbf16>,
    %c1_14 = arith.constant 1 : index
    %c15 = arith.constant 15 : index
    %c256 = arith.constant 256 : index
    %17 = vector.load %arg6[%c1_14, %c15, %c256] : memref<18x16x384xbf16, #tpu.memory_space<vmem>>, vector<16x1x128xbf16>
    tpu.vector_store %arg6[%c1_14, %c15, %c256], %13 {strides = array<i32>} : memref<18x16x384xbf16, #tpu.memory_space<vmem>>, vector<16x1x128xbf16>,
    %18 = vector.extract_strided_slice %11 {offsets = [0, 0, 0], sizes = [16, 15, 128], strides = [1, 1, 1]} : vector<16x16x128xbf16> to vector<16x15x128xbf16>
    %c1_15 = arith.constant 1 : index
    %c1_16 = arith.constant 1 : index
    %c0_17 = arith.constant 0 : index
    %19 = vector.load %arg6[%c1_15, %c1_16, %c0_17] : memref<18x16x384xbf16, #tpu.memory_space<vmem>>, vector<16x15x128xbf16>
    tpu.vector_store %arg6[%c1_15, %c1_16, %c0_17], %18 {strides = array<i32>} : memref<18x16x384xbf16, #tpu.memory_space<vmem>>, vector<16x15x128xbf16>,
    %c1_18 = arith.constant 1 : index
    %c0_19 = arith.constant 0 : index
    %c128 = arith.constant 128 : index
    %20 = vector.load %arg6[%c1_18, %c0_19, %c128] : memref<18x16x384xbf16, #tpu.memory_space<vmem>>, vector<16x16x128xbf16>
    tpu.vector_store %arg6[%c1_18, %c0_19, %c128], %11 {strides = array<i32>} : memref<18x16x384xbf16, #tpu.memory_space<vmem>>, vector<16x16x128xbf16>,
    %21 = vector.extract_strided_slice %11 {offsets = [0, 1, 0], sizes = [16, 15, 128], strides = [1, 1, 1]} : vector<16x16x128xbf16> to vector<16x15x128xbf16>
    %c1_20 = arith.constant 1 : index
    %c0_21 = arith.constant 0 : index
    %c256_22 = arith.constant 256 : index
    %22 = vector.load %arg6[%c1_20, %c0_21, %c256_22] : memref<18x16x384xbf16, #tpu.memory_space<vmem>>, vector<16x15x128xbf16>
    tpu.vector_store %arg6[%c1_20, %c0_21, %c256_22], %21 {strides = array<i32>} : memref<18x16x384xbf16, #tpu.memory_space<vmem>>, vector<16x15x128xbf16>,
    %cst_23 = arith.constant 0.000000e+00 : f32
    %23 = vector.broadcast %cst_23 : f32 to vector<256x128xf32>
    %c0_24 = arith.constant 0 : index
    %c0_25 = arith.constant 0 : index
    %c0_26 = arith.constant 0 : index
    %24 = vector.load %arg6[%c0_24, %c0_25, %c0_26] : memref<18x16x384xbf16, #tpu.memory_space<vmem>>, vector<16x16x384xbf16>
    %25 = vector.shape_cast %24 : vector<16x16x384xbf16> to vector<256x384xbf16>
    %c0_27 = arith.constant 0 : index
    %c0_28 = arith.constant 0 : index
    %c0_29 = arith.constant 0 : index
    %26 = vector.load %arg3[%c0_27, %c0_28, %c0_29] : memref<3x384x128xbf16, #tpu.memory_space<vmem>>, vector<1x384x128xbf16>
    %27 = vector.shape_cast %26 : vector<1x384x128xbf16> to vector<384x128xbf16>
    %cst_30 = arith.constant dense<0.000000e+00> : vector<256x128xf32>
    %28 = tpu.matmul %25, %27, %cst_30 {dimension_numbers = #tpu.dot_dimension_numbers<[1], [0], [0], [1], [0, 0, 1, 1], [], []>} : vector<256x384xbf16>, vector<384x128xbf16>, vector<256x128xf32> -> vector<256x128xf32>
    %29 = arith.addf %23, %28 : vector<256x128xf32>
    %c1_31 = arith.constant 1 : index
    %c0_32 = arith.constant 0 : index
    %c0_33 = arith.constant 0 : index
    %30 = vector.load %arg6[%c1_31, %c0_32, %c0_33] : memref<18x16x384xbf16, #tpu.memory_space<vmem>>, vector<16x16x384xbf16>
    %31 = vector.shape_cast %30 : vector<16x16x384xbf16> to vector<256x384xbf16>
    %c1_34 = arith.constant 1 : index
    %c0_35 = arith.constant 0 : index
    %c0_36 = arith.constant 0 : index
    %32 = vector.load %arg3[%c1_34, %c0_35, %c0_36] : memref<3x384x128xbf16, #tpu.memory_space<vmem>>, vector<1x384x128xbf16>
    %33 = vector.shape_cast %32 : vector<1x384x128xbf16> to vector<384x128xbf16>
    %cst_37 = arith.constant dense<0.000000e+00> : vector<256x128xf32>
    %34 = tpu.matmul %31, %33, %cst_37 {dimension_numbers = #tpu.dot_dimension_numbers<[1], [0], [0], [1], [0, 0, 1, 1], [], []>} : vector<256x384xbf16>, vector<384x128xbf16>, vector<256x128xf32> -> vector<256x128xf32>
    %35 = arith.addf %29, %34 : vector<256x128xf32>
    %c2 = arith.constant 2 : index
    %c0_38 = arith.constant 0 : index
    %c0_39 = arith.constant 0 : index
    %36 = vector.load %arg6[%c2, %c0_38, %c0_39] : memref<18x16x384xbf16, #tpu.memory_space<vmem>>, vector<16x16x384xbf16>
    %37 = vector.shape_cast %36 : vector<16x16x384xbf16> to vector<256x384xbf16>
    %c2_40 = arith.constant 2 : index
    %c0_41 = arith.constant 0 : index
    %c0_42 = arith.constant 0 : index
    %38 = vector.load %arg3[%c2_40, %c0_41, %c0_42] : memref<3x384x128xbf16, #tpu.memory_space<vmem>>, vector<1x384x128xbf16>
    %39 = vector.shape_cast %38 : vector<1x384x128xbf16> to vector<384x128xbf16>
    %cst_43 = arith.constant dense<0.000000e+00> : vector<256x128xf32>
    %40 = tpu.matmul %37, %39, %cst_43 {dimension_numbers = #tpu.dot_dimension_numbers<[1], [0], [0], [1], [0, 0, 1, 1], [], []>} : vector<256x384xbf16>, vector<384x128xbf16>, vector<256x128xf32> -> vector<256x128xf32>
    %41 = arith.addf %35, %40 : vector<256x128xf32>
    %42 = arith.truncf %41 : vector<256x128xf32> to vector<256x128xbf16>
    %c0_44 = arith.constant 0 : index
    %c0_45 = arith.constant 0 : index
    %43 = vector.load %arg4[%c0_44, %c0_45] : memref<256x128xbf16, #tpu.memory_space<vmem>>, vector<256x128xbf16>
    tpu.vector_store %arg4[%c0_44, %c0_45], %42 {strides = array<i32>} : memref<256x128xbf16, #tpu.memory_space<vmem>>, vector<256x128xbf16>,
    %cst_46 = arith.constant dense<0.000000e+00> : vector<128xf32>
    %44 = vector.multi_reduction <add>, %41, %cst_46 [0] : vector<256x128xf32> to vector<128xf32>
    %45 = vector.shape_cast %44 : vector<128xf32> to vector<1x128xf32>
    %46 = arith.mulf %41, %41 : vector<256x128xf32>
    %cst_47 = arith.constant dense<0.000000e+00> : vector<128xf32>
    %47 = vector.multi_reduction <add>, %46, %cst_47 [0] : vector<256x128xf32> to vector<128xf32>
    %48 = vector.shape_cast %47 : vector<128xf32> to vector<1x128xf32>
    %49 = tpu.concatenate %45, %48 in 0 : vector<1x128xf32>, vector<1x128xf32> -> vector<2x128xf32>
    %50 = vector.shape_cast %49 : vector<2x128xf32> to vector<1x2x128xf32>
    %c0_48 = arith.constant 0 : index
    %c0_49 = arith.constant 0 : index
    %c0_50 = arith.constant 0 : index
    %51 = vector.load %arg5[%c0_48, %c0_49, %c0_50] : memref<1x2x128xf32, #tpu.memory_space<vmem>>, vector<1x2x128xf32>
    tpu.vector_store %arg5[%c0_48, %c0_49, %c0_50], %50 {strides = array<i32>} : memref<1x2x128xf32, #tpu.memory_space<vmem>>, vector<1x2x128xf32>,
    return
  }
  func.func @transform_0(%arg0: i32) -> (i32, i32) {
    %c0_i32 = arith.constant 0 : i32
    %c0_i32_0 = arith.constant 0 : i32
    return %arg0, %c0_i32 : i32, i32
  }
  func.func @transform_1(%arg0: i32) -> (i32, i32) {
    %c0_i32 = arith.constant 0 : i32
    %c0_i32_0 = arith.constant 0 : i32
    %c0_i32_1 = arith.constant 0 : i32
    return %c0_i32, %c0_i32_0 : i32, i32
  }
  func.func @transform_2(%arg0: i32) -> (i32, i32, i32) {
    %c0_i32 = arith.constant 0 : i32
    %c0_i32_0 = arith.constant 0 : i32
    %c0_i32_1 = arith.constant 0 : i32
    %c0_i32_2 = arith.constant 0 : i32
    return %c0_i32, %c0_i32_0, %c0_i32_1 : i32, i32, i32
  }
  func.func @transform_3(%arg0: i32) -> (i32, i32) {
    %c0_i32 = arith.constant 0 : i32
    %c0_i32_0 = arith.constant 0 : i32
    return %arg0, %c0_i32 : i32, i32
  }
  func.func @transform_4(%arg0: i32) -> (i32, i32, i32) {
    %c0_i32 = arith.constant 0 : i32
    %c0_i32_0 = arith.constant 0 : i32
    %c0_i32_1 = arith.constant 0 : i32
    return %arg0, %c0_i32, %c0_i32_0 : i32, i32, i32
  }
}

module attributes {stable_mosaic.version = 11 : i64} {
  func.func @_bn2_skip_add_relu_kernel(%arg0: i32, %arg1: memref<256x128xbf16, #tpu.memory_space<vmem>>, %arg2: memref<256x128xbf16, #tpu.memory_space<vmem>>, %arg3: memref<4x128xf32, #tpu.memory_space<vmem>>, %arg4: memref<256x128xf32, #tpu.memory_space<vmem>>) attributes {dimension_semantics = [#tpu.dimension_semantics<parallel>], iteration_bounds = array<i64: 2>, scalar_prefetch = 0 : i64, scratch_operands = 0 : i64, tpu.core_type = #tpu.core_type<tc>, window_params = [{transform_indices = @transform_0, window_bounds = array<i64: 256, 128>}, {transform_indices = @transform_1, window_bounds = array<i64: 256, 128>}, {pipeline_mode = #tpu.pipeline_mode<synchronous>, transform_indices = @transform_2, window_bounds = array<i64: 4, 128>}, {transform_indices = @transform_3, window_bounds = array<i64: 256, 128>}]} {
    %c0 = arith.constant 0 : index
    %c0_0 = arith.constant 0 : index
    %0 = vector.load %arg1[%c0, %c0_0] : memref<256x128xbf16, #tpu.memory_space<vmem>>, vector<256x128xbf16>
    %1 = arith.extf %0 : vector<256x128xbf16> to vector<256x128xf32>
    %c0_1 = arith.constant 0 : index
    %c0_2 = arith.constant 0 : index
    %2 = vector.load %arg3[%c0_1, %c0_2] : memref<4x128xf32, #tpu.memory_space<vmem>>, vector<1x128xf32>
    %3 = vector.broadcast %2 : vector<1x128xf32> to vector<256x128xf32>
    %4 = arith.mulf %1, %3 : vector<256x128xf32>
    %c1 = arith.constant 1 : index
    %c0_3 = arith.constant 0 : index
    %5 = vector.load %arg3[%c1, %c0_3] : memref<4x128xf32, #tpu.memory_space<vmem>>, vector<1x128xf32>
    %6 = vector.broadcast %5 : vector<1x128xf32> to vector<256x128xf32>
    %7 = arith.addf %4, %6 : vector<256x128xf32>
    %c0_4 = arith.constant 0 : index
    %c0_5 = arith.constant 0 : index
    %8 = vector.load %arg2[%c0_4, %c0_5] : memref<256x128xbf16, #tpu.memory_space<vmem>>, vector<256x128xbf16>
    %9 = arith.extf %8 : vector<256x128xbf16> to vector<256x128xf32>
    %c2 = arith.constant 2 : index
    %c0_6 = arith.constant 0 : index
    %10 = vector.load %arg3[%c2, %c0_6] : memref<4x128xf32, #tpu.memory_space<vmem>>, vector<1x128xf32>
    %11 = vector.broadcast %10 : vector<1x128xf32> to vector<256x128xf32>
    %12 = arith.mulf %9, %11 : vector<256x128xf32>
    %c3 = arith.constant 3 : index
    %c0_7 = arith.constant 0 : index
    %13 = vector.load %arg3[%c3, %c0_7] : memref<4x128xf32, #tpu.memory_space<vmem>>, vector<1x128xf32>
    %14 = vector.broadcast %13 : vector<1x128xf32> to vector<256x128xf32>
    %15 = arith.addf %12, %14 : vector<256x128xf32>
    %16 = arith.addf %7, %15 : vector<256x128xf32>
    %cst = arith.constant 0.000000e+00 : f32
    %17 = vector.broadcast %cst : f32 to vector<256x128xf32>
    %18 = arith.maximumf %16, %17 : vector<256x128xf32>
    %c0_8 = arith.constant 0 : index
    %c0_9 = arith.constant 0 : index
    %19 = vector.load %arg4[%c0_8, %c0_9] : memref<256x128xf32, #tpu.memory_space<vmem>>, vector<256x128xf32>
    tpu.vector_store %arg4[%c0_8, %c0_9], %18 {strides = array<i32>} : memref<256x128xf32, #tpu.memory_space<vmem>>, vector<256x128xf32>,
    return
  }
  func.func @transform_0(%arg0: i32) -> (i32, i32) {
    %c0_i32 = arith.constant 0 : i32
    %c0_i32_0 = arith.constant 0 : i32
    return %arg0, %c0_i32 : i32, i32
  }
  func.func @transform_1(%arg0: i32) -> (i32, i32) {
    %c0_i32 = arith.constant 0 : i32
    %c0_i32_0 = arith.constant 0 : i32
    return %arg0, %c0_i32 : i32, i32
  }
  func.func @transform_2(%arg0: i32) -> (i32, i32) {
    %c0_i32 = arith.constant 0 : i32
    %c0_i32_0 = arith.constant 0 : i32
    %c0_i32_1 = arith.constant 0 : i32
    return %c0_i32, %c0_i32_0 : i32, i32
  }
  func.func @transform_3(%arg0: i32) -> (i32, i32) {
    %c0_i32 = arith.constant 0 : i32
    %c0_i32_0 = arith.constant 0 : i32
    return %arg0, %c0_i32 : i32, i32
  }
}

</mosaic_0001>

<llo_original>
// kernel: mock_residual_block_forward.3
$region0: #{mock_residual_block_forward.3}
  #allocation0 [shape = 'u32[]', space=smem, size = 0x4, offset = 0x4, fixed_abs, tag = 'smem constant byte address 0x4 - core index']
  #allocation1 [shape = 'u32[72,128]{1,0:T(1,128)}', space=vmem, size = 0x9000, scoped, tag = 'internal scratch']
  %s0 = inlined_call_operand.vmem [shape: bf16[512,128], index: 0, kind: input, shape index: {}]
  %s1 = inlined_call_operand.vmem [shape: bf16[128,256], index: 1, kind: input, shape index: {}]
  %s2 = inlined_call_operand.vmem [shape: bf16[512,128], index: 2, kind: output, shape index: {0}]
  %s3 = inlined_call_operand.vmem [shape: bf16[512,128], index: 3, kind: output, shape index: {1}]
  %s4 = inlined_call_operand.vmem [shape: f32[2,2,256], index: 4, kind: output, shape index: {2}]
  %5 = xla_tuple %s2, %s3, %s4
  %s6 = sld [smem:[#allocation0]]
  $region57: #{mock_residual_block_forward.3} parent=0
    _
  %s8 = ssub.s32 1, %s6
  %s9 = scalar_select 0, %s8, %s6
  loop: start=0, step=1, limit=4
  $region2: #{mock_residual_block_forward.3} parent=0 // loop_pre_header
    _
  $region3: #{mock_residual_block_forward.3} parent=0 // loop_header
    %s11 = sphi 0, %s15
    %p12 = scmp.ge.s32.totalorder %s11, 4
    %s21 = sphi 0, %s23
    %s24 = sphi 0, %s21
    %s25 = sphi 0, %s24
    %s41 = sphi 0, %s25
    %s45 = sphi 0, %s45
    %s47 = sphi 0, %s45
    %s48 = sphi 0, %s47
    %s62 = sphi 0, %s48
    %s68 = sphi 0, %s70
    %s71 = sphi 0, %s68
    %s72 = sphi 0, %s71
    %s88 = sphi 0, %s72
    %s94 = sphi 0, %s96
    %s97 = sphi 0, %s94
    %s98 = sphi 0, %s97
    %s114 = sphi 0, %s98
    %s120 = sphi 0, %s122
    %s123 = sphi 0, %s120
    %s124 = sphi 0, %s123
    %s140 = sphi 0, %s124
  $region4: #{mock_residual_block_forward.3} parent=0 // loop_header_branch
    %14 = sbr.rel (%p12) target = $region8
  $region5: #{mock_residual_block_forward.3} parent=0 // loop_body
    %s16 = ssub.s32 %s11, 1
    %s17 = ssub.s32 %s11, 2
    %s18 = sadd.s32 %s11, 1
    %s19 = ssub.s32 %s11, %s18
    %p20 = scmp.eq.s32.totalorder %s19, 0
    %s22 = sadd.s32 %s21, 1
    %s23 = scalar_select %p20, %s21, %s22
    %p26 = pneg %p20
    %p27 = scmp.eq.s32.totalorder %s11, 1
    %p28 = por %p26, %p27
    %p29 = scmp.ne.s32.totalorder %s21, %s24
    %p30 = scmp.eq.s32.totalorder %s11, 0
    %p31 = por %p29, %p30
    %p32 = scmp.ne.s32.totalorder %s21, %s24
    %p33 = scmp.eq.s32.totalorder %s16, 1
    %p34 = por %p32, %p33
    %p35 = scmp.ne.s32.totalorder %s24, %s25
    %p36 = scmp.eq.s32.totalorder %s16, 0
    %p37 = por %p35, %p36
    %p38 = scmp.ne.s32.totalorder %s24, %s25
    %p39 = scmp.eq.s32.totalorder %s17, 1
    %p40 = por %p38, %p39
    %p42 = scmp.ne.s32.totalorder %s25, %s41
    %p43 = scmp.eq.s32.totalorder %s17, 0
    %p44 = por %p42, %p43
    %s46 = sadd.s32 %s45, 1
    %p49 = scmp.eq.s32.totalorder %s11, 1
    %p50 = scmp.ne.s32.totalorder %s45, %s47
    %p51 = scmp.eq.s32.totalorder %s11, 0
    %p52 = por %p50, %p51
    %p53 = scmp.ne.s32.totalorder %s45, %s47
    %p54 = scmp.eq.s32.totalorder %s16, 1
    %p55 = por %p53, %p54
    %p56 = scmp.ne.s32.totalorder %s47, %s48
    %p57 = scmp.eq.s32.totalorder %s16, 0
    %p58 = por %p56, %p57
    %p59 = scmp.ne.s32.totalorder %s47, %s48
    %p60 = scmp.eq.s32.totalorder %s17, 1
    %p61 = por %p59, %p60
    %p63 = scmp.ne.s32.totalorder %s48, %s62
    %p64 = scmp.eq.s32.totalorder %s17, 0
    %p65 = por %p63, %p64
    %s66 = ssub.s32 %s11, %s18
    %p67 = scmp.eq.s32.totalorder %s66, 0
    %s69 = sadd.s32 %s68, 1
    %s70 = scalar_select %p67, %s68, %s69
    %p73 = pneg %p67
    %p74 = scmp.eq.s32.totalorder %s11, 1
    %p75 = por %p73, %p74
    %p76 = scmp.ne.s32.totalorder %s68, %s71
    %p77 = scmp.eq.s32.totalorder %s11, 0
    %p78 = por %p76, %p77
    %p79 = scmp.ne.s32.totalorder %s68, %s71
    %p80 = scmp.eq.s32.totalorder %s16, 1
    %p81 = por %p79, %p80
    %p82 = scmp.ne.s32.totalorder %s71, %s72
    %p83 = scmp.eq.s32.totalorder %s16, 0
    %p84 = por %p82, %p83
    %p85 = scmp.ne.s32.totalorder %s71, %s72
    %p86 = scmp.eq.s32.totalorder %s17, 1
    %p87 = por %p85, %p86
    %p89 = scmp.ne.s32.totalorder %s72, %s88
    %p90 = scmp.eq.s32.totalorder %s17, 0
    %p91 = por %p89, %p90
    %s92 = ssub.s32 %s11, %s18
    %p93 = scmp.eq.s32.totalorder %s92, 0
    %s95 = sadd.s32 %s94, 1
    %s96 = scalar_select %p93, %s94, %s95
    %p99 = pneg %p93
    %p100 = scmp.eq.s32.totalorder %s11, 1
    %p101 = por %p99, %p100
    %p102 = scmp.ne.s32.totalorder %s94, %s97
    %p103 = scmp.eq.s32.totalorder %s11, 0
    %p104 = por %p102, %p103
    %p105 = scmp.ne.s32.totalorder %s94, %s97
    %p106 = scmp.eq.s32.totalorder %s16, 1
    %p107 = por %p105, %p106
    %p108 = scmp.ne.s32.totalorder %s97, %s98
    %p109 = scmp.eq.s32.totalorder %s16, 0
    %p110 = por %p108, %p109
    %p111 = scmp.ne.s32.totalorder %s97, %s98
    %p112 = scmp.eq.s32.totalorder %s17, 1
    %p113 = por %p111, %p112
    %p115 = scmp.ne.s32.totalorder %s98, %s114
    %p116 = scmp.eq.s32.totalorder %s17, 0
    %p117 = por %p115, %p116
    %s118 = ssub.s32 %s11, %s18
    %p119 = scmp.eq.s32.totalorder %s118, 0
    %s121 = sadd.s32 %s120, 1
    %s122 = scalar_select %p119, %s120, %s121
    %p125 = pneg %p119
    %p126 = scmp.eq.s32.totalorder %s11, 1
    %p127 = por %p125, %p126
    %p128 = scmp.ne.s32.totalorder %s120, %s123
    %p129 = scmp.eq.s32.totalorder %s11, 0
    %p130 = por %p128, %p129
    %p131 = scmp.ne.s32.totalorder %s120, %s123
    %p132 = scmp.eq.s32.totalorder %s16, 1
    %p133 = por %p131, %p132
    %p134 = scmp.ne.s32.totalorder %s123, %s124
    %p135 = scmp.eq.s32.totalorder %s16, 0
    %p136 = por %p134, %p135
    %p137 = scmp.ne.s32.totalorder %s123, %s124
    %p138 = scmp.eq.s32.totalorder %s17, 1
    %p139 = por %p137, %p138
    %p141 = scmp.ne.s32.totalorder %s124, %s140
    %p142 = scmp.eq.s32.totalorder %s17, 0
    %p143 = por %p141, %p142
    %p144 = scmp.le.s32.totalorder 1, %s11
    %p145 = scmp.lt.s32.totalorder %s11, 3
    %p146 = pnand %p144, %p145
    %p147 = pneg %p146
    // Predicated region
    $region9: #{mock_residual_block_forward.3} parent=5 // pred_check
      _
    $region10: #{mock_residual_block_forward.3} parent=5 // pred_check_branch
      %149 = sbr.rel (%p146) target = $region12
    $region11: #{mock_residual_block_forward.3} parent=5 // pred_region
      %s150 = ssub.s32 %s11, 1
      // Predicated region
      $region13: #{mock_residual_block_forward.3} parent=11 // pred_check
        %p151 = pneg %p58
      $region14: #{mock_residual_block_forward.3} parent=11 // pred_check_branch
        %153 = sbr.rel (%p151) target = $region16
      $region15: #{mock_residual_block_forward.3} parent=11 // pred_region
        _
      $region16: #{mock_residual_block_forward.3} parent=11 // pred_fallthru
        _
    $region12: #{mock_residual_block_forward.3} parent=5 // pred_fallthru
      _
    %p154 = scmp.lt.s32.totalorder %s11, 2
    // Predicated region
    $region17: #{mock_residual_block_forward.3} parent=5 // pred_check
      %p155 = pneg %p154
    $region18: #{mock_residual_block_forward.3} parent=5 // pred_check_branch
      %157 = sbr.rel (%p155) target = $region20
    $region19: #{mock_residual_block_forward.3} parent=5 // pred_region
      // Predicated region
      $region21: #{mock_residual_block_forward.3} parent=19 // pred_check
        %p158 = pneg %p31
      $region22: #{mock_residual_block_forward.3} parent=19 // pred_check_branch
        %160 = sbr.rel (%p158) target = $region24
      $region23: #{mock_residual_block_forward.3} parent=19 // pred_region
        %s161 = smul.u32 32, %s11
        %p162 = scmp.lt.s32.totalorder %s161, 63
        %s163 = scalar_select %p162, %s161, 63
        %s164 = smul.addr %s163, 4
        %s165 = scalar_lea.vmem %s0, %s164
        %s166 = smul.u32 32, %s11
      $region24: #{mock_residual_block_forward.3} parent=19 // pred_fallthru
        _
    $region20: #{mock_residual_block_forward.3} parent=5 // pred_fallthru
      _
    %p167 = scmp.le.s32.totalorder 1, %s11
    %p168 = scmp.lt.s32.totalorder %s11, 3
    %p169 = pnand %p167, %p168
    %p170 = pneg %p169
    // Predicated region
    $region25: #{mock_residual_block_forward.3} parent=5 // pred_check
      _
    $region26: #{mock_residual_block_forward.3} parent=5 // pred_check_branch
      %172 = sbr.rel (%p169) target = $region28
    $region27: #{mock_residual_block_forward.3} parent=5 // pred_region
      %s173 = ssub.s32 %s11, 1
      %s174 = smul.u32 32, %s16
      %p175 = scmp.lt.s32.totalorder %s174, 63
      %s176 = scalar_select %p175, %s174, 63
      %s177 = smul.addr %s176, 4
      %s178 = scalar_lea.vmem %s0, %s177
      %p179 = pneg %p37
      %p180 = pneg %p34
      %p181 = pneg %p58
      %p182 = pneg %p55
      %p183 = pneg %p84
      %p184 = pneg %p81
      %s185 = smul.u32 32, %s16
      %p186 = scmp.lt.s32.totalorder %s185, 63
      %s187 = scalar_select %p186, %s185, 63
      %s188 = smul.addr %s187, 4
      %s189 = scalar_lea.vmem %s2, %s188
      %p190 = pneg %p110
      %p191 = pneg %p107
      %s192 = smul.u32 32, %s16
      %p193 = scmp.lt.s32.totalorder %s192, 63
      %s194 = scalar_select %p193, %s192, 63
      %s195 = smul.addr %s194, 4
      %s196 = scalar_lea.vmem %s3, %s195
      %p197 = pneg %p136
      %p198 = pneg %p133
      %p199 = scmp.lt.s32.totalorder %s16, 1
      %s200 = scalar_select %p199, %s16, 1
      %s201 = smul.addr %s200, 2
      %s202 = smul.addr %s201, 2
      %s203 = scalar_lea.vmem %s4, %s202
      %s204 = smul.u32 32, %s16
      %p205 = scmp.lt.s32.totalorder %s204, 63
      %s206 = scalar_select %p205, %s204, 63
      %s207 = smul.addr %s206, 4
      %s208 = scalar_lea.vmem %s0, %s207
      %s209 = smul.u32 32, %s16
      %s210 = smul.u32 32, %s16
      %p211 = scmp.lt.s32.totalorder %s210, 63
      %s212 = scalar_select %p211, %s210, 63
      %s213 = smul.addr %s212, 4
      %s214 = scalar_lea.vmem %s2, %s213
      %s215 = smul.u32 32, %s16
      %s216 = smul.u32 32, %s16
      %p217 = scmp.lt.s32.totalorder %s216, 63
      %s218 = scalar_select %p217, %s216, 63
      %s219 = smul.addr %s218, 4
      %s220 = scalar_lea.vmem %s3, %s219
      %s221 = smul.u32 32, %s16
      %p222 = scmp.lt.s32.totalorder %s16, 1
      %s223 = scalar_select %p222, %s16, 1
      %s224 = smul.addr %s223, 2
      %s225 = smul.addr %s224, 2
      %s226 = scalar_lea.vmem %s4, %s225
      %v227 = vld [vmem:[%s208] sm:$0xf]
      %v228 = vld [vmem:[%s208 + $0x4] sm:$0xf]
      %v229 = vld [vmem:[%s208 + $0x8] sm:$0xf]
      %v230 = vld [vmem:[%s208 + $0xc] sm:$0xf]
      %v231 = vld [vmem:[%s208 + $0x10] sm:$0xf]
      %v232 = vld [vmem:[%s208 + $0x14] sm:$0xf]
      %v233 = vld [vmem:[%s208 + $0x18] sm:$0xf]
      %v234 = vld [vmem:[%s208 + $0x1c] sm:$0xf]
      %v235 = vld [vmem:[%s208 + $0x20] sm:$0xf]
      %v236 = vld [vmem:[%s208 + $0x24] sm:$0xf]
      %v237 = vld [vmem:[%s208 + $0x28] sm:$0xf]
      %v238 = vld [vmem:[%s208 + $0x2c] sm:$0xf]
      %v239 = vld [vmem:[%s208 + $0x30] sm:$0xf]
      %v240 = vld [vmem:[%s208 + $0x34] sm:$0xf]
      %v241 = vld [vmem:[%s208 + $0x38] sm:$0xf]
      %v242 = vld [vmem:[%s208 + $0x3c] sm:$0xf]
      %v243 = vld [vmem:[%s208 + $0x40] sm:$0xf]
      %v244 = vld [vmem:[%s208 + $0x44] sm:$0xf]
      %v245 = vld [vmem:[%s208 + $0x48] sm:$0xf]
      %v246 = vld [vmem:[%s208 + $0x4c] sm:$0xf]
      %v247 = vld [vmem:[%s208 + $0x50] sm:$0xf]
      %v248 = vld [vmem:[%s208 + $0x54] sm:$0xf]
      %v249 = vld [vmem:[%s208 + $0x58] sm:$0xf]
      %v250 = vld [vmem:[%s208 + $0x5c] sm:$0xf]
      %v251 = vld [vmem:[%s208 + $0x60] sm:$0xf]
      %v252 = vld [vmem:[%s208 + $0x64] sm:$0xf]
      %v253 = vld [vmem:[%s208 + $0x68] sm:$0xf]
      %v254 = vld [vmem:[%s208 + $0x6c] sm:$0xf]
      %v255 = vld [vmem:[%s208 + $0x70] sm:$0xf]
      %v256 = vld [vmem:[%s208 + $0x74] sm:$0xf]
      %v257 = vld [vmem:[%s208 + $0x78] sm:$0xf]
      %v258 = vld [vmem:[%s208 + $0x7c] sm:$0xf]
      %v259 = vld [vmem:[%s1] sm:$0xff]
      %v260 = vld [vmem:[%s1 + $0x8] sm:$0xff]
      %v261 = vld [vmem:[%s1 + $0x10] sm:$0xff]
      %v262 = vld [vmem:[%s1 + $0x18] sm:$0xff]
      %v263 = vld [vmem:[%s1 + $0x20] sm:$0xff]
      %v264 = vld [vmem:[%s1 + $0x28] sm:$0xff]
      %v265 = vld [vmem:[%s1 + $0x30] sm:$0xff]
      %v266 = vld [vmem:[%s1 + $0x38] sm:$0xff]
      %v267 = vld [vmem:[%s1 + $0x40] sm:$0xff]
      %v268 = vld [vmem:[%s1 + $0x48] sm:$0xff]
      %v269 = vld [vmem:[%s1 + $0x50] sm:$0xff]
      %v270 = vld [vmem:[%s1 + $0x58] sm:$0xff]
      %v271 = vld [vmem:[%s1 + $0x60] sm:$0xff]
      %v272 = vld [vmem:[%s1 + $0x68] sm:$0xff]
      %v273 = vld [vmem:[%s1 + $0x70] sm:$0xff]
      %v274 = vld [vmem:[%s1 + $0x78] sm:$0xff]
      %v307 = vunpack.c.l.b16 %v227
      %v308 = vunpack.c.l.b16 %v228
      %v309 = vunpack.c.l.b16 %v229
      %v310 = vunpack.c.l.b16 %v230
      %v311 = vunpack.c.l.b16 %v231
      %v312 = vunpack.c.l.b16 %v232
      %v313 = vunpack.c.l.b16 %v233
      %v314 = vunpack.c.l.b16 %v234
      %v315 = vunpack.c.l.b16 %v235
      %v316 = vunpack.c.l.b16 %v236
      %v317 = vunpack.c.l.b16 %v237
      %v318 = vunpack.c.l.b16 %v238
      %v319 = vunpack.c.l.b16 %v239
      %v320 = vunpack.c.l.b16 %v240
      %v321 = vunpack.c.l.b16 %v241
      %v322 = vunpack.c.l.b16 %v242
      %v323 = vunpack.c.l.b16 %v243
      %v324 = vunpack.c.l.b16 %v244
      %v325 = vunpack.c.l.b16 %v245
      %v326 = vunpack.c.l.b16 %v246
      %v327 = vunpack.c.l.b16 %v247
      %v328 = vunpack.c.l.b16 %v248
      %v329 = vunpack.c.l.b16 %v249
      %v330 = vunpack.c.l.b16 %v250
      %v331 = vunpack.c.l.b16 %v251
      %v332 = vunpack.c.l.b16 %v252
      %v333 = vunpack.c.l.b16 %v253
      %v334 = vunpack.c.l.b16 %v254
      %v335 = vunpack.c.l.b16 %v255
      %v336 = vunpack.c.l.b16 %v256
      %v337 = vunpack.c.l.b16 %v257
      %v338 = vunpack.c.l.b16 %v258
      %v339 = vpack.c.b16 %v308, %v307
      %v340 = vpack.c.b16 %v310, %v309
      %v341 = vpack.c.b16 %v312, %v311
      %v342 = vpack.c.b16 %v314, %v313
      %v343 = vpack.c.b16 %v316, %v315
      %v344 = vpack.c.b16 %v318, %v317
      %v345 = vpack.c.b16 %v320, %v319
      %v346 = vpack.c.b16 %v322, %v321
      %v347 = vpack.c.b16 %v324, %v323
      %v348 = vpack.c.b16 %v326, %v325
      %v349 = vpack.c.b16 %v328, %v327
      %v350 = vpack.c.b16 %v330, %v329
      %v351 = vpack.c.b16 %v332, %v331
      %v352 = vpack.c.b16 %v334, %v333
      %v353 = vpack.c.b16 %v336, %v335
      %v354 = vpack.c.b16 %v338, %v337
      %v387 = vunpack.c.l.b16 %v259
      %v388 = vunpack.c.h.b16 %v259
      %v389 = vunpack.c.l.b16 %v260
      %v390 = vunpack.c.h.b16 %v260
      %v391 = vunpack.c.l.b16 %v261
      %v392 = vunpack.c.h.b16 %v261
      %v393 = vunpack.c.l.b16 %v262
      %v394 = vunpack.c.h.b16 %v262
      %v395 = vunpack.c.l.b16 %v263
      %v396 = vunpack.c.h.b16 %v263
      %v397 = vunpack.c.l.b16 %v264
      %v398 = vunpack.c.h.b16 %v264
      %v399 = vunpack.c.l.b16 %v265
      %v400 = vunpack.c.h.b16 %v265
      %v401 = vunpack.c.l.b16 %v266
      %v402 = vunpack.c.h.b16 %v266
      %v403 = vunpack.c.l.b16 %v267
      %v404 = vunpack.c.h.b16 %v267
      %v405 = vunpack.c.l.b16 %v268
      %v406 = vunpack.c.h.b16 %v268
      %v407 = vunpack.c.l.b16 %v269
      %v408 = vunpack.c.h.b16 %v269
      %v409 = vunpack.c.l.b16 %v270
      %v410 = vunpack.c.h.b16 %v270
      %v411 = vunpack.c.l.b16 %v271
      %v412 = vunpack.c.h.b16 %v271
      %v413 = vunpack.c.l.b16 %v272
      %v414 = vunpack.c.h.b16 %v272
      %v415 = vunpack.c.l.b16 %v273
      %v416 = vunpack.c.h.b16 %v273
      %v417 = vunpack.c.l.b16 %v274
      %v418 = vunpack.c.h.b16 %v274
      %v419 = vpack.c.b16 %v389, %v387
      %v420 = vpack.c.b16 %v390, %v388
      %v421 = vpack.c.b16 %v393, %v391
      %v422 = vpack.c.b16 %v394, %v392
      %v423 = vpack.c.b16 %v397, %v395
      %v424 = vpack.c.b16 %v398, %v396
      %v425 = vpack.c.b16 %v401, %v399
      %v426 = vpack.c.b16 %v402, %v400
      %v427 = vpack.c.b16 %v405, %v403
      %v428 = vpack.c.b16 %v406, %v404
      %v429 = vpack.c.b16 %v409, %v407
      %v430 = vpack.c.b16 %v410, %v408
      %v431 = vpack.c.b16 %v413, %v411
      %v432 = vpack.c.b16 %v414, %v412
      %v433 = vpack.c.b16 %v417, %v415
      %v434 = vpack.c.b16 %v418, %v416
      %451 = vmatpush.bf16.msra.mxu0 %v433
      %452 = vmatpush.bf16.msra.mxu0 %v431
      %453 = vmatpush.bf16.msra.mxu0 %v429
      %454 = vmatpush.bf16.msra.mxu0 %v427
      %455 = vmatpush.bf16.msra.mxu0 %v425
      %456 = vmatpush.bf16.msra.mxu0 %v423
      %457 = vmatpush.bf16.msra.mxu0 %v421
      %458 = vmatpush.bf16.msra.mxu0 %v419
      %459 = vmatmul.bf16.gmra.mxu0 %v339
      %v460 = vpop.f32.mrf.mxu0
      %v461 = vadd.f32 0.0, %v460
      %v462 = vpop.f32.mrf.mxu0
      %v463 = vadd.f32 0.0, %v462
      %464 = vmatmul.bf16.gmra.mxu0 %v340
      %v465 = vpop.f32.mrf.mxu0
      %v466 = vadd.f32 0.0, %v465
      %v467 = vpop.f32.mrf.mxu0
      %v468 = vadd.f32 0.0, %v467
      %469 = vmatmul.bf16.gmra.mxu0 %v341
      %v470 = vpop.f32.mrf.mxu0
      %v471 = vadd.f32 0.0, %v470
      %v472 = vpop.f32.mrf.mxu0
      %v473 = vadd.f32 0.0, %v472
      %474 = vmatmul.bf16.gmra.mxu0 %v342
      %v475 = vpop.f32.mrf.mxu0
      %v476 = vadd.f32 0.0, %v475
      %v477 = vpop.f32.mrf.mxu0
      %v478 = vadd.f32 0.0, %v477
      %479 = vmatmul.bf16.gmra.mxu0 %v343
      %v480 = vpop.f32.mrf.mxu0
      %v481 = vadd.f32 0.0, %v480
      %v482 = vpop.f32.mrf.mxu0
      %v483 = vadd.f32 0.0, %v482
      %484 = vmatmul.bf16.gmra.mxu0 %v344
      %v485 = vpop.f32.mrf.mxu0
      %v486 = vadd.f32 0.0, %v485
      %v487 = vpop.f32.mrf.mxu0
      %v488 = vadd.f32 0.0, %v487
      %489 = vmatmul.bf16.gmra.mxu0 %v345
      %v490 = vpop.f32.mrf.mxu0
      %v491 = vadd.f32 0.0, %v490
      %v492 = vpop.f32.mrf.mxu0
      %v493 = vadd.f32 0.0, %v492
      %494 = vmatmul.bf16.gmra.mxu0 %v346
      %v495 = vpop.f32.mrf.mxu0
      %v496 = vadd.f32 0.0, %v495
      %v497 = vpop.f32.mrf.mxu0
      %v498 = vadd.f32 0.0, %v497
      %499 = vmatmul.bf16.gmra.mxu0 %v347
      %v500 = vpop.f32.mrf.mxu0
      %v501 = vadd.f32 0.0, %v500
      %v502 = vpop.f32.mrf.mxu0
      %v503 = vadd.f32 0.0, %v502
      %504 = vmatmul.bf16.gmra.mxu0 %v348
      %v505 = vpop.f32.mrf.mxu0
      %v506 = vadd.f32 0.0, %v505
      %v507 = vpop.f32.mrf.mxu0
      %v508 = vadd.f32 0.0, %v507
      %509 = vmatmul.bf16.gmra.mxu0 %v349
      %v510 = vpop.f32.mrf.mxu0
      %v511 = vadd.f32 0.0, %v510
      %v512 = vpop.f32.mrf.mxu0
      %v513 = vadd.f32 0.0, %v512
      %514 = vmatmul.bf16.gmra.mxu0 %v350
      %v515 = vpop.f32.mrf.mxu0
      %v516 = vadd.f32 0.0, %v515
      %v517 = vpop.f32.mrf.mxu0
      %v518 = vadd.f32 0.0, %v517
      %519 = vmatmul.bf16.gmra.mxu0 %v351
      %v520 = vpop.f32.mrf.mxu0
      %v521 = vadd.f32 0.0, %v520
      %v522 = vpop.f32.mrf.mxu0
      %v523 = vadd.f32 0.0, %v522
      %524 = vmatmul.bf16.gmra.mxu0 %v352
      %v525 = vpop.f32.mrf.mxu0
      %v526 = vadd.f32 0.0, %v525
      %v527 = vpop.f32.mrf.mxu0
      %v528 = vadd.f32 0.0, %v527
      %529 = vmatmul.bf16.gmra.mxu0 %v353
      %v530 = vpop.f32.mrf.mxu0
      %v531 = vadd.f32 0.0, %v530
      %v532 = vpop.f32.mrf.mxu0
      %v533 = vadd.f32 0.0, %v532
      %534 = vmatmul.bf16.gmra.mxu0 %v354
      %v535 = vpop.f32.mrf.mxu0
      %v536 = vadd.f32 0.0, %v535
      %v537 = vpop.f32.mrf.mxu0
      %v538 = vadd.f32 0.0, %v537
      %539 = vdwg.mxu0
      %540 = vmatpush.bf16.msra.mxu0 %v434
      %541 = vmatpush.bf16.msra.mxu0 %v432
      %542 = vmatpush.bf16.msra.mxu0 %v430
      %543 = vmatpush.bf16.msra.mxu0 %v428
      %544 = vmatpush.bf16.msra.mxu0 %v426
      %545 = vmatpush.bf16.msra.mxu0 %v424
      %546 = vmatpush.bf16.msra.mxu0 %v422
      %547 = vmatpush.bf16.msra.mxu0 %v420
      %548 = vmatmul.bf16.gmra.mxu0 %v339
      %v549 = vpop.f32.mrf.mxu0
      %v550 = vadd.f32 0.0, %v549
      %v551 = vpop.f32.mrf.mxu0
      %v552 = vadd.f32 0.0, %v551
      %553 = vmatmul.bf16.gmra.mxu0 %v340
      %v554 = vpop.f32.mrf.mxu0
      %v555 = vadd.f32 0.0, %v554
      %v556 = vpop.f32.mrf.mxu0
      %v557 = vadd.f32 0.0, %v556
      %558 = vmatmul.bf16.gmra.mxu0 %v341
      %v559 = vpop.f32.mrf.mxu0
      %v560 = vadd.f32 0.0, %v559
      %v561 = vpop.f32.mrf.mxu0
      %v562 = vadd.f32 0.0, %v561
      %563 = vmatmul.bf16.gmra.mxu0 %v342
      %v564 = vpop.f32.mrf.mxu0
      %v565 = vadd.f32 0.0, %v564
      %v566 = vpop.f32.mrf.mxu0
      %v567 = vadd.f32 0.0, %v566
      %568 = vmatmul.bf16.gmra.mxu0 %v343
      %v569 = vpop.f32.mrf.mxu0
      %v570 = vadd.f32 0.0, %v569
      %v571 = vpop.f32.mrf.mxu0
      %v572 = vadd.f32 0.0, %v571
      %573 = vmatmul.bf16.gmra.mxu0 %v344
      %v574 = vpop.f32.mrf.mxu0
      %v575 = vadd.f32 0.0, %v574
      %v576 = vpop.f32.mrf.mxu0
      %v577 = vadd.f32 0.0, %v576
      %578 = vmatmul.bf16.gmra.mxu0 %v345
      %v579 = vpop.f32.mrf.mxu0
      %v580 = vadd.f32 0.0, %v579
      %v581 = vpop.f32.mrf.mxu0
      %v582 = vadd.f32 0.0, %v581
      %583 = vmatmul.bf16.gmra.mxu0 %v346
      %v584 = vpop.f32.mrf.mxu0
      %v585 = vadd.f32 0.0, %v584
      %v586 = vpop.f32.mrf.mxu0
      %v587 = vadd.f32 0.0, %v586
      %588 = vmatmul.bf16.gmra.mxu0 %v347
      %v589 = vpop.f32.mrf.mxu0
      %v590 = vadd.f32 0.0, %v589
      %v591 = vpop.f32.mrf.mxu0
      %v592 = vadd.f32 0.0, %v591
      %593 = vmatmul.bf16.gmra.mxu0 %v348
      %v594 = vpop.f32.mrf.mxu0
      %v595 = vadd.f32 0.0, %v594
      %v596 = vpop.f32.mrf.mxu0
      %v597 = vadd.f32 0.0, %v596
      %598 = vmatmul.bf16.gmra.mxu0 %v349
      %v599 = vpop.f32.mrf.mxu0
      %v600 = vadd.f32 0.0, %v599
      %v601 = vpop.f32.mrf.mxu0
      %v602 = vadd.f32 0.0, %v601
      %603 = vmatmul.bf16.gmra.mxu0 %v350
      %v604 = vpop.f32.mrf.mxu0
      %v605 = vadd.f32 0.0, %v604
      %v606 = vpop.f32.mrf.mxu0
      %v607 = vadd.f32 0.0, %v606
      %608 = vmatmul.bf16.gmra.mxu0 %v351
      %v609 = vpop.f32.mrf.mxu0
      %v610 = vadd.f32 0.0, %v609
      %v611 = vpop.f32.mrf.mxu0
      %v612 = vadd.f32 0.0, %v611
      %613 = vmatmul.bf16.gmra.mxu0 %v352
      %v614 = vpop.f32.mrf.mxu0
      %v615 = vadd.f32 0.0, %v614
      %v616 = vpop.f32.mrf.mxu0
      %v617 = vadd.f32 0.0, %v616
      %618 = vmatmul.bf16.gmra.mxu0 %v353
      %v619 = vpop.f32.mrf.mxu0
      %v620 = vadd.f32 0.0, %v619
      %v621 = vpop.f32.mrf.mxu0
      %v622 = vadd.f32 0.0, %v621
      %623 = vmatmul.bf16.gmra.mxu0 %v354
      %v624 = vpop.f32.mrf.mxu0
      %v625 = vadd.f32 0.0, %v624
      %v626 = vpop.f32.mrf.mxu0
      %v627 = vadd.f32 0.0, %v626
      %628 = vdwg.mxu0
      %v629 = vpack.c.bf16 %v461, %v461
      %v630 = vpack.c.bf16 %v463, %v463
      %v631 = vpack.c.bf16 %v466, %v466
      %v632 = vpack.c.bf16 %v468, %v468
      %v633 = vpack.c.bf16 %v471, %v471
      %v634 = vpack.c.bf16 %v473, %v473
      %v635 = vpack.c.bf16 %v476, %v476
      %v636 = vpack.c.bf16 %v478, %v478
      %v637 = vpack.c.bf16 %v481, %v481
      %v638 = vpack.c.bf16 %v483, %v483
      %v639 = vpack.c.bf16 %v486, %v486
      %v640 = vpack.c.bf16 %v488, %v488
      %v641 = vpack.c.bf16 %v491, %v491
      %v642 = vpack.c.bf16 %v493, %v493
      %v643 = vpack.c.bf16 %v496, %v496
      %v644 = vpack.c.bf16 %v498, %v498
      %v645 = vpack.c.bf16 %v501, %v501
      %v646 = vpack.c.bf16 %v503, %v503
      %v647 = vpack.c.bf16 %v506, %v506
      %v648 = vpack.c.bf16 %v508, %v508
      %v649 = vpack.c.bf16 %v511, %v511
      %v650 = vpack.c.bf16 %v513, %v513
      %v651 = vpack.c.bf16 %v516, %v516
      %v652 = vpack.c.bf16 %v518, %v518
      %v653 = vpack.c.bf16 %v521, %v521
      %v654 = vpack.c.bf16 %v523, %v523
      %v655 = vpack.c.bf16 %v526, %v526
      %v656 = vpack.c.bf16 %v528, %v528
      %v657 = vpack.c.bf16 %v531, %v531
      %v658 = vpack.c.bf16 %v533, %v533
      %v659 = vpack.c.bf16 %v536, %v536
      %v660 = vpack.c.bf16 %v538, %v538
      %661 = vst [vmem:[%s214] sm:$0xf] %v629
      %662 = vst [vmem:[%s214 + $0x4] sm:$0xf] %v630
      %663 = vst [vmem:[%s214 + $0x8] sm:$0xf] %v631
      %664 = vst [vmem:[%s214 + $0xc] sm:$0xf] %v632
      %665 = vst [vmem:[%s214 + $0x10] sm:$0xf] %v633
      %666 = vst [vmem:[%s214 + $0x14] sm:$0xf] %v634
      %667 = vst [vmem:[%s214 + $0x18] sm:$0xf] %v635
      %668 = vst [vmem:[%s214 + $0x1c] sm:$0xf] %v636
      %669 = vst [vmem:[%s214 + $0x20] sm:$0xf] %v637
      %670 = vst [vmem:[%s214 + $0x24] sm:$0xf] %v638
      %671 = vst [vmem:[%s214 + $0x28] sm:$0xf] %v639
      %672 = vst [vmem:[%s214 + $0x2c] sm:$0xf] %v640
      %673 = vst [vmem:[%s214 + $0x30] sm:$0xf] %v641
      %674 = vst [vmem:[%s214 + $0x34] sm:$0xf] %v642
      %675 = vst [vmem:[%s214 + $0x38] sm:$0xf] %v643
      %676 = vst [vmem:[%s214 + $0x3c] sm:$0xf] %v644
      %677 = vst [vmem:[%s214 + $0x40] sm:$0xf] %v645
      %678 = vst [vmem:[%s214 + $0x44] sm:$0xf] %v646
      %679 = vst [vmem:[%s214 + $0x48] sm:$0xf] %v647
      %680 = vst [vmem:[%s214 + $0x4c] sm:$0xf] %v648
      %681 = vst [vmem:[%s214 + $0x50] sm:$0xf] %v649
      %682 = vst [vmem:[%s214 + $0x54] sm:$0xf] %v650
      %683 = vst [vmem:[%s214 + $0x58] sm:$0xf] %v651
      %684 = vst [vmem:[%s214 + $0x5c] sm:$0xf] %v652
      %685 = vst [vmem:[%s214 + $0x60] sm:$0xf] %v653
      %686 = vst [vmem:[%s214 + $0x64] sm:$0xf] %v654
      %687 = vst [vmem:[%s214 + $0x68] sm:$0xf] %v655
      %688 = vst [vmem:[%s214 + $0x6c] sm:$0xf] %v656
      %689 = vst [vmem:[%s214 + $0x70] sm:$0xf] %v657
      %690 = vst [vmem:[%s214 + $0x74] sm:$0xf] %v658
      %691 = vst [vmem:[%s214 + $0x78] sm:$0xf] %v659
      %692 = vst [vmem:[%s214 + $0x7c] sm:$0xf] %v660
      %v693 = vpack.c.bf16 %v550, %v550
      %v694 = vpack.c.bf16 %v552, %v552
      %v695 = vpack.c.bf16 %v555, %v555
      %v696 = vpack.c.bf16 %v557, %v557
      %v697 = vpack.c.bf16 %v560, %v560
      %v698 = vpack.c.bf16 %v562, %v562
      %v699 = vpack.c.bf16 %v565, %v565
      %v700 = vpack.c.bf16 %v567, %v567
      %v701 = vpack.c.bf16 %v570, %v570
      %v702 = vpack.c.bf16 %v572, %v572
      %v703 = vpack.c.bf16 %v575, %v575
      %v704 = vpack.c.bf16 %v577, %v577
      %v705 = vpack.c.bf16 %v580, %v580
      %v706 = vpack.c.bf16 %v582, %v582
      %v707 = vpack.c.bf16 %v585, %v585
      %v708 = vpack.c.bf16 %v587, %v587
      %v709 = vpack.c.bf16 %v590, %v590
      %v710 = vpack.c.bf16 %v592, %v592
      %v711 = vpack.c.bf16 %v595, %v595
      %v712 = vpack.c.bf16 %v597, %v597
      %v713 = vpack.c.bf16 %v600, %v600
      %v714 = vpack.c.bf16 %v602, %v602
      %v715 = vpack.c.bf16 %v605, %v605
      %v716 = vpack.c.bf16 %v607, %v607
      %v717 = vpack.c.bf16 %v610, %v610
      %v718 = vpack.c.bf16 %v612, %v612
      %v719 = vpack.c.bf16 %v615, %v615
      %v720 = vpack.c.bf16 %v617, %v617
      %v721 = vpack.c.bf16 %v620, %v620
      %v722 = vpack.c.bf16 %v622, %v622
      %v723 = vpack.c.bf16 %v625, %v625
      %v724 = vpack.c.bf16 %v627, %v627
      %725 = vst [vmem:[%s220] sm:$0xf] %v693
      %726 = vst [vmem:[%s220 + $0x4] sm:$0xf] %v694
      %727 = vst [vmem:[%s220 + $0x8] sm:$0xf] %v695
      %728 = vst [vmem:[%s220 + $0xc] sm:$0xf] %v696
      %729 = vst [vmem:[%s220 + $0x10] sm:$0xf] %v697
      %730 = vst [vmem:[%s220 + $0x14] sm:$0xf] %v698
      %731 = vst [vmem:[%s220 + $0x18] sm:$0xf] %v699
      %732 = vst [vmem:[%s220 + $0x1c] sm:$0xf] %v700
      %733 = vst [vmem:[%s220 + $0x20] sm:$0xf] %v701
      %734 = vst [vmem:[%s220 + $0x24] sm:$0xf] %v702
      %735 = vst [vmem:[%s220 + $0x28] sm:$0xf] %v703
      %736 = vst [vmem:[%s220 + $0x2c] sm:$0xf] %v704
      %737 = vst [vmem:[%s220 + $0x30] sm:$0xf] %v705
      %738 = vst [vmem:[%s220 + $0x34] sm:$0xf] %v706
      %739 = vst [vmem:[%s220 + $0x38] sm:$0xf] %v707
      %740 = vst [vmem:[%s220 + $0x3c] sm:$0xf] %v708
      %741 = vst [vmem:[%s220 + $0x40] sm:$0xf] %v709
      %742 = vst [vmem:[%s220 + $0x44] sm:$0xf] %v710
      %743 = vst [vmem:[%s220 + $0x48] sm:$0xf] %v711
      %744 = vst [vmem:[%s220 + $0x4c] sm:$0xf] %v712
      %745 = vst [vmem:[%s220 + $0x50] sm:$0xf] %v713
      %746 = vst [vmem:[%s220 + $0x54] sm:$0xf] %v714
      %747 = vst [vmem:[%s220 + $0x58] sm:$0xf] %v715
      %748 = vst [vmem:[%s220 + $0x5c] sm:$0xf] %v716
      %749 = vst [vmem:[%s220 + $0x60] sm:$0xf] %v717
      %750 = vst [vmem:[%s220 + $0x64] sm:$0xf] %v718
      %751 = vst [vmem:[%s220 + $0x68] sm:$0xf] %v719
      %752 = vst [vmem:[%s220 + $0x6c] sm:$0xf] %v720
      %753 = vst [vmem:[%s220 + $0x70] sm:$0xf] %v721
      %754 = vst [vmem:[%s220 + $0x74] sm:$0xf] %v722
      %755 = vst [vmem:[%s220 + $0x78] sm:$0xf] %v723
      %756 = vst [vmem:[%s220 + $0x7c] sm:$0xf] %v724
      %v757 = vadd.f32 %v461, %v463
      %v758 = vadd.f32 %v757, %v466
      %v759 = vadd.f32 %v758, %v468
      %v760 = vadd.f32 %v759, %v471
      %v761 = vadd.f32 %v760, %v473
      %v762 = vadd.f32 %v761, %v476
      %v763 = vadd.f32 %v762, %v478
      %v764 = vadd.f32 %v763, %v481
      %v765 = vadd.f32 %v764, %v483
      %v766 = vadd.f32 %v765, %v486
      %v767 = vadd.f32 %v766, %v488
      %v768 = vadd.f32 %v767, %v491
      %v769 = vadd.f32 %v768, %v493
      %v770 = vadd.f32 %v769, %v496
      %v771 = vadd.f32 %v770, %v498
      %v772 = vadd.f32 %v771, %v501
      %v773 = vadd.f32 %v772, %v503
      %v774 = vadd.f32 %v773, %v506
      %v775 = vadd.f32 %v774, %v508
      %v776 = vadd.f32 %v775, %v511
      %v777 = vadd.f32 %v776, %v513
      %v778 = vadd.f32 %v777, %v516
      %v779 = vadd.f32 %v778, %v518
      %v780 = vadd.f32 %v779, %v521
      %v781 = vadd.f32 %v780, %v523
      %v782 = vadd.f32 %v781, %v526
      %v783 = vadd.f32 %v782, %v528
      %v784 = vadd.f32 %v783, %v531
      %v785 = vadd.f32 %v784, %v533
      %v786 = vadd.f32 %v785, %v536
      %v787 = vadd.f32 %v786, %v538
      %v788 = vrot.slane %v787, 4
      %v789 = vadd.f32 %v787, %v788
      %v790 = vrot.slane %v789, 2
      %v791 = vadd.f32 %v789, %v790
      %v792 = vrot.slane %v791, 1
      %v793 = vadd.f32 %v791, %v792
      %v794 = vadd.f32 %v550, %v552
      %v795 = vadd.f32 %v794, %v555
      %v796 = vadd.f32 %v795, %v557
      %v797 = vadd.f32 %v796, %v560
      %v798 = vadd.f32 %v797, %v562
      %v799 = vadd.f32 %v798, %v565
      %v800 = vadd.f32 %v799, %v567
      %v801 = vadd.f32 %v800, %v570
      %v802 = vadd.f32 %v801, %v572
      %v803 = vadd.f32 %v802, %v575
      %v804 = vadd.f32 %v803, %v577
      %v805 = vadd.f32 %v804, %v580
      %v806 = vadd.f32 %v805, %v582
      %v807 = vadd.f32 %v806, %v585
      %v808 = vadd.f32 %v807, %v587
      %v809 = vadd.f32 %v808, %v590
      %v810 = vadd.f32 %v809, %v592
      %v811 = vadd.f32 %v810, %v595
      %v812 = vadd.f32 %v811, %v597
      %v813 = vadd.f32 %v812, %v600
      %v814 = vadd.f32 %v813, %v602
      %v815 = vadd.f32 %v814, %v605
      %v816 = vadd.f32 %v815, %v607
      %v817 = vadd.f32 %v816, %v610
      %v818 = vadd.f32 %v817, %v612
      %v819 = vadd.f32 %v818, %v615
      %v820 = vadd.f32 %v819, %v617
      %v821 = vadd.f32 %v820, %v620
      %v822 = vadd.f32 %v821, %v622
      %v823 = vadd.f32 %v822, %v625
      %v824 = vadd.f32 %v823, %v627
      %v825 = vrot.slane %v824, 4
      %v826 = vadd.f32 %v824, %v825
      %v827 = vrot.slane %v826, 2
      %v828 = vadd.f32 %v826, %v827
      %v829 = vrot.slane %v828, 1
      %v830 = vadd.f32 %v828, %v829
      %v831 = vmul.f32 %v461, %v461
      %v832 = vmul.f32 %v550, %v550
      %v833 = vmul.f32 %v463, %v463
      %v834 = vmul.f32 %v552, %v552
      %v835 = vmul.f32 %v466, %v466
      %v836 = vmul.f32 %v555, %v555
      %v837 = vmul.f32 %v468, %v468
      %v838 = vmul.f32 %v557, %v557
      %v839 = vmul.f32 %v471, %v471
      %v840 = vmul.f32 %v560, %v560
      %v841 = vmul.f32 %v473, %v473
      %v842 = vmul.f32 %v562, %v562
      %v843 = vmul.f32 %v476, %v476
      %v844 = vmul.f32 %v565, %v565
      %v845 = vmul.f32 %v478, %v478
      %v846 = vmul.f32 %v567, %v567
      %v847 = vmul.f32 %v481, %v481
      %v848 = vmul.f32 %v570, %v570
      %v849 = vmul.f32 %v483, %v483
      %v850 = vmul.f32 %v572, %v572
      %v851 = vmul.f32 %v486, %v486
      %v852 = vmul.f32 %v575, %v575
      %v853 = vmul.f32 %v488, %v488
      %v854 = vmul.f32 %v577, %v577
      %v855 = vmul.f32 %v491, %v491
      %v856 = vmul.f32 %v580, %v580
      %v857 = vmul.f32 %v493, %v493
      %v858 = vmul.f32 %v582, %v582
      %v859 = vmul.f32 %v496, %v496
      %v860 = vmul.f32 %v585, %v585
      %v861 = vmul.f32 %v498, %v498
      %v862 = vmul.f32 %v587, %v587
      %v863 = vmul.f32 %v501, %v501
      %v864 = vmul.f32 %v590, %v590
      %v865 = vmul.f32 %v503, %v503
      %v866 = vmul.f32 %v592, %v592
      %v867 = vmul.f32 %v506, %v506
      %v868 = vmul.f32 %v595, %v595
      %v869 = vmul.f32 %v508, %v508
      %v870 = vmul.f32 %v597, %v597
      %v871 = vmul.f32 %v511, %v511
      %v872 = vmul.f32 %v600, %v600
      %v873 = vmul.f32 %v513, %v513
      %v874 = vmul.f32 %v602, %v602
      %v875 = vmul.f32 %v516, %v516
      %v876 = vmul.f32 %v605, %v605
      %v877 = vmul.f32 %v518, %v518
      %v878 = vmul.f32 %v607, %v607
      %v879 = vmul.f32 %v521, %v521
      %v880 = vmul.f32 %v610, %v610
      %v881 = vmul.f32 %v523, %v523
      %v882 = vmul.f32 %v612, %v612
      %v883 = vmul.f32 %v526, %v526
      %v884 = vmul.f32 %v615, %v615
      %v885 = vmul.f32 %v528, %v528
      %v886 = vmul.f32 %v617, %v617
      %v887 = vmul.f32 %v531, %v531
      %v888 = vmul.f32 %v620, %v620
      %v889 = vmul.f32 %v533, %v533
      %v890 = vmul.f32 %v622, %v622
      %v891 = vmul.f32 %v536, %v536
      %v892 = vmul.f32 %v625, %v625
      %v893 = vmul.f32 %v538, %v538
      %v894 = vmul.f32 %v627, %v627
      %v895 = vadd.f32 %v831, %v833
      %v896 = vadd.f32 %v895, %v835
      %v897 = vadd.f32 %v896, %v837
      %v898 = vadd.f32 %v897, %v839
      %v899 = vadd.f32 %v898, %v841
      %v900 = vadd.f32 %v899, %v843
      %v901 = vadd.f32 %v900, %v845
      %v902 = vadd.f32 %v901, %v847
      %v903 = vadd.f32 %v902, %v849
      %v904 = vadd.f32 %v903, %v851
      %v905 = vadd.f32 %v904, %v853
      %v906 = vadd.f32 %v905, %v855
      %v907 = vadd.f32 %v906, %v857
      %v908 = vadd.f32 %v907, %v859
      %v909 = vadd.f32 %v908, %v861
      %v910 = vadd.f32 %v909, %v863
      %v911 = vadd.f32 %v910, %v865
      %v912 = vadd.f32 %v911, %v867
      %v913 = vadd.f32 %v912, %v869
      %v914 = vadd.f32 %v913, %v871
      %v915 = vadd.f32 %v914, %v873
      %v916 = vadd.f32 %v915, %v875
      %v917 = vadd.f32 %v916, %v877
      %v918 = vadd.f32 %v917, %v879
      %v919 = vadd.f32 %v918, %v881
      %v920 = vadd.f32 %v919, %v883
      %v921 = vadd.f32 %v920, %v885
      %v922 = vadd.f32 %v921, %v887
      %v923 = vadd.f32 %v922, %v889
      %v924 = vadd.f32 %v923, %v891
      %v925 = vadd.f32 %v924, %v893
      %v926 = vrot.slane %v925, 4
      %v927 = vadd.f32 %v925, %v926
      %v928 = vrot.slane %v927, 2
      %v929 = vadd.f32 %v927, %v928
      %v930 = vrot.slane %v929, 1
      %v931 = vadd.f32 %v929, %v930
      %v932 = vadd.f32 %v832, %v834
      %v933 = vadd.f32 %v932, %v836
      %v934 = vadd.f32 %v933, %v838
      %v935 = vadd.f32 %v934, %v840
      %v936 = vadd.f32 %v935, %v842
      %v937 = vadd.f32 %v936, %v844
      %v938 = vadd.f32 %v937, %v846
      %v939 = vadd.f32 %v938, %v848
      %v940 = vadd.f32 %v939, %v850
      %v941 = vadd.f32 %v940, %v852
      %v942 = vadd.f32 %v941, %v854
      %v943 = vadd.f32 %v942, %v856
      %v944 = vadd.f32 %v943, %v858
      %v945 = vadd.f32 %v944, %v860
      %v946 = vadd.f32 %v945, %v862
      %v947 = vadd.f32 %v946, %v864
      %v948 = vadd.f32 %v947, %v866
      %v949 = vadd.f32 %v948, %v868
      %v950 = vadd.f32 %v949, %v870
      %v951 = vadd.f32 %v950, %v872
      %v952 = vadd.f32 %v951, %v874
      %v953 = vadd.f32 %v952, %v876
      %v954 = vadd.f32 %v953, %v878
      %v955 = vadd.f32 %v954, %v880
      %v956 = vadd.f32 %v955, %v882
      %v957 = vadd.f32 %v956, %v884
      %v958 = vadd.f32 %v957, %v886
      %v959 = vadd.f32 %v958, %v888
      %v960 = vadd.f32 %v959, %v890
      %v961 = vadd.f32 %v960, %v892
      %v962 = vadd.f32 %v961, %v894
      %v963 = vrot.slane %v962, 4
      %v964 = vadd.f32 %v962, %v963
      %v965 = vrot.slane %v964, 2
      %v966 = vadd.f32 %v964, %v965
      %v967 = vrot.slane %v966, 1
      %v968 = vadd.f32 %v966, %v967
      %vm969 = vcmask 1040384
      %v970 = vsel %vm969, %v793, %v931
      %v971 = vsel %vm969, %v830, %v968
      %v974 = vrot.slane %v971, 6
      %vm975 = vcmask 1041408
      %v976 = vsel %vm975, %v970, %v974
      %978 = vst [vmem:[%s226] sm:$0xf] %v976
      %s979 = smul.u32 32, %s16
      %p980 = scmp.lt.s32.totalorder %s979, 63
      %s981 = scalar_select %p980, %s979, 63
      %s982 = smul.addr %s981, 4
      %s983 = scalar_lea.vmem %s2, %s982
      %s984 = smul.u32 32, %s16
      %p985 = scmp.lt.s32.totalorder %s984, 63
      %s986 = scalar_select %p985, %s984, 63
      %s987 = smul.addr %s986, 4
      %s988 = scalar_lea.vmem %s3, %s987
      %p989 = scmp.lt.s32.totalorder %s16, 1
      %s990 = scalar_select %p989, %s16, 1
      %s991 = smul.addr %s990, 2
      %s992 = smul.addr %s991, 2
      %s993 = scalar_lea.vmem %s4, %s992
      // Predicated region
      $region29: #{mock_residual_block_forward.3} parent=27 // pred_check
        %p994 = pneg %p81
      $region30: #{mock_residual_block_forward.3} parent=27 // pred_check_branch
        %996 = sbr.rel (%p994) target = $region32
      $region31: #{mock_residual_block_forward.3} parent=27 // pred_region
        %s997 = smul.u32 32, %s16
      $region32: #{mock_residual_block_forward.3} parent=27 // pred_fallthru
        _
      // Predicated region
      $region33: #{mock_residual_block_forward.3} parent=27 // pred_check
        %p998 = pneg %p107
      $region34: #{mock_residual_block_forward.3} parent=27 // pred_check_branch
        %1000 = sbr.rel (%p998) target = $region36
      $region35: #{mock_residual_block_forward.3} parent=27 // pred_region
        %s1001 = smul.u32 32, %s16
      $region36: #{mock_residual_block_forward.3} parent=27 // pred_fallthru
        _
      // Predicated region
      $region37: #{mock_residual_block_forward.3} parent=27 // pred_check
        %p1002 = pneg %p133
      $region38: #{mock_residual_block_forward.3} parent=27 // pred_check_branch
        %1004 = sbr.rel (%p1002) target = $region40
      $region39: #{mock_residual_block_forward.3} parent=27 // pred_region
        _
      $region40: #{mock_residual_block_forward.3} parent=27 // pred_fallthru
        _
    $region28: #{mock_residual_block_forward.3} parent=5 // pred_fallthru
      _
    %p1005 = scmp.le.s32.totalorder 2, %s11
    // Predicated region
    $region41: #{mock_residual_block_forward.3} parent=5 // pred_check
      %p1006 = pneg %p1005
    $region42: #{mock_residual_block_forward.3} parent=5 // pred_check_branch
      %1008 = sbr.rel (%p1006) target = $region44
    $region43: #{mock_residual_block_forward.3} parent=5 // pred_region
      %s1009 = ssub.s32 %s11, 2
      // Predicated region
      $region45: #{mock_residual_block_forward.3} parent=43 // pred_check
        %p1010 = pneg %p87
      $region46: #{mock_residual_block_forward.3} parent=43 // pred_check_branch
        %1012 = sbr.rel (%p1010) target = $region48
      $region47: #{mock_residual_block_forward.3} parent=43 // pred_region
        %s1013 = smul.u32 32, %s17
        %p1014 = scmp.lt.s32.totalorder %s1013, 63
        %s1015 = scalar_select %p1014, %s1013, 63
        %s1016 = smul.addr %s1015, 4
        %s1017 = scalar_lea.vmem %s2, %s1016
      $region48: #{mock_residual_block_forward.3} parent=43 // pred_fallthru
        _
      // Predicated region
      $region49: #{mock_residual_block_forward.3} parent=43 // pred_check
        %p1018 = pneg %p113
      $region50: #{mock_residual_block_forward.3} parent=43 // pred_check_branch
        %1020 = sbr.rel (%p1018) target = $region52
      $region51: #{mock_residual_block_forward.3} parent=43 // pred_region
        %s1021 = smul.u32 32, %s17
        %p1022 = scmp.lt.s32.totalorder %s1021, 63
        %s1023 = scalar_select %p1022, %s1021, 63
        %s1024 = smul.addr %s1023, 4
        %s1025 = scalar_lea.vmem %s3, %s1024
      $region52: #{mock_residual_block_forward.3} parent=43 // pred_fallthru
        _
      // Predicated region
      $region53: #{mock_residual_block_forward.3} parent=43 // pred_check
        %p1026 = pneg %p139
      $region54: #{mock_residual_block_forward.3} parent=43 // pred_check_branch
        %1028 = sbr.rel (%p1026) target = $region56
      $region55: #{mock_residual_block_forward.3} parent=43 // pred_region
        %p1029 = scmp.lt.s32.totalorder %s17, 1
        %s1030 = scalar_select %p1029, %s17, 1
        %s1031 = smul.addr %s1030, 2
        %s1032 = smul.addr %s1031, 2
        %s1033 = scalar_lea.vmem %s4, %s1032
      $region56: #{mock_residual_block_forward.3} parent=43 // pred_fallthru
        _
    $region44: #{mock_residual_block_forward.3} parent=5 // pred_fallthru
      _
  $region6: #{mock_residual_block_forward.3} parent=0 // loop_footer
    %s15 = sadd.s32 1, %s11
  $region7: #{mock_residual_block_forward.3} parent=0 // loop_footer_branch
    %10 = sbr.rel target = $region3
  $region8: #{mock_residual_block_forward.3} parent=0 // loop_exit
    _

// kernel: mock_residual_block_forward.5
$region0: #{mock_residual_block_forward.5}
  #allocation0 [shape = 'u32[]', space=smem, size = 0x4, offset = 0x4, fixed_abs, tag = 'smem constant byte address 0x4 - core index']
  #allocation1 [shape = 'u32[72,128]{1,0:T(1,128)}', space=vmem, size = 0x9000, scoped, tag = 'internal scratch']
  %s0 = inlined_call_operand.vmem [shape: bf16[512,128], index: 0, kind: input, shape index: {}]
  %s1 = inlined_call_operand.vmem [shape: bf16[512,128], index: 1, kind: input, shape index: {}]
  %s2 = inlined_call_operand.vmem [shape: f32[4,128], index: 2, kind: input, shape index: {}]
  %s3 = inlined_call_operand.vmem [shape: f32[512,128], index: 3, kind: output, shape index: {}]
  %s4 = sld [smem:[#allocation0]]
  $region45: #{mock_residual_block_forward.5} parent=0
    _
  %s6 = ssub.s32 1, %s4
  %s7 = scalar_select 0, %s6, %s4
  loop: start=0, step=1, limit=4
  $region2: #{mock_residual_block_forward.5} parent=0 // loop_pre_header
    _
  $region3: #{mock_residual_block_forward.5} parent=0 // loop_header
    %s9 = sphi 0, %s13
    %p10 = scmp.ge.s32.totalorder %s9, 4
    %s19 = sphi 0, %s21
    %s22 = sphi 0, %s19
    %s23 = sphi 0, %s22
    %s39 = sphi 0, %s23
    %s45 = sphi 0, %s47
    %s48 = sphi 0, %s45
    %s49 = sphi 0, %s48
    %s65 = sphi 0, %s49
    %s69 = sphi 0, %s69
    %s71 = sphi 0, %s69
    %s72 = sphi 0, %s71
    %s86 = sphi 0, %s72
    %s92 = sphi 0, %s94
    %s95 = sphi 0, %s92
    %s96 = sphi 0, %s95
    %s112 = sphi 0, %s96
  $region4: #{mock_residual_block_forward.5} parent=0 // loop_header_branch
    %12 = sbr.rel (%p10) target = $region8
  $region5: #{mock_residual_block_forward.5} parent=0 // loop_body
    %s14 = ssub.s32 %s9, 1
    %s15 = ssub.s32 %s9, 2
    %s16 = sadd.s32 %s9, 1
    %s17 = ssub.s32 %s9, %s16
    %p18 = scmp.eq.s32.totalorder %s17, 0
    %s20 = sadd.s32 %s19, 1
    %s21 = scalar_select %p18, %s19, %s20
    %p24 = pneg %p18
    %p25 = scmp.eq.s32.totalorder %s9, 1
    %p26 = por %p24, %p25
    %p27 = scmp.ne.s32.totalorder %s19, %s22
    %p28 = scmp.eq.s32.totalorder %s9, 0
    %p29 = por %p27, %p28
    %p30 = scmp.ne.s32.totalorder %s19, %s22
    %p31 = scmp.eq.s32.totalorder %s14, 1
    %p32 = por %p30, %p31
    %p33 = scmp.ne.s32.totalorder %s22, %s23
    %p34 = scmp.eq.s32.totalorder %s14, 0
    %p35 = por %p33, %p34
    %p36 = scmp.ne.s32.totalorder %s22, %s23
    %p37 = scmp.eq.s32.totalorder %s15, 1
    %p38 = por %p36, %p37
    %p40 = scmp.ne.s32.totalorder %s23, %s39
    %p41 = scmp.eq.s32.totalorder %s15, 0
    %p42 = por %p40, %p41
    %s43 = ssub.s32 %s9, %s16
    %p44 = scmp.eq.s32.totalorder %s43, 0
    %s46 = sadd.s32 %s45, 1
    %s47 = scalar_select %p44, %s45, %s46
    %p50 = pneg %p44
    %p51 = scmp.eq.s32.totalorder %s9, 1
    %p52 = por %p50, %p51
    %p53 = scmp.ne.s32.totalorder %s45, %s48
    %p54 = scmp.eq.s32.totalorder %s9, 0
    %p55 = por %p53, %p54
    %p56 = scmp.ne.s32.totalorder %s45, %s48
    %p57 = scmp.eq.s32.totalorder %s14, 1
    %p58 = por %p56, %p57
    %p59 = scmp.ne.s32.totalorder %s48, %s49
    %p60 = scmp.eq.s32.totalorder %s14, 0
    %p61 = por %p59, %p60
    %p62 = scmp.ne.s32.totalorder %s48, %s49
    %p63 = scmp.eq.s32.totalorder %s15, 1
    %p64 = por %p62, %p63
    %p66 = scmp.ne.s32.totalorder %s49, %s65
    %p67 = scmp.eq.s32.totalorder %s15, 0
    %p68 = por %p66, %p67
    %s70 = sadd.s32 %s69, 1
    %p73 = scmp.eq.s32.totalorder %s9, 1
    %p74 = scmp.ne.s32.totalorder %s69, %s71
    %p75 = scmp.eq.s32.totalorder %s9, 0
    %p76 = por %p74, %p75
    %p77 = scmp.ne.s32.totalorder %s69, %s71
    %p78 = scmp.eq.s32.totalorder %s14, 1
    %p79 = por %p77, %p78
    %p80 = scmp.ne.s32.totalorder %s71, %s72
    %p81 = scmp.eq.s32.totalorder %s14, 0
    %p82 = por %p80, %p81
    %p83 = scmp.ne.s32.totalorder %s71, %s72
    %p84 = scmp.eq.s32.totalorder %s15, 1
    %p85 = por %p83, %p84
    %p87 = scmp.ne.s32.totalorder %s72, %s86
    %p88 = scmp.eq.s32.totalorder %s15, 0
    %p89 = por %p87, %p88
    %s90 = ssub.s32 %s9, %s16
    %p91 = scmp.eq.s32.totalorder %s90, 0
    %s93 = sadd.s32 %s92, 1
    %s94 = scalar_select %p91, %s92, %s93
    %p97 = pneg %p91
    %p98 = scmp.eq.s32.totalorder %s9, 1
    %p99 = por %p97, %p98
    %p100 = scmp.ne.s32.totalorder %s92, %s95
    %p101 = scmp.eq.s32.totalorder %s9, 0
    %p102 = por %p100, %p101
    %p103 = scmp.ne.s32.totalorder %s92, %s95
    %p104 = scmp.eq.s32.totalorder %s14, 1
    %p105 = por %p103, %p104
    %p106 = scmp.ne.s32.totalorder %s95, %s96
    %p107 = scmp.eq.s32.totalorder %s14, 0
    %p108 = por %p106, %p107
    %p109 = scmp.ne.s32.totalorder %s95, %s96
    %p110 = scmp.eq.s32.totalorder %s15, 1
    %p111 = por %p109, %p110
    %p113 = scmp.ne.s32.totalorder %s96, %s112
    %p114 = scmp.eq.s32.totalorder %s15, 0
    %p115 = por %p113, %p114
    %p116 = scmp.le.s32.totalorder 1, %s9
    %p117 = scmp.lt.s32.totalorder %s9, 3
    %p118 = pnand %p116, %p117
    %p119 = pneg %p118
    // Predicated region
    $region9: #{mock_residual_block_forward.5} parent=5 // pred_check
      _
    $region10: #{mock_residual_block_forward.5} parent=5 // pred_check_branch
      %121 = sbr.rel (%p118) target = $region12
    $region11: #{mock_residual_block_forward.5} parent=5 // pred_region
      %s122 = ssub.s32 %s9, 1
      // Predicated region
      $region13: #{mock_residual_block_forward.5} parent=11 // pred_check
        %p123 = pneg %p82
      $region14: #{mock_residual_block_forward.5} parent=11 // pred_check_branch
        %125 = sbr.rel (%p123) target = $region16
      $region15: #{mock_residual_block_forward.5} parent=11 // pred_region
        _
      $region16: #{mock_residual_block_forward.5} parent=11 // pred_fallthru
        _
    $region12: #{mock_residual_block_forward.5} parent=5 // pred_fallthru
      _
    %p126 = scmp.lt.s32.totalorder %s9, 2
    // Predicated region
    $region17: #{mock_residual_block_forward.5} parent=5 // pred_check
      %p127 = pneg %p126
    $region18: #{mock_residual_block_forward.5} parent=5 // pred_check_branch
      %129 = sbr.rel (%p127) target = $region20
    $region19: #{mock_residual_block_forward.5} parent=5 // pred_region
      // Predicated region
      $region21: #{mock_residual_block_forward.5} parent=19 // pred_check
        %p130 = pneg %p29
      $region22: #{mock_residual_block_forward.5} parent=19 // pred_check_branch
        %132 = sbr.rel (%p130) target = $region24
      $region23: #{mock_residual_block_forward.5} parent=19 // pred_region
        %s133 = smul.u32 32, %s9
        %p134 = scmp.lt.s32.totalorder %s133, 63
        %s135 = scalar_select %p134, %s133, 63
        %s136 = smul.addr %s135, 4
        %s137 = scalar_lea.vmem %s0, %s136
        %s138 = smul.u32 32, %s9
      $region24: #{mock_residual_block_forward.5} parent=19 // pred_fallthru
        _
      // Predicated region
      $region25: #{mock_residual_block_forward.5} parent=19 // pred_check
        %p139 = pneg %p55
      $region26: #{mock_residual_block_forward.5} parent=19 // pred_check_branch
        %141 = sbr.rel (%p139) target = $region28
      $region27: #{mock_residual_block_forward.5} parent=19 // pred_region
        %s142 = smul.u32 32, %s9
        %p143 = scmp.lt.s32.totalorder %s142, 63
        %s144 = scalar_select %p143, %s142, 63
        %s145 = smul.addr %s144, 4
        %s146 = scalar_lea.vmem %s1, %s145
        %s147 = smul.u32 32, %s9
      $region28: #{mock_residual_block_forward.5} parent=19 // pred_fallthru
        _
    $region20: #{mock_residual_block_forward.5} parent=5 // pred_fallthru
      _
    %p148 = scmp.le.s32.totalorder 1, %s9
    %p149 = scmp.lt.s32.totalorder %s9, 3
    %p150 = pnand %p148, %p149
    %p151 = pneg %p150
    // Predicated region
    $region29: #{mock_residual_block_forward.5} parent=5 // pred_check
      _
    $region30: #{mock_residual_block_forward.5} parent=5 // pred_check_branch
      %153 = sbr.rel (%p150) target = $region32
    $region31: #{mock_residual_block_forward.5} parent=5 // pred_region
      %s154 = ssub.s32 %s9, 1
      %s155 = smul.u32 32, %s14
      %p156 = scmp.lt.s32.totalorder %s155, 63
      %s157 = scalar_select %p156, %s155, 63
      %s158 = smul.addr %s157, 4
      %s159 = scalar_lea.vmem %s0, %s158
      %p160 = pneg %p35
      %p161 = pneg %p32
      %s162 = smul.u32 32, %s14
      %p163 = scmp.lt.s32.totalorder %s162, 63
      %s164 = scalar_select %p163, %s162, 63
      %s165 = smul.addr %s164, 4
      %s166 = scalar_lea.vmem %s1, %s165
      %p167 = pneg %p61
      %p168 = pneg %p58
      %p169 = pneg %p82
      %p170 = pneg %p79
      %p171 = pneg %p108
      %p172 = pneg %p105
      %s173 = smul.u32 32, %s14
      %p174 = scmp.lt.s32.totalorder %s173, 63
      %s175 = scalar_select %p174, %s173, 63
      %s176 = smul.addr %s175, 8
      %s177 = scalar_lea.vmem %s3, %s176
      %s178 = smul.u32 32, %s14
      %p179 = scmp.lt.s32.totalorder %s178, 63
      %s180 = scalar_select %p179, %s178, 63
      %s181 = smul.addr %s180, 4
      %s182 = scalar_lea.vmem %s0, %s181
      %s183 = smul.u32 32, %s14
      %s184 = smul.u32 32, %s14
      %p185 = scmp.lt.s32.totalorder %s184, 63
      %s186 = scalar_select %p185, %s184, 63
      %s187 = smul.addr %s186, 4
      %s188 = scalar_lea.vmem %s1, %s187
      %s189 = smul.u32 32, %s14
      %s190 = smul.u32 32, %s14
      %p191 = scmp.lt.s32.totalorder %s190, 63
      %s192 = scalar_select %p191, %s190, 63
      %s193 = smul.addr %s192, 8
      %s194 = scalar_lea.vmem %s3, %s193
      %s195 = smul.u32 32, %s14
      %v196 = vld [vmem:[%s182] sm:$0xf]
      %v197 = vld [vmem:[%s182 + $0x4] sm:$0xf]
      %v198 = vld [vmem:[%s182 + $0x8] sm:$0xf]
      %v199 = vld [vmem:[%s182 + $0xc] sm:$0xf]
      %v200 = vld [vmem:[%s182 + $0x10] sm:$0xf]
      %v201 = vld [vmem:[%s182 + $0x14] sm:$0xf]
      %v202 = vld [vmem:[%s182 + $0x18] sm:$0xf]
      %v203 = vld [vmem:[%s182 + $0x1c] sm:$0xf]
      %v204 = vld [vmem:[%s182 + $0x20] sm:$0xf]
      %v205 = vld [vmem:[%s182 + $0x24] sm:$0xf]
      %v206 = vld [vmem:[%s182 + $0x28] sm:$0xf]
      %v207 = vld [vmem:[%s182 + $0x2c] sm:$0xf]
      %v208 = vld [vmem:[%s182 + $0x30] sm:$0xf]
      %v209 = vld [vmem:[%s182 + $0x34] sm:$0xf]
      %v210 = vld [vmem:[%s182 + $0x38] sm:$0xf]
      %v211 = vld [vmem:[%s182 + $0x3c] sm:$0xf]
      %v212 = vld [vmem:[%s182 + $0x40] sm:$0xf]
      %v213 = vld [vmem:[%s182 + $0x44] sm:$0xf]
      %v214 = vld [vmem:[%s182 + $0x48] sm:$0xf]
      %v215 = vld [vmem:[%s182 + $0x4c] sm:$0xf]
      %v216 = vld [vmem:[%s182 + $0x50] sm:$0xf]
      %v217 = vld [vmem:[%s182 + $0x54] sm:$0xf]
      %v218 = vld [vmem:[%s182 + $0x58] sm:$0xf]
      %v219 = vld [vmem:[%s182 + $0x5c] sm:$0xf]
      %v220 = vld [vmem:[%s182 + $0x60] sm:$0xf]
      %v221 = vld [vmem:[%s182 + $0x64] sm:$0xf]
      %v222 = vld [vmem:[%s182 + $0x68] sm:$0xf]
      %v223 = vld [vmem:[%s182 + $0x6c] sm:$0xf]
      %v224 = vld [vmem:[%s182 + $0x70] sm:$0xf]
      %v225 = vld [vmem:[%s182 + $0x74] sm:$0xf]
      %v226 = vld [vmem:[%s182 + $0x78] sm:$0xf]
      %v227 = vld [vmem:[%s182 + $0x7c] sm:$0xf]
      %v228 = vunpack.c.l.bf16 %v196
      %v229 = vunpack.c.l.bf16 %v197
      %v230 = vunpack.c.l.bf16 %v198
      %v231 = vunpack.c.l.bf16 %v199
      %v232 = vunpack.c.l.bf16 %v200
      %v233 = vunpack.c.l.bf16 %v201
      %v234 = vunpack.c.l.bf16 %v202
      %v235 = vunpack.c.l.bf16 %v203
      %v236 = vunpack.c.l.bf16 %v204
      %v237 = vunpack.c.l.bf16 %v205
      %v238 = vunpack.c.l.bf16 %v206
      %v239 = vunpack.c.l.bf16 %v207
      %v240 = vunpack.c.l.bf16 %v208
      %v241 = vunpack.c.l.bf16 %v209
      %v242 = vunpack.c.l.bf16 %v210
      %v243 = vunpack.c.l.bf16 %v211
      %v244 = vunpack.c.l.bf16 %v212
      %v245 = vunpack.c.l.bf16 %v213
      %v246 = vunpack.c.l.bf16 %v214
      %v247 = vunpack.c.l.bf16 %v215
      %v248 = vunpack.c.l.bf16 %v216
      %v249 = vunpack.c.l.bf16 %v217
      %v250 = vunpack.c.l.bf16 %v218
      %v251 = vunpack.c.l.bf16 %v219
      %v252 = vunpack.c.l.bf16 %v220
      %v253 = vunpack.c.l.bf16 %v221
      %v254 = vunpack.c.l.bf16 %v222
      %v255 = vunpack.c.l.bf16 %v223
      %v256 = vunpack.c.l.bf16 %v224
      %v257 = vunpack.c.l.bf16 %v225
      %v258 = vunpack.c.l.bf16 %v226
      %v259 = vunpack.c.l.bf16 %v227
      %v260 = vld [vmem:[%s2] sm:$0x1]
      %v261 = vperm.slane %v260, 0
      %v262 = vmul.f32 %v228, %v261
      %v263 = vmul.f32 %v229, %v261
      %v264 = vmul.f32 %v230, %v261
      %v265 = vmul.f32 %v231, %v261
      %v266 = vmul.f32 %v232, %v261
      %v267 = vmul.f32 %v233, %v261
      %v268 = vmul.f32 %v234, %v261
      %v269 = vmul.f32 %v235, %v261
      %v270 = vmul.f32 %v236, %v261
      %v271 = vmul.f32 %v237, %v261
      %v272 = vmul.f32 %v238, %v261
      %v273 = vmul.f32 %v239, %v261
      %v274 = vmul.f32 %v240, %v261
      %v275 = vmul.f32 %v241, %v261
      %v276 = vmul.f32 %v242, %v261
      %v277 = vmul.f32 %v243, %v261
      %v278 = vmul.f32 %v244, %v261
      %v279 = vmul.f32 %v245, %v261
      %v280 = vmul.f32 %v246, %v261
      %v281 = vmul.f32 %v247, %v261
      %v282 = vmul.f32 %v248, %v261
      %v283 = vmul.f32 %v249, %v261
      %v284 = vmul.f32 %v250, %v261
      %v285 = vmul.f32 %v251, %v261
      %v286 = vmul.f32 %v252, %v261
      %v287 = vmul.f32 %v253, %v261
      %v288 = vmul.f32 %v254, %v261
      %v289 = vmul.f32 %v255, %v261
      %v290 = vmul.f32 %v256, %v261
      %v291 = vmul.f32 %v257, %v261
      %v292 = vmul.f32 %v258, %v261
      %v293 = vmul.f32 %v259, %v261
      %v294 = vld [vmem:[%s2 + $0x1] sm:$0x1]
      %v295 = vperm.slane %v294, 0
      %v296 = vadd.f32 %v262, %v295
      %v297 = vadd.f32 %v263, %v295
      %v298 = vadd.f32 %v264, %v295
      %v299 = vadd.f32 %v265, %v295
      %v300 = vadd.f32 %v266, %v295
      %v301 = vadd.f32 %v267, %v295
      %v302 = vadd.f32 %v268, %v295
      %v303 = vadd.f32 %v269, %v295
      %v304 = vadd.f32 %v270, %v295
      %v305 = vadd.f32 %v271, %v295
      %v306 = vadd.f32 %v272, %v295
      %v307 = vadd.f32 %v273, %v295
      %v308 = vadd.f32 %v274, %v295
      %v309 = vadd.f32 %v275, %v295
      %v310 = vadd.f32 %v276, %v295
      %v311 = vadd.f32 %v277, %v295
      %v312 = vadd.f32 %v278, %v295
      %v313 = vadd.f32 %v279, %v295
      %v314 = vadd.f32 %v280, %v295
      %v315 = vadd.f32 %v281, %v295
      %v316 = vadd.f32 %v282, %v295
      %v317 = vadd.f32 %v283, %v295
      %v318 = vadd.f32 %v284, %v295
      %v319 = vadd.f32 %v285, %v295
      %v320 = vadd.f32 %v286, %v295
      %v321 = vadd.f32 %v287, %v295
      %v322 = vadd.f32 %v288, %v295
      %v323 = vadd.f32 %v289, %v295
      %v324 = vadd.f32 %v290, %v295
      %v325 = vadd.f32 %v291, %v295
      %v326 = vadd.f32 %v292, %v295
      %v327 = vadd.f32 %v293, %v295
      %v328 = vld [vmem:[%s188] sm:$0xf]
      %v329 = vld [vmem:[%s188 + $0x4] sm:$0xf]
      %v330 = vld [vmem:[%s188 + $0x8] sm:$0xf]
      %v331 = vld [vmem:[%s188 + $0xc] sm:$0xf]
      %v332 = vld [vmem:[%s188 + $0x10] sm:$0xf]
      %v333 = vld [vmem:[%s188 + $0x14] sm:$0xf]
      %v334 = vld [vmem:[%s188 + $0x18] sm:$0xf]
      %v335 = vld [vmem:[%s188 + $0x1c] sm:$0xf]
      %v336 = vld [vmem:[%s188 + $0x20] sm:$0xf]
      %v337 = vld [vmem:[%s188 + $0x24] sm:$0xf]
      %v338 = vld [vmem:[%s188 + $0x28] sm:$0xf]
      %v339 = vld [vmem:[%s188 + $0x2c] sm:$0xf]
      %v340 = vld [vmem:[%s188 + $0x30] sm:$0xf]
      %v341 = vld [vmem:[%s188 + $0x34] sm:$0xf]
      %v342 = vld [vmem:[%s188 + $0x38] sm:$0xf]
      %v343 = vld [vmem:[%s188 + $0x3c] sm:$0xf]
      %v344 = vld [vmem:[%s188 + $0x40] sm:$0xf]
      %v345 = vld [vmem:[%s188 + $0x44] sm:$0xf]
      %v346 = vld [vmem:[%s188 + $0x48] sm:$0xf]
      %v347 = vld [vmem:[%s188 + $0x4c] sm:$0xf]
      %v348 = vld [vmem:[%s188 + $0x50] sm:$0xf]
      %v349 = vld [vmem:[%s188 + $0x54] sm:$0xf]
      %v350 = vld [vmem:[%s188 + $0x58] sm:$0xf]
      %v351 = vld [vmem:[%s188 + $0x5c] sm:$0xf]
      %v352 = vld [vmem:[%s188 + $0x60] sm:$0xf]
      %v353 = vld [vmem:[%s188 + $0x64] sm:$0xf]
      %v354 = vld [vmem:[%s188 + $0x68] sm:$0xf]
      %v355 = vld [vmem:[%s188 + $0x6c] sm:$0xf]
      %v356 = vld [vmem:[%s188 + $0x70] sm:$0xf]
      %v357 = vld [vmem:[%s188 + $0x74] sm:$0xf]
      %v358 = vld [vmem:[%s188 + $0x78] sm:$0xf]
      %v359 = vld [vmem:[%s188 + $0x7c] sm:$0xf]
      %v360 = vunpack.c.l.bf16 %v328
      %v361 = vunpack.c.l.bf16 %v329
      %v362 = vunpack.c.l.bf16 %v330
      %v363 = vunpack.c.l.bf16 %v331
      %v364 = vunpack.c.l.bf16 %v332
      %v365 = vunpack.c.l.bf16 %v333
      %v366 = vunpack.c.l.bf16 %v334
      %v367 = vunpack.c.l.bf16 %v335
      %v368 = vunpack.c.l.bf16 %v336
      %v369 = vunpack.c.l.bf16 %v337
      %v370 = vunpack.c.l.bf16 %v338
      %v371 = vunpack.c.l.bf16 %v339
      %v372 = vunpack.c.l.bf16 %v340
      %v373 = vunpack.c.l.bf16 %v341
      %v374 = vunpack.c.l.bf16 %v342
      %v375 = vunpack.c.l.bf16 %v343
      %v376 = vunpack.c.l.bf16 %v344
      %v377 = vunpack.c.l.bf16 %v345
      %v378 = vunpack.c.l.bf16 %v346
      %v379 = vunpack.c.l.bf16 %v347
      %v380 = vunpack.c.l.bf16 %v348
      %v381 = vunpack.c.l.bf16 %v349
      %v382 = vunpack.c.l.bf16 %v350
      %v383 = vunpack.c.l.bf16 %v351
      %v384 = vunpack.c.l.bf16 %v352
      %v385 = vunpack.c.l.bf16 %v353
      %v386 = vunpack.c.l.bf16 %v354
      %v387 = vunpack.c.l.bf16 %v355
      %v388 = vunpack.c.l.bf16 %v356
      %v389 = vunpack.c.l.bf16 %v357
      %v390 = vunpack.c.l.bf16 %v358
      %v391 = vunpack.c.l.bf16 %v359
      %v392 = vld [vmem:[%s2 + $0x2] sm:$0x1]
      %v393 = vperm.slane %v392, 0
      %v394 = vmul.f32 %v360, %v393
      %v395 = vmul.f32 %v361, %v393
      %v396 = vmul.f32 %v362, %v393
      %v397 = vmul.f32 %v363, %v393
      %v398 = vmul.f32 %v364, %v393
      %v399 = vmul.f32 %v365, %v393
      %v400 = vmul.f32 %v366, %v393
      %v401 = vmul.f32 %v367, %v393
      %v402 = vmul.f32 %v368, %v393
      %v403 = vmul.f32 %v369, %v393
      %v404 = vmul.f32 %v370, %v393
      %v405 = vmul.f32 %v371, %v393
      %v406 = vmul.f32 %v372, %v393
      %v407 = vmul.f32 %v373, %v393
      %v408 = vmul.f32 %v374, %v393
      %v409 = vmul.f32 %v375, %v393
      %v410 = vmul.f32 %v376, %v393
      %v411 = vmul.f32 %v377, %v393
      %v412 = vmul.f32 %v378, %v393
      %v413 = vmul.f32 %v379, %v393
      %v414 = vmul.f32 %v380, %v393
      %v415 = vmul.f32 %v381, %v393
      %v416 = vmul.f32 %v382, %v393
      %v417 = vmul.f32 %v383, %v393
      %v418 = vmul.f32 %v384, %v393
      %v419 = vmul.f32 %v385, %v393
      %v420 = vmul.f32 %v386, %v393
      %v421 = vmul.f32 %v387, %v393
      %v422 = vmul.f32 %v388, %v393
      %v423 = vmul.f32 %v389, %v393
      %v424 = vmul.f32 %v390, %v393
      %v425 = vmul.f32 %v391, %v393
      %v426 = vld [vmem:[%s2 + $0x3] sm:$0x1]
      %v427 = vperm.slane %v426, 0
      %v428 = vadd.f32 %v394, %v427
      %v429 = vadd.f32 %v395, %v427
      %v430 = vadd.f32 %v396, %v427
      %v431 = vadd.f32 %v397, %v427
      %v432 = vadd.f32 %v398, %v427
      %v433 = vadd.f32 %v399, %v427
      %v434 = vadd.f32 %v400, %v427
      %v435 = vadd.f32 %v401, %v427
      %v436 = vadd.f32 %v402, %v427
      %v437 = vadd.f32 %v403, %v427
      %v438 = vadd.f32 %v404, %v427
      %v439 = vadd.f32 %v405, %v427
      %v440 = vadd.f32 %v406, %v427
      %v441 = vadd.f32 %v407, %v427
      %v442 = vadd.f32 %v408, %v427
      %v443 = vadd.f32 %v409, %v427
      %v444 = vadd.f32 %v410, %v427
      %v445 = vadd.f32 %v411, %v427
      %v446 = vadd.f32 %v412, %v427
      %v447 = vadd.f32 %v413, %v427
      %v448 = vadd.f32 %v414, %v427
      %v449 = vadd.f32 %v415, %v427
      %v450 = vadd.f32 %v416, %v427
      %v451 = vadd.f32 %v417, %v427
      %v452 = vadd.f32 %v418, %v427
      %v453 = vadd.f32 %v419, %v427
      %v454 = vadd.f32 %v420, %v427
      %v455 = vadd.f32 %v421, %v427
      %v456 = vadd.f32 %v422, %v427
      %v457 = vadd.f32 %v423, %v427
      %v458 = vadd.f32 %v424, %v427
      %v459 = vadd.f32 %v425, %v427
      %v460 = vadd.f32 %v296, %v428
      %v461 = vadd.f32 %v297, %v429
      %v462 = vadd.f32 %v298, %v430
      %v463 = vadd.f32 %v299, %v431
      %v464 = vadd.f32 %v300, %v432
      %v465 = vadd.f32 %v301, %v433
      %v466 = vadd.f32 %v302, %v434
      %v467 = vadd.f32 %v303, %v435
      %v468 = vadd.f32 %v304, %v436
      %v469 = vadd.f32 %v305, %v437
      %v470 = vadd.f32 %v306, %v438
      %v471 = vadd.f32 %v307, %v439
      %v472 = vadd.f32 %v308, %v440
      %v473 = vadd.f32 %v309, %v441
      %v474 = vadd.f32 %v310, %v442
      %v475 = vadd.f32 %v311, %v443
      %v476 = vadd.f32 %v312, %v444
      %v477 = vadd.f32 %v313, %v445
      %v478 = vadd.f32 %v314, %v446
      %v479 = vadd.f32 %v315, %v447
      %v480 = vadd.f32 %v316, %v448
      %v481 = vadd.f32 %v317, %v449
      %v482 = vadd.f32 %v318, %v450
      %v483 = vadd.f32 %v319, %v451
      %v484 = vadd.f32 %v320, %v452
      %v485 = vadd.f32 %v321, %v453
      %v486 = vadd.f32 %v322, %v454
      %v487 = vadd.f32 %v323, %v455
      %v488 = vadd.f32 %v324, %v456
      %v489 = vadd.f32 %v325, %v457
      %v490 = vadd.f32 %v326, %v458
      %v491 = vadd.f32 %v327, %v459
      %v492 = vmax.f32 %v460, 0.0
      %v493 = vmax.f32 %v461, 0.0
      %v494 = vmax.f32 %v462, 0.0
      %v495 = vmax.f32 %v463, 0.0
      %v496 = vmax.f32 %v464, 0.0
      %v497 = vmax.f32 %v465, 0.0
      %v498 = vmax.f32 %v466, 0.0
      %v499 = vmax.f32 %v467, 0.0
      %v500 = vmax.f32 %v468, 0.0
      %v501 = vmax.f32 %v469, 0.0
      %v502 = vmax.f32 %v470, 0.0
      %v503 = vmax.f32 %v471, 0.0
      %v504 = vmax.f32 %v472, 0.0
      %v505 = vmax.f32 %v473, 0.0
      %v506 = vmax.f32 %v474, 0.0
      %v507 = vmax.f32 %v475, 0.0
      %v508 = vmax.f32 %v476, 0.0
      %v509 = vmax.f32 %v477, 0.0
      %v510 = vmax.f32 %v478, 0.0
      %v511 = vmax.f32 %v479, 0.0
      %v512 = vmax.f32 %v480, 0.0
      %v513 = vmax.f32 %v481, 0.0
      %v514 = vmax.f32 %v482, 0.0
      %v515 = vmax.f32 %v483, 0.0
      %v516 = vmax.f32 %v484, 0.0
      %v517 = vmax.f32 %v485, 0.0
      %v518 = vmax.f32 %v486, 0.0
      %v519 = vmax.f32 %v487, 0.0
      %v520 = vmax.f32 %v488, 0.0
      %v521 = vmax.f32 %v489, 0.0
      %v522 = vmax.f32 %v490, 0.0
      %v523 = vmax.f32 %v491, 0.0
      %524 = vst [vmem:[%s194] sm:$0xff] %v492
      %525 = vst [vmem:[%s194 + $0x8] sm:$0xff] %v493
      %526 = vst [vmem:[%s194 + $0x10] sm:$0xff] %v494
      %527 = vst [vmem:[%s194 + $0x18] sm:$0xff] %v495
      %528 = vst [vmem:[%s194 + $0x20] sm:$0xff] %v496
      %529 = vst [vmem:[%s194 + $0x28] sm:$0xff] %v497
      %530 = vst [vmem:[%s194 + $0x30] sm:$0xff] %v498
      %531 = vst [vmem:[%s194 + $0x38] sm:$0xff] %v499
      %532 = vst [vmem:[%s194 + $0x40] sm:$0xff] %v500
      %533 = vst [vmem:[%s194 + $0x48] sm:$0xff] %v501
      %534 = vst [vmem:[%s194 + $0x50] sm:$0xff] %v502
      %535 = vst [vmem:[%s194 + $0x58] sm:$0xff] %v503
      %536 = vst [vmem:[%s194 + $0x60] sm:$0xff] %v504
      %537 = vst [vmem:[%s194 + $0x68] sm:$0xff] %v505
      %538 = vst [vmem:[%s194 + $0x70] sm:$0xff] %v506
      %539 = vst [vmem:[%s194 + $0x78] sm:$0xff] %v507
      %540 = vst [vmem:[%s194 + $0x80] sm:$0xff] %v508
      %541 = vst [vmem:[%s194 + $0x88] sm:$0xff] %v509
      %542 = vst [vmem:[%s194 + $0x90] sm:$0xff] %v510
      %543 = vst [vmem:[%s194 + $0x98] sm:$0xff] %v511
      %544 = vst [vmem:[%s194 + $0xa0] sm:$0xff] %v512
      %545 = vst [vmem:[%s194 + $0xa8] sm:$0xff] %v513
      %546 = vst [vmem:[%s194 + $0xb0] sm:$0xff] %v514
      %547 = vst [vmem:[%s194 + $0xb8] sm:$0xff] %v515
      %548 = vst [vmem:[%s194 + $0xc0] sm:$0xff] %v516
      %549 = vst [vmem:[%s194 + $0xc8] sm:$0xff] %v517
      %550 = vst [vmem:[%s194 + $0xd0] sm:$0xff] %v518
      %551 = vst [vmem:[%s194 + $0xd8] sm:$0xff] %v519
      %552 = vst [vmem:[%s194 + $0xe0] sm:$0xff] %v520
      %553 = vst [vmem:[%s194 + $0xe8] sm:$0xff] %v521
      %554 = vst [vmem:[%s194 + $0xf0] sm:$0xff] %v522
      %555 = vst [vmem:[%s194 + $0xf8] sm:$0xff] %v523
      %s556 = smul.u32 32, %s14
      %p557 = scmp.lt.s32.totalorder %s556, 63
      %s558 = scalar_select %p557, %s556, 63
      %s559 = smul.addr %s558, 8
      %s560 = scalar_lea.vmem %s3, %s559
      // Predicated region
      $region33: #{mock_residual_block_forward.5} parent=31 // pred_check
        %p561 = pneg %p105
      $region34: #{mock_residual_block_forward.5} parent=31 // pred_check_branch
        %563 = sbr.rel (%p561) target = $region36
      $region35: #{mock_residual_block_forward.5} parent=31 // pred_region
        %s564 = smul.u32 32, %s14
      $region36: #{mock_residual_block_forward.5} parent=31 // pred_fallthru
        _
    $region32: #{mock_residual_block_forward.5} parent=5 // pred_fallthru
      _
    %p565 = scmp.le.s32.totalorder 2, %s9
    // Predicated region
    $region37: #{mock_residual_block_forward.5} parent=5 // pred_check
      %p566 = pneg %p565
    $region38: #{mock_residual_block_forward.5} parent=5 // pred_check_branch
      %568 = sbr.rel (%p566) target = $region40
    $region39: #{mock_residual_block_forward.5} parent=5 // pred_region
      %s569 = ssub.s32 %s9, 2
      // Predicated region
      $region41: #{mock_residual_block_forward.5} parent=39 // pred_check
        %p570 = pneg %p111
      $region42: #{mock_residual_block_forward.5} parent=39 // pred_check_branch
        %572 = sbr.rel (%p570) target = $region44
      $region43: #{mock_residual_block_forward.5} parent=39 // pred_region
        %s573 = smul.u32 32, %s15
        %p574 = scmp.lt.s32.totalorder %s573, 63
        %s575 = scalar_select %p574, %s573, 63
        %s576 = smul.addr %s575, 8
        %s577 = scalar_lea.vmem %s3, %s576
      $region44: #{mock_residual_block_forward.5} parent=39 // pred_fallthru
        _
    $region40: #{mock_residual_block_forward.5} parent=5 // pred_fallthru
      _
  $region6: #{mock_residual_block_forward.5} parent=0 // loop_footer
    %s13 = sadd.s32 1, %s9
  $region7: #{mock_residual_block_forward.5} parent=0 // loop_footer_branch
    %8 = sbr.rel target = $region3
  $region8: #{mock_residual_block_forward.5} parent=0 // loop_exit
    _

// kernel: mock_residual_block_forward.4
$region0: #{mock_residual_block_forward.4}
  #allocation0 [shape = 'u32[]', space=smem, size = 0x4, offset = 0x4, fixed_abs, tag = 'smem constant byte address 0x4 - core index']
  #allocation1 [shape = 'u32[72,128]{1,0:T(1,128)}', space=vmem, size = 0x9000, scoped, tag = 'internal scratch']
  #allocation2 [shape = 'bf16[18,16,384]{2,1,0:T(8,128)(2,1)}', space=vmem, size = 0x36000, scoped, tag = 'scratch operand']
  %s0 = inlined_call_operand.vmem [shape: bf16[512,128], index: 0, kind: input, shape index: {}]
  %s1 = inlined_call_operand.vmem [shape: f32[2,128], index: 1, kind: input, shape index: {}]
  %s2 = inlined_call_operand.vmem [shape: bf16[3,384,128], index: 2, kind: input, shape index: {}]
  %s3 = inlined_call_operand.vmem [shape: bf16[512,128], index: 3, kind: output, shape index: {0}]
  %s4 = inlined_call_operand.vmem [shape: f32[2,2,128], index: 4, kind: output, shape index: {1}]
  %5 = xla_tuple %s3, %s4
  %s6 = sld [smem:[#allocation0]]
  $region53: #{mock_residual_block_forward.4} parent=0
    _
  %s8 = ssub.s32 1, %s6
  %s9 = scalar_select 0, %s8, %s6
  loop: start=0, step=1, limit=4
  $region2: #{mock_residual_block_forward.4} parent=0 // loop_pre_header
    _
  $region3: #{mock_residual_block_forward.4} parent=0 // loop_header
    %s11 = sphi 0, %s15
    %p12 = scmp.ge.s32.totalorder %s11, 4
    %s21 = sphi 0, %s23
    %s24 = sphi 0, %s21
    %s25 = sphi 0, %s24
    %s41 = sphi 0, %s25
    %s45 = sphi 0, %s45
    %s47 = sphi 0, %s45
    %s48 = sphi 0, %s47
    %s62 = sphi 0, %s48
    %s66 = sphi 0, %s66
    %s68 = sphi 0, %s66
    %s69 = sphi 0, %s68
    %s83 = sphi 0, %s69
    %s89 = sphi 0, %s91
    %s92 = sphi 0, %s89
    %s93 = sphi 0, %s92
    %s109 = sphi 0, %s93
    %s115 = sphi 0, %s117
    %s118 = sphi 0, %s115
    %s119 = sphi 0, %s118
    %s135 = sphi 0, %s119
  $region4: #{mock_residual_block_forward.4} parent=0 // loop_header_branch
    %14 = sbr.rel (%p12) target = $region8
  $region5: #{mock_residual_block_forward.4} parent=0 // loop_body
    %s16 = ssub.s32 %s11, 1
    %s17 = ssub.s32 %s11, 2
    %s18 = sadd.s32 %s11, 1
    %s19 = ssub.s32 %s11, %s18
    %p20 = scmp.eq.s32.totalorder %s19, 0
    %s22 = sadd.s32 %s21, 1
    %s23 = scalar_select %p20, %s21, %s22
    %p26 = pneg %p20
    %p27 = scmp.eq.s32.totalorder %s11, 1
    %p28 = por %p26, %p27
    %p29 = scmp.ne.s32.totalorder %s21, %s24
    %p30 = scmp.eq.s32.totalorder %s11, 0
    %p31 = por %p29, %p30
    %p32 = scmp.ne.s32.totalorder %s21, %s24
    %p33 = scmp.eq.s32.totalorder %s16, 1
    %p34 = por %p32, %p33
    %p35 = scmp.ne.s32.totalorder %s24, %s25
    %p36 = scmp.eq.s32.totalorder %s16, 0
    %p37 = por %p35, %p36
    %p38 = scmp.ne.s32.totalorder %s24, %s25
    %p39 = scmp.eq.s32.totalorder %s17, 1
    %p40 = por %p38, %p39
    %p42 = scmp.ne.s32.totalorder %s25, %s41
    %p43 = scmp.eq.s32.totalorder %s17, 0
    %p44 = por %p42, %p43
    %s46 = sadd.s32 %s45, 1
    %p49 = scmp.eq.s32.totalorder %s11, 1
    %p50 = scmp.ne.s32.totalorder %s45, %s47
    %p51 = scmp.eq.s32.totalorder %s11, 0
    %p52 = por %p50, %p51
    %p53 = scmp.ne.s32.totalorder %s45, %s47
    %p54 = scmp.eq.s32.totalorder %s16, 1
    %p55 = por %p53, %p54
    %p56 = scmp.ne.s32.totalorder %s47, %s48
    %p57 = scmp.eq.s32.totalorder %s16, 0
    %p58 = por %p56, %p57
    %p59 = scmp.ne.s32.totalorder %s47, %s48
    %p60 = scmp.eq.s32.totalorder %s17, 1
    %p61 = por %p59, %p60
    %p63 = scmp.ne.s32.totalorder %s48, %s62
    %p64 = scmp.eq.s32.totalorder %s17, 0
    %p65 = por %p63, %p64
    %s67 = sadd.s32 %s66, 1
    %p70 = scmp.eq.s32.totalorder %s11, 1
    %p71 = scmp.ne.s32.totalorder %s66, %s68
    %p72 = scmp.eq.s32.totalorder %s11, 0
    %p73 = por %p71, %p72
    %p74 = scmp.ne.s32.totalorder %s66, %s68
    %p75 = scmp.eq.s32.totalorder %s16, 1
    %p76 = por %p74, %p75
    %p77 = scmp.ne.s32.totalorder %s68, %s69
    %p78 = scmp.eq.s32.totalorder %s16, 0
    %p79 = por %p77, %p78
    %p80 = scmp.ne.s32.totalorder %s68, %s69
    %p81 = scmp.eq.s32.totalorder %s17, 1
    %p82 = por %p80, %p81
    %p84 = scmp.ne.s32.totalorder %s69, %s83
    %p85 = scmp.eq.s32.totalorder %s17, 0
    %p86 = por %p84, %p85
    %s87 = ssub.s32 %s11, %s18
    %p88 = scmp.eq.s32.totalorder %s87, 0
    %s90 = sadd.s32 %s89, 1
    %s91 = scalar_select %p88, %s89, %s90
    %p94 = pneg %p88
    %p95 = scmp.eq.s32.totalorder %s11, 1
    %p96 = por %p94, %p95
    %p97 = scmp.ne.s32.totalorder %s89, %s92
    %p98 = scmp.eq.s32.totalorder %s11, 0
    %p99 = por %p97, %p98
    %p100 = scmp.ne.s32.totalorder %s89, %s92
    %p101 = scmp.eq.s32.totalorder %s16, 1
    %p102 = por %p100, %p101
    %p103 = scmp.ne.s32.totalorder %s92, %s93
    %p104 = scmp.eq.s32.totalorder %s16, 0
    %p105 = por %p103, %p104
    %p106 = scmp.ne.s32.totalorder %s92, %s93
    %p107 = scmp.eq.s32.totalorder %s17, 1
    %p108 = por %p106, %p107
    %p110 = scmp.ne.s32.totalorder %s93, %s109
    %p111 = scmp.eq.s32.totalorder %s17, 0
    %p112 = por %p110, %p111
    %s113 = ssub.s32 %s11, %s18
    %p114 = scmp.eq.s32.totalorder %s113, 0
    %s116 = sadd.s32 %s115, 1
    %s117 = scalar_select %p114, %s115, %s116
    %p120 = pneg %p114
    %p121 = scmp.eq.s32.totalorder %s11, 1
    %p122 = por %p120, %p121
    %p123 = scmp.ne.s32.totalorder %s115, %s118
    %p124 = scmp.eq.s32.totalorder %s11, 0
    %p125 = por %p123, %p124
    %p126 = scmp.ne.s32.totalorder %s115, %s118
    %p127 = scmp.eq.s32.totalorder %s16, 1
    %p128 = por %p126, %p127
    %p129 = scmp.ne.s32.totalorder %s118, %s119
    %p130 = scmp.eq.s32.totalorder %s16, 0
    %p131 = por %p129, %p130
    %p132 = scmp.ne.s32.totalorder %s118, %s119
    %p133 = scmp.eq.s32.totalorder %s17, 1
    %p134 = por %p132, %p133
    %p136 = scmp.ne.s32.totalorder %s119, %s135
    %p137 = scmp.eq.s32.totalorder %s17, 0
    %p138 = por %p136, %p137
    %p139 = scmp.le.s32.totalorder 1, %s11
    %p140 = scmp.lt.s32.totalorder %s11, 3
    %p141 = pnand %p139, %p140
    %p142 = pneg %p141
    // Predicated region
    $region9: #{mock_residual_block_forward.4} parent=5 // pred_check
      _
    $region10: #{mock_residual_block_forward.4} parent=5 // pred_check_branch
      %144 = sbr.rel (%p141) target = $region12
    $region11: #{mock_residual_block_forward.4} parent=5 // pred_region
      %s145 = ssub.s32 %s11, 1
      // Predicated region
      $region13: #{mock_residual_block_forward.4} parent=11 // pred_check
        %p146 = pneg %p58
      $region14: #{mock_residual_block_forward.4} parent=11 // pred_check_branch
        %148 = sbr.rel (%p146) target = $region16
      $region15: #{mock_residual_block_forward.4} parent=11 // pred_region
        _
      $region16: #{mock_residual_block_forward.4} parent=11 // pred_fallthru
        _
      // Predicated region
      $region17: #{mock_residual_block_forward.4} parent=11 // pred_check
        %p149 = pneg %p79
      $region18: #{mock_residual_block_forward.4} parent=11 // pred_check_branch
        %151 = sbr.rel (%p149) target = $region20
      $region19: #{mock_residual_block_forward.4} parent=11 // pred_region
        _
      $region20: #{mock_residual_block_forward.4} parent=11 // pred_fallthru
        _
    $region12: #{mock_residual_block_forward.4} parent=5 // pred_fallthru
      _
    %p152 = scmp.lt.s32.totalorder %s11, 2
    // Predicated region
    $region21: #{mock_residual_block_forward.4} parent=5 // pred_check
      %p153 = pneg %p152
    $region22: #{mock_residual_block_forward.4} parent=5 // pred_check_branch
      %155 = sbr.rel (%p153) target = $region24
    $region23: #{mock_residual_block_forward.4} parent=5 // pred_region
      // Predicated region
      $region25: #{mock_residual_block_forward.4} parent=23 // pred_check
        %p156 = pneg %p31
      $region26: #{mock_residual_block_forward.4} parent=23 // pred_check_branch
        %158 = sbr.rel (%p156) target = $region28
      $region27: #{mock_residual_block_forward.4} parent=23 // pred_region
        %s159 = smul.u32 32, %s11
        %p160 = scmp.lt.s32.totalorder %s159, 63
        %s161 = scalar_select %p160, %s159, 63
        %s162 = smul.addr %s161, 4
        %s163 = scalar_lea.vmem %s0, %s162
        %s164 = smul.u32 32, %s11
      $region28: #{mock_residual_block_forward.4} parent=23 // pred_fallthru
        _
    $region24: #{mock_residual_block_forward.4} parent=5 // pred_fallthru
      _
    %p165 = scmp.le.s32.totalorder 1, %s11
    %p166 = scmp.lt.s32.totalorder %s11, 3
    %p167 = pnand %p165, %p166
    %p168 = pneg %p167
    // Predicated region
    $region29: #{mock_residual_block_forward.4} parent=5 // pred_check
      _
    $region30: #{mock_residual_block_forward.4} parent=5 // pred_check_branch
      %170 = sbr.rel (%p167) target = $region32
    $region31: #{mock_residual_block_forward.4} parent=5 // pred_region
      %s171 = ssub.s32 %s11, 1
      %s172 = smul.u32 32, %s16
      %p173 = scmp.lt.s32.totalorder %s172, 63
      %s174 = scalar_select %p173, %s172, 63
      %s175 = smul.addr %s174, 4
      %s176 = scalar_lea.vmem %s0, %s175
      %p177 = pneg %p37
      %p178 = pneg %p34
      %p179 = pneg %p58
      %p180 = pneg %p55
      %p181 = pneg %p79
      %p182 = pneg %p76
      %p183 = pneg %p105
      %p184 = pneg %p102
      %s185 = smul.u32 32, %s16
      %p186 = scmp.lt.s32.totalorder %s185, 63
      %s187 = scalar_select %p186, %s185, 63
      %s188 = smul.addr %s187, 4
      %s189 = scalar_lea.vmem %s3, %s188
      %p190 = pneg %p131
      %p191 = pneg %p128
      %p192 = scmp.lt.s32.totalorder %s16, 1
      %s193 = scalar_select %p192, %s16, 1
      %s194 = smul.addr %s193, 2
      %s195 = scalar_lea.vmem %s4, %s194
      %s196 = smul.u32 32, %s16
      %p197 = scmp.lt.s32.totalorder %s196, 63
      %s198 = scalar_select %p197, %s196, 63
      %s199 = smul.addr %s198, 4
      %s200 = scalar_lea.vmem %s0, %s199
      %s201 = smul.u32 32, %s16
      %s202 = smul.u32 32, %s16
      %p203 = scmp.lt.s32.totalorder %s202, 63
      %s204 = scalar_select %p203, %s202, 63
      %s205 = smul.addr %s204, 4
      %s206 = scalar_lea.vmem %s3, %s205
      %s207 = smul.u32 32, %s16
      %p208 = scmp.lt.s32.totalorder %s16, 1
      %s209 = scalar_select %p208, %s16, 1
      %s210 = smul.addr %s209, 2
      %s211 = scalar_lea.vmem %s4, %s210
      %v213 = vld [vmem:[%s200] sm:$0xf]
      %v214 = vld [vmem:[%s200 + $0x4] sm:$0xf]
      %v215 = vld [vmem:[%s200 + $0x8] sm:$0xf]
      %v216 = vld [vmem:[%s200 + $0xc] sm:$0xf]
      %v217 = vld [vmem:[%s200 + $0x10] sm:$0xf]
      %v218 = vld [vmem:[%s200 + $0x14] sm:$0xf]
      %v219 = vld [vmem:[%s200 + $0x18] sm:$0xf]
      %v220 = vld [vmem:[%s200 + $0x1c] sm:$0xf]
      %v221 = vld [vmem:[%s200 + $0x20] sm:$0xf]
      %v222 = vld [vmem:[%s200 + $0x24] sm:$0xf]
      %v223 = vld [vmem:[%s200 + $0x28] sm:$0xf]
      %v224 = vld [vmem:[%s200 + $0x2c] sm:$0xf]
      %v225 = vld [vmem:[%s200 + $0x30] sm:$0xf]
      %v226 = vld [vmem:[%s200 + $0x34] sm:$0xf]
      %v227 = vld [vmem:[%s200 + $0x38] sm:$0xf]
      %v228 = vld [vmem:[%s200 + $0x3c] sm:$0xf]
      %v229 = vld [vmem:[%s200 + $0x40] sm:$0xf]
      %v230 = vld [vmem:[%s200 + $0x44] sm:$0xf]
      %v231 = vld [vmem:[%s200 + $0x48] sm:$0xf]
      %v232 = vld [vmem:[%s200 + $0x4c] sm:$0xf]
      %v233 = vld [vmem:[%s200 + $0x50] sm:$0xf]
      %v234 = vld [vmem:[%s200 + $0x54] sm:$0xf]
      %v235 = vld [vmem:[%s200 + $0x58] sm:$0xf]
      %v236 = vld [vmem:[%s200 + $0x5c] sm:$0xf]
      %v237 = vld [vmem:[%s200 + $0x60] sm:$0xf]
      %v238 = vld [vmem:[%s200 + $0x64] sm:$0xf]
      %v239 = vld [vmem:[%s200 + $0x68] sm:$0xf]
      %v240 = vld [vmem:[%s200 + $0x6c] sm:$0xf]
      %v241 = vld [vmem:[%s200 + $0x70] sm:$0xf]
      %v242 = vld [vmem:[%s200 + $0x74] sm:$0xf]
      %v243 = vld [vmem:[%s200 + $0x78] sm:$0xf]
      %v244 = vld [vmem:[%s200 + $0x7c] sm:$0xf]
      %v245 = vunpack.c.l.bf16 %v213
      %v246 = vunpack.c.l.bf16 %v214
      %v247 = vunpack.c.l.bf16 %v215
      %v248 = vunpack.c.l.bf16 %v216
      %v249 = vunpack.c.l.bf16 %v217
      %v250 = vunpack.c.l.bf16 %v218
      %v251 = vunpack.c.l.bf16 %v219
      %v252 = vunpack.c.l.bf16 %v220
      %v253 = vunpack.c.l.bf16 %v221
      %v254 = vunpack.c.l.bf16 %v222
      %v255 = vunpack.c.l.bf16 %v223
      %v256 = vunpack.c.l.bf16 %v224
      %v257 = vunpack.c.l.bf16 %v225
      %v258 = vunpack.c.l.bf16 %v226
      %v259 = vunpack.c.l.bf16 %v227
      %v260 = vunpack.c.l.bf16 %v228
      %v261 = vunpack.c.l.bf16 %v229
      %v262 = vunpack.c.l.bf16 %v230
      %v263 = vunpack.c.l.bf16 %v231
      %v264 = vunpack.c.l.bf16 %v232
      %v265 = vunpack.c.l.bf16 %v233
      %v266 = vunpack.c.l.bf16 %v234
      %v267 = vunpack.c.l.bf16 %v235
      %v268 = vunpack.c.l.bf16 %v236
      %v269 = vunpack.c.l.bf16 %v237
      %v270 = vunpack.c.l.bf16 %v238
      %v271 = vunpack.c.l.bf16 %v239
      %v272 = vunpack.c.l.bf16 %v240
      %v273 = vunpack.c.l.bf16 %v241
      %v274 = vunpack.c.l.bf16 %v242
      %v275 = vunpack.c.l.bf16 %v243
      %v276 = vunpack.c.l.bf16 %v244
      %v277 = vld [vmem:[%s1] sm:$0x1]
      %v278 = vperm.slane %v277, 0
      %v279 = vmul.f32 %v245, %v278
      %v280 = vmul.f32 %v246, %v278
      %v281 = vmul.f32 %v247, %v278
      %v282 = vmul.f32 %v248, %v278
      %v283 = vmul.f32 %v249, %v278
      %v284 = vmul.f32 %v250, %v278
      %v285 = vmul.f32 %v251, %v278
      %v286 = vmul.f32 %v252, %v278
      %v287 = vmul.f32 %v253, %v278
      %v288 = vmul.f32 %v254, %v278
      %v289 = vmul.f32 %v255, %v278
      %v290 = vmul.f32 %v256, %v278
      %v291 = vmul.f32 %v257, %v278
      %v292 = vmul.f32 %v258, %v278
      %v293 = vmul.f32 %v259, %v278
      %v294 = vmul.f32 %v260, %v278
      %v295 = vmul.f32 %v261, %v278
      %v296 = vmul.f32 %v262, %v278
      %v297 = vmul.f32 %v263, %v278
      %v298 = vmul.f32 %v264, %v278
      %v299 = vmul.f32 %v265, %v278
      %v300 = vmul.f32 %v266, %v278
      %v301 = vmul.f32 %v267, %v278
      %v302 = vmul.f32 %v268, %v278
      %v303 = vmul.f32 %v269, %v278
      %v304 = vmul.f32 %v270, %v278
      %v305 = vmul.f32 %v271, %v278
      %v306 = vmul.f32 %v272, %v278
      %v307 = vmul.f32 %v273, %v278
      %v308 = vmul.f32 %v274, %v278
      %v309 = vmul.f32 %v275, %v278
      %v310 = vmul.f32 %v276, %v278
      %v311 = vld [vmem:[%s1 + $0x1] sm:$0x1]
      %v312 = vperm.slane %v311, 0
      %v313 = vadd.f32 %v279, %v312
      %v314 = vadd.f32 %v280, %v312
      %v315 = vadd.f32 %v281, %v312
      %v316 = vadd.f32 %v282, %v312
      %v317 = vadd.f32 %v283, %v312
      %v318 = vadd.f32 %v284, %v312
      %v319 = vadd.f32 %v285, %v312
      %v320 = vadd.f32 %v286, %v312
      %v321 = vadd.f32 %v287, %v312
      %v322 = vadd.f32 %v288, %v312
      %v323 = vadd.f32 %v289, %v312
      %v324 = vadd.f32 %v290, %v312
      %v325 = vadd.f32 %v291, %v312
      %v326 = vadd.f32 %v292, %v312
      %v327 = vadd.f32 %v293, %v312
      %v328 = vadd.f32 %v294, %v312
      %v329 = vadd.f32 %v295, %v312
      %v330 = vadd.f32 %v296, %v312
      %v331 = vadd.f32 %v297, %v312
      %v332 = vadd.f32 %v298, %v312
      %v333 = vadd.f32 %v299, %v312
      %v334 = vadd.f32 %v300, %v312
      %v335 = vadd.f32 %v301, %v312
      %v336 = vadd.f32 %v302, %v312
      %v337 = vadd.f32 %v303, %v312
      %v338 = vadd.f32 %v304, %v312
      %v339 = vadd.f32 %v305, %v312
      %v340 = vadd.f32 %v306, %v312
      %v341 = vadd.f32 %v307, %v312
      %v342 = vadd.f32 %v308, %v312
      %v343 = vadd.f32 %v309, %v312
      %v344 = vadd.f32 %v310, %v312
      %v345 = vmax.f32 %v313, 0.0
      %v346 = vmax.f32 %v314, 0.0
      %v347 = vmax.f32 %v315, 0.0
      %v348 = vmax.f32 %v316, 0.0
      %v349 = vmax.f32 %v317, 0.0
      %v350 = vmax.f32 %v318, 0.0
      %v351 = vmax.f32 %v319, 0.0
      %v352 = vmax.f32 %v320, 0.0
      %v353 = vmax.f32 %v321, 0.0
      %v354 = vmax.f32 %v322, 0.0
      %v355 = vmax.f32 %v323, 0.0
      %v356 = vmax.f32 %v324, 0.0
      %v357 = vmax.f32 %v325, 0.0
      %v358 = vmax.f32 %v326, 0.0
      %v359 = vmax.f32 %v327, 0.0
      %v360 = vmax.f32 %v328, 0.0
      %v361 = vmax.f32 %v329, 0.0
      %v362 = vmax.f32 %v330, 0.0
      %v363 = vmax.f32 %v331, 0.0
      %v364 = vmax.f32 %v332, 0.0
      %v365 = vmax.f32 %v333, 0.0
      %v366 = vmax.f32 %v334, 0.0
      %v367 = vmax.f32 %v335, 0.0
      %v368 = vmax.f32 %v336, 0.0
      %v369 = vmax.f32 %v337, 0.0
      %v370 = vmax.f32 %v338, 0.0
      %v371 = vmax.f32 %v339, 0.0
      %v372 = vmax.f32 %v340, 0.0
      %v373 = vmax.f32 %v341, 0.0
      %v374 = vmax.f32 %v342, 0.0
      %v375 = vmax.f32 %v343, 0.0
      %v376 = vmax.f32 %v344, 0.0
      %v377 = vpack.c.bf16 %v345, %v345
      %v378 = vpack.c.bf16 %v346, %v346
      %v379 = vpack.c.bf16 %v347, %v347
      %v380 = vpack.c.bf16 %v348, %v348
      %v381 = vpack.c.bf16 %v349, %v349
      %v382 = vpack.c.bf16 %v350, %v350
      %v383 = vpack.c.bf16 %v351, %v351
      %v384 = vpack.c.bf16 %v352, %v352
      %v385 = vpack.c.bf16 %v353, %v353
      %v386 = vpack.c.bf16 %v354, %v354
      %v387 = vpack.c.bf16 %v355, %v355
      %v388 = vpack.c.bf16 %v356, %v356
      %v389 = vpack.c.bf16 %v357, %v357
      %v390 = vpack.c.bf16 %v358, %v358
      %v391 = vpack.c.bf16 %v359, %v359
      %v392 = vpack.c.bf16 %v360, %v360
      %v393 = vpack.c.bf16 %v361, %v361
      %v394 = vpack.c.bf16 %v362, %v362
      %v395 = vpack.c.bf16 %v363, %v363
      %v396 = vpack.c.bf16 %v364, %v364
      %v397 = vpack.c.bf16 %v365, %v365
      %v398 = vpack.c.bf16 %v366, %v366
      %v399 = vpack.c.bf16 %v367, %v367
      %v400 = vpack.c.bf16 %v368, %v368
      %v401 = vpack.c.bf16 %v369, %v369
      %v402 = vpack.c.bf16 %v370, %v370
      %v403 = vpack.c.bf16 %v371, %v371
      %v404 = vpack.c.bf16 %v372, %v372
      %v405 = vpack.c.bf16 %v373, %v373
      %v406 = vpack.c.bf16 %v374, %v374
      %v407 = vpack.c.bf16 %v375, %v375
      %v408 = vpack.c.bf16 %v376, %v376
      %409 = vst [vmem:[#allocation2] sm:$0xff] 0
      %410 = vst [vmem:[#allocation2 + $0x8] sm:$0xf] 0
      %411 = vst [vmem:[#allocation2 + $0xc] sm:$0xff] 0
      %412 = vst [vmem:[#allocation2 + $0x14] sm:$0xf] 0
      %s413 = scalar_lea.vmem [#allocation2], 408
      %414 = vst [vmem:[%s413] sm:$0xff] 0
      %415 = vst [vmem:[%s413 + $0x8] sm:$0xf] 0
      %416 = vst [vmem:[%s413 + $0xc] sm:$0xff] 0
      %417 = vst [vmem:[%s413 + $0x14] sm:$0xf] 0
      %s418 = scalar_lea.vmem [#allocation2], 24
      %vm419 = vcmask 1040384
      %vm420 = vsmask.f32 256
      %vm421 = vmand %vm419, %vm420
      %v422 = vld [vmem:[%s418] sm:$0x1]
      %v423 = vsel %vm421, 0, %v422
      %424 = vst [vmem:[%s418] sm:$0x1] %v423
      %v425 = vld [vmem:[%s418 + $0x18] sm:$0x1]
      %v426 = vsel %vm421, 0, %v425
      %427 = vst [vmem:[%s418 + $0x18] sm:$0x1] %v426
      %v428 = vld [vmem:[%s418 + $0x30] sm:$0x1]
      %v429 = vsel %vm421, 0, %v428
      %430 = vst [vmem:[%s418 + $0x30] sm:$0x1] %v429
      %v431 = vld [vmem:[%s418 + $0x48] sm:$0x1]
      %v432 = vsel %vm421, 0, %v431
      %433 = vst [vmem:[%s418 + $0x48] sm:$0x1] %v432
      %v434 = vld [vmem:[%s418 + $0x60] sm:$0x1]
      %v435 = vsel %vm421, 0, %v434
      %436 = vst [vmem:[%s418 + $0x60] sm:$0x1] %v435
      %v437 = vld [vmem:[%s418 + $0x78] sm:$0x1]
      %v438 = vsel %vm421, 0, %v437
      %439 = vst [vmem:[%s418 + $0x78] sm:$0x1] %v438
      %v440 = vld [vmem:[%s418 + $0x90] sm:$0x1]
      %v441 = vsel %vm421, 0, %v440
      %442 = vst [vmem:[%s418 + $0x90] sm:$0x1] %v441
      %v443 = vld [vmem:[%s418 + $0xa8] sm:$0x1]
      %v444 = vsel %vm421, 0, %v443
      %445 = vst [vmem:[%s418 + $0xa8] sm:$0x1] %v444
      %v446 = vld [vmem:[%s418 + $0xc0] sm:$0x1]
      %v447 = vsel %vm421, 0, %v446
      %448 = vst [vmem:[%s418 + $0xc0] sm:$0x1] %v447
      %v449 = vld [vmem:[%s418 + $0xd8] sm:$0x1]
      %v450 = vsel %vm421, 0, %v449
      %451 = vst [vmem:[%s418 + $0xd8] sm:$0x1] %v450
      %v452 = vld [vmem:[%s418 + $0xf0] sm:$0x1]
      %v453 = vsel %vm421, 0, %v452
      %454 = vst [vmem:[%s418 + $0xf0] sm:$0x1] %v453
      %v455 = vld [vmem:[%s418 + $0x108] sm:$0x1]
      %v456 = vsel %vm421, 0, %v455
      %457 = vst [vmem:[%s418 + $0x108] sm:$0x1] %v456
      %v458 = vld [vmem:[%s418 + $0x120] sm:$0x1]
      %v459 = vsel %vm421, 0, %v458
      %460 = vst [vmem:[%s418 + $0x120] sm:$0x1] %v459
      %v461 = vld [vmem:[%s418 + $0x138] sm:$0x1]
      %v462 = vsel %vm421, 0, %v461
      %463 = vst [vmem:[%s418 + $0x138] sm:$0x1] %v462
      %v464 = vld [vmem:[%s418 + $0x150] sm:$0x1]
      %v465 = vsel %vm421, 0, %v464
      %466 = vst [vmem:[%s418 + $0x150] sm:$0x1] %v465
      %v467 = vld [vmem:[%s418 + $0x168] sm:$0x1]
      %v468 = vsel %vm421, 0, %v467
      %469 = vst [vmem:[%s418 + $0x168] sm:$0x1] %v468
      %vm470 = vcmask 1043459
      %vm471 = vsmask.f32 7950
      %vm472 = vmand %vm470, %vm471
      %v473 = vld [vmem:[%s418 + $0x14] sm:$0x8]
      %v474 = vsel %vm472, 0, %v473
      %475 = vst [vmem:[%s418 + $0x14] sm:$0x8] %v474
      %v476 = vld [vmem:[%s418 + $0x2c] sm:$0x8]
      %v477 = vsel %vm472, 0, %v476
      %478 = vst [vmem:[%s418 + $0x2c] sm:$0x8] %v477
      %v479 = vld [vmem:[%s418 + $0x44] sm:$0x8]
      %v480 = vsel %vm472, 0, %v479
      %481 = vst [vmem:[%s418 + $0x44] sm:$0x8] %v480
      %v482 = vld [vmem:[%s418 + $0x5c] sm:$0x8]
      %v483 = vsel %vm472, 0, %v482
      %484 = vst [vmem:[%s418 + $0x5c] sm:$0x8] %v483
      %v485 = vld [vmem:[%s418 + $0x74] sm:$0x8]
      %v486 = vsel %vm472, 0, %v485
      %487 = vst [vmem:[%s418 + $0x74] sm:$0x8] %v486
      %v488 = vld [vmem:[%s418 + $0x8c] sm:$0x8]
      %v489 = vsel %vm472, 0, %v488
      %490 = vst [vmem:[%s418 + $0x8c] sm:$0x8] %v489
      %v491 = vld [vmem:[%s418 + $0xa4] sm:$0x8]
      %v492 = vsel %vm472, 0, %v491
      %493 = vst [vmem:[%s418 + $0xa4] sm:$0x8] %v492
      %v494 = vld [vmem:[%s418 + $0xbc] sm:$0x8]
      %v495 = vsel %vm472, 0, %v494
      %496 = vst [vmem:[%s418 + $0xbc] sm:$0x8] %v495
      %v497 = vld [vmem:[%s418 + $0xd4] sm:$0x8]
      %v498 = vsel %vm472, 0, %v497
      %499 = vst [vmem:[%s418 + $0xd4] sm:$0x8] %v498
      %v500 = vld [vmem:[%s418 + $0xec] sm:$0x8]
      %v501 = vsel %vm472, 0, %v500
      %502 = vst [vmem:[%s418 + $0xec] sm:$0x8] %v501
      %v503 = vld [vmem:[%s418 + $0x104] sm:$0x8]
      %v504 = vsel %vm472, 0, %v503
      %505 = vst [vmem:[%s418 + $0x104] sm:$0x8] %v504
      %v506 = vld [vmem:[%s418 + $0x11c] sm:$0x8]
      %v507 = vsel %vm472, 0, %v506
      %508 = vst [vmem:[%s418 + $0x11c] sm:$0x8] %v507
      %v509 = vld [vmem:[%s418 + $0x134] sm:$0x8]
      %v510 = vsel %vm472, 0, %v509
      %511 = vst [vmem:[%s418 + $0x134] sm:$0x8] %v510
      %v512 = vld [vmem:[%s418 + $0x14c] sm:$0x8]
      %v513 = vsel %vm472, 0, %v512
      %514 = vst [vmem:[%s418 + $0x14c] sm:$0x8] %v513
      %v515 = vld [vmem:[%s418 + $0x164] sm:$0x8]
      %v516 = vsel %vm472, 0, %v515
      %517 = vst [vmem:[%s418 + $0x164] sm:$0x8] %v516
      %v518 = vld [vmem:[%s418 + $0x17c] sm:$0x8]
      %v519 = vsel %vm472, 0, %v518
      %520 = vst [vmem:[%s418 + $0x17c] sm:$0x8] %v519
      %vm521 = vsmask.f32 4368
      %vm522 = vmor %vm420, %vm521
      %v524 = vshrl.u32 %v377, 16
      %v526 = vrot.slane %v524, 7
      %v527 = vshll.u32 %v377, 16
      %v529 = vor.u32 %v526, %v527
      %v530 = vrot.slane %v526, 4
      %v532 = vshrl.u32 %v378, 16
      %v534 = vrot.slane %v532, 7
      %v535 = vshll.u32 %v378, 16
      %v537 = vor.u32 %v534, %v535
      %v538 = vsel %vm522, %v530, %v537
      %v540 = vshrl.u32 %v379, 16
      %v542 = vrot.slane %v540, 7
      %v543 = vshll.u32 %v379, 16
      %v545 = vor.u32 %v542, %v543
      %v546 = vrot.slane %v542, 4
      %v548 = vshrl.u32 %v380, 16
      %v550 = vrot.slane %v548, 7
      %v551 = vshll.u32 %v380, 16
      %v553 = vor.u32 %v550, %v551
      %v554 = vsel %vm522, %v546, %v553
      %v556 = vshrl.u32 %v381, 16
      %v558 = vrot.slane %v556, 7
      %v559 = vshll.u32 %v381, 16
      %v561 = vor.u32 %v558, %v559
      %v562 = vrot.slane %v558, 4
      %v564 = vshrl.u32 %v382, 16
      %v566 = vrot.slane %v564, 7
      %v567 = vshll.u32 %v382, 16
      %v569 = vor.u32 %v566, %v567
      %v570 = vsel %vm522, %v562, %v569
      %v572 = vshrl.u32 %v383, 16
      %v574 = vrot.slane %v572, 7
      %v575 = vshll.u32 %v383, 16
      %v577 = vor.u32 %v574, %v575
      %v578 = vrot.slane %v574, 4
      %v580 = vshrl.u32 %v384, 16
      %v582 = vrot.slane %v580, 7
      %v583 = vshll.u32 %v384, 16
      %v585 = vor.u32 %v582, %v583
      %v586 = vsel %vm522, %v578, %v585
      %v588 = vshrl.u32 %v385, 16
      %v590 = vrot.slane %v588, 7
      %v591 = vshll.u32 %v385, 16
      %v593 = vor.u32 %v590, %v591
      %v594 = vrot.slane %v590, 4
      %v596 = vshrl.u32 %v386, 16
      %v598 = vrot.slane %v596, 7
      %v599 = vshll.u32 %v386, 16
      %v601 = vor.u32 %v598, %v599
      %v602 = vsel %vm522, %v594, %v601
      %v604 = vshrl.u32 %v387, 16
      %v606 = vrot.slane %v604, 7
      %v607 = vshll.u32 %v387, 16
      %v609 = vor.u32 %v606, %v607
      %v610 = vrot.slane %v606, 4
      %v612 = vshrl.u32 %v388, 16
      %v614 = vrot.slane %v612, 7
      %v615 = vshll.u32 %v388, 16
      %v617 = vor.u32 %v614, %v615
      %v618 = vsel %vm522, %v610, %v617
      %v620 = vshrl.u32 %v389, 16
      %v622 = vrot.slane %v620, 7
      %v623 = vshll.u32 %v389, 16
      %v625 = vor.u32 %v622, %v623
      %v626 = vrot.slane %v622, 4
      %v628 = vshrl.u32 %v390, 16
      %v630 = vrot.slane %v628, 7
      %v631 = vshll.u32 %v390, 16
      %v633 = vor.u32 %v630, %v631
      %v634 = vsel %vm522, %v626, %v633
      %v636 = vshrl.u32 %v391, 16
      %v638 = vrot.slane %v636, 7
      %v639 = vshll.u32 %v391, 16
      %v641 = vor.u32 %v638, %v639
      %v642 = vrot.slane %v638, 4
      %v644 = vshrl.u32 %v392, 16
      %v646 = vrot.slane %v644, 7
      %v647 = vshll.u32 %v392, 16
      %v649 = vor.u32 %v646, %v647
      %v650 = vsel %vm522, %v642, %v649
      %v652 = vshrl.u32 %v393, 16
      %v654 = vrot.slane %v652, 7
      %v655 = vshll.u32 %v393, 16
      %v657 = vor.u32 %v654, %v655
      %v658 = vrot.slane %v654, 4
      %v660 = vshrl.u32 %v394, 16
      %v662 = vrot.slane %v660, 7
      %v663 = vshll.u32 %v394, 16
      %v665 = vor.u32 %v662, %v663
      %v666 = vsel %vm522, %v658, %v665
      %v668 = vshrl.u32 %v395, 16
      %v670 = vrot.slane %v668, 7
      %v671 = vshll.u32 %v395, 16
      %v673 = vor.u32 %v670, %v671
      %v674 = vrot.slane %v670, 4
      %v676 = vshrl.u32 %v396, 16
      %v678 = vrot.slane %v676, 7
      %v679 = vshll.u32 %v396, 16
      %v681 = vor.u32 %v678, %v679
      %v682 = vsel %vm522, %v674, %v681
      %v684 = vshrl.u32 %v397, 16
      %v686 = vrot.slane %v684, 7
      %v687 = vshll.u32 %v397, 16
      %v689 = vor.u32 %v686, %v687
      %v690 = vrot.slane %v686, 4
      %v692 = vshrl.u32 %v398, 16
      %v694 = vrot.slane %v692, 7
      %v695 = vshll.u32 %v398, 16
      %v697 = vor.u32 %v694, %v695
      %v698 = vsel %vm522, %v690, %v697
      %v700 = vshrl.u32 %v399, 16
      %v702 = vrot.slane %v700, 7
      %v703 = vshll.u32 %v399, 16
      %v705 = vor.u32 %v702, %v703
      %v706 = vrot.slane %v702, 4
      %v708 = vshrl.u32 %v400, 16
      %v710 = vrot.slane %v708, 7
      %v711 = vshll.u32 %v400, 16
      %v713 = vor.u32 %v710, %v711
      %v714 = vsel %vm522, %v706, %v713
      %v716 = vshrl.u32 %v401, 16
      %v718 = vrot.slane %v716, 7
      %v719 = vshll.u32 %v401, 16
      %v721 = vor.u32 %v718, %v719
      %v722 = vrot.slane %v718, 4
      %v724 = vshrl.u32 %v402, 16
      %v726 = vrot.slane %v724, 7
      %v727 = vshll.u32 %v402, 16
      %v729 = vor.u32 %v726, %v727
      %v730 = vsel %vm522, %v722, %v729
      %v732 = vshrl.u32 %v403, 16
      %v734 = vrot.slane %v732, 7
      %v735 = vshll.u32 %v403, 16
      %v737 = vor.u32 %v734, %v735
      %v738 = vrot.slane %v734, 4
      %v740 = vshrl.u32 %v404, 16
      %v742 = vrot.slane %v740, 7
      %v743 = vshll.u32 %v404, 16
      %v745 = vor.u32 %v742, %v743
      %v746 = vsel %vm522, %v738, %v745
      %v748 = vshrl.u32 %v405, 16
      %v750 = vrot.slane %v748, 7
      %v751 = vshll.u32 %v405, 16
      %v753 = vor.u32 %v750, %v751
      %v754 = vrot.slane %v750, 4
      %v756 = vshrl.u32 %v406, 16
      %v758 = vrot.slane %v756, 7
      %v759 = vshll.u32 %v406, 16
      %v761 = vor.u32 %v758, %v759
      %v762 = vsel %vm522, %v754, %v761
      %v764 = vshrl.u32 %v407, 16
      %v766 = vrot.slane %v764, 7
      %v767 = vshll.u32 %v407, 16
      %v769 = vor.u32 %v766, %v767
      %v770 = vrot.slane %v766, 4
      %v772 = vshrl.u32 %v408, 16
      %v774 = vrot.slane %v772, 7
      %v775 = vshll.u32 %v408, 16
      %v777 = vor.u32 %v774, %v775
      %v778 = vsel %vm522, %v770, %v777
      %vm811 = vcmask 1043456
      %vm812 = vsmask.f32 7938
      %vm813 = vmand %vm811, %vm812
      %v814 = vld [vmem:[%s418] sm:$0xf]
      %v815 = vsel %vm813, %v529, %v814
      %816 = vst [vmem:[%s418] sm:$0xf] %v815
      %817 = vst [vmem:[%s418 + $0xc] sm:$0xf] %v538
      %v818 = vld [vmem:[%s418 + $0x18] sm:$0xf]
      %v819 = vsel %vm813, %v545, %v818
      %820 = vst [vmem:[%s418 + $0x18] sm:$0xf] %v819
      %821 = vst [vmem:[%s418 + $0x24] sm:$0xf] %v554
      %v822 = vld [vmem:[%s418 + $0x30] sm:$0xf]
      %v823 = vsel %vm813, %v561, %v822
      %824 = vst [vmem:[%s418 + $0x30] sm:$0xf] %v823
      %825 = vst [vmem:[%s418 + $0x3c] sm:$0xf] %v570
      %v826 = vld [vmem:[%s418 + $0x48] sm:$0xf]
      %v827 = vsel %vm813, %v577, %v826
      %828 = vst [vmem:[%s418 + $0x48] sm:$0xf] %v827
      %829 = vst [vmem:[%s418 + $0x54] sm:$0xf] %v586
      %v830 = vld [vmem:[%s418 + $0x60] sm:$0xf]
      %v831 = vsel %vm813, %v593, %v830
      %832 = vst [vmem:[%s418 + $0x60] sm:$0xf] %v831
      %833 = vst [vmem:[%s418 + $0x6c] sm:$0xf] %v602
      %v834 = vld [vmem:[%s418 + $0x78] sm:$0xf]
      %v835 = vsel %vm813, %v609, %v834
      %836 = vst [vmem:[%s418 + $0x78] sm:$0xf] %v835
      %837 = vst [vmem:[%s418 + $0x84] sm:$0xf] %v618
      %v838 = vld [vmem:[%s418 + $0x90] sm:$0xf]
      %v839 = vsel %vm813, %v625, %v838
      %840 = vst [vmem:[%s418 + $0x90] sm:$0xf] %v839
      %841 = vst [vmem:[%s418 + $0x9c] sm:$0xf] %v634
      %v842 = vld [vmem:[%s418 + $0xa8] sm:$0xf]
      %v843 = vsel %vm813, %v641, %v842
      %844 = vst [vmem:[%s418 + $0xa8] sm:$0xf] %v843
      %845 = vst [vmem:[%s418 + $0xb4] sm:$0xf] %v650
      %v846 = vld [vmem:[%s418 + $0xc0] sm:$0xf]
      %v847 = vsel %vm813, %v657, %v846
      %848 = vst [vmem:[%s418 + $0xc0] sm:$0xf] %v847
      %849 = vst [vmem:[%s418 + $0xcc] sm:$0xf] %v666
      %v850 = vld [vmem:[%s418 + $0xd8] sm:$0xf]
      %v851 = vsel %vm813, %v673, %v850
      %852 = vst [vmem:[%s418 + $0xd8] sm:$0xf] %v851
      %853 = vst [vmem:[%s418 + $0xe4] sm:$0xf] %v682
      %v854 = vld [vmem:[%s418 + $0xf0] sm:$0xf]
      %v855 = vsel %vm813, %v689, %v854
      %856 = vst [vmem:[%s418 + $0xf0] sm:$0xf] %v855
      %857 = vst [vmem:[%s418 + $0xfc] sm:$0xf] %v698
      %v858 = vld [vmem:[%s418 + $0x108] sm:$0xf]
      %v859 = vsel %vm813, %v705, %v858
      %860 = vst [vmem:[%s418 + $0x108] sm:$0xf] %v859
      %861 = vst [vmem:[%s418 + $0x114] sm:$0xf] %v714
      %v862 = vld [vmem:[%s418 + $0x120] sm:$0xf]
      %v863 = vsel %vm813, %v721, %v862
      %864 = vst [vmem:[%s418 + $0x120] sm:$0xf] %v863
      %865 = vst [vmem:[%s418 + $0x12c] sm:$0xf] %v730
      %v866 = vld [vmem:[%s418 + $0x138] sm:$0xf]
      %v867 = vsel %vm813, %v737, %v866
      %868 = vst [vmem:[%s418 + $0x138] sm:$0xf] %v867
      %869 = vst [vmem:[%s418 + $0x144] sm:$0xf] %v746
      %v870 = vld [vmem:[%s418 + $0x150] sm:$0xf]
      %v871 = vsel %vm813, %v753, %v870
      %872 = vst [vmem:[%s418 + $0x150] sm:$0xf] %v871
      %873 = vst [vmem:[%s418 + $0x15c] sm:$0xf] %v762
      %v874 = vld [vmem:[%s418 + $0x168] sm:$0xf]
      %v875 = vsel %vm813, %v769, %v874
      %876 = vst [vmem:[%s418 + $0x168] sm:$0xf] %v875
      %877 = vst [vmem:[%s418 + $0x174] sm:$0xf] %v778
      %878 = vst [vmem:[%s418 + $0x4] sm:$0xf] %v377
      %879 = vst [vmem:[%s418 + $0x10] sm:$0xf] %v378
      %880 = vst [vmem:[%s418 + $0x1c] sm:$0xf] %v379
      %881 = vst [vmem:[%s418 + $0x28] sm:$0xf] %v380
      %882 = vst [vmem:[%s418 + $0x34] sm:$0xf] %v381
      %883 = vst [vmem:[%s418 + $0x40] sm:$0xf] %v382
      %884 = vst [vmem:[%s418 + $0x4c] sm:$0xf] %v383
      %885 = vst [vmem:[%s418 + $0x58] sm:$0xf] %v384
      %886 = vst [vmem:[%s418 + $0x64] sm:$0xf] %v385
      %887 = vst [vmem:[%s418 + $0x70] sm:$0xf] %v386
      %888 = vst [vmem:[%s418 + $0x7c] sm:$0xf] %v387
      %889 = vst [vmem:[%s418 + $0x88] sm:$0xf] %v388
      %890 = vst [vmem:[%s418 + $0x94] sm:$0xf] %v389
      %891 = vst [vmem:[%s418 + $0xa0] sm:$0xf] %v390
      %892 = vst [vmem:[%s418 + $0xac] sm:$0xf] %v391
      %893 = vst [vmem:[%s418 + $0xb8] sm:$0xf] %v392
      %894 = vst [vmem:[%s418 + $0xc4] sm:$0xf] %v393
      %895 = vst [vmem:[%s418 + $0xd0] sm:$0xf] %v394
      %896 = vst [vmem:[%s418 + $0xdc] sm:$0xf] %v395
      %897 = vst [vmem:[%s418 + $0xe8] sm:$0xf] %v396
      %898 = vst [vmem:[%s418 + $0xf4] sm:$0xf] %v397
      %899 = vst [vmem:[%s418 + $0x100] sm:$0xf] %v398
      %900 = vst [vmem:[%s418 + $0x10c] sm:$0xf] %v399
      %901 = vst [vmem:[%s418 + $0x118] sm:$0xf] %v400
      %902 = vst [vmem:[%s418 + $0x124] sm:$0xf] %v401
      %903 = vst [vmem:[%s418 + $0x130] sm:$0xf] %v402
      %904 = vst [vmem:[%s418 + $0x13c] sm:$0xf] %v403
      %905 = vst [vmem:[%s418 + $0x148] sm:$0xf] %v404
      %906 = vst [vmem:[%s418 + $0x154] sm:$0xf] %v405
      %907 = vst [vmem:[%s418 + $0x160] sm:$0xf] %v406
      %908 = vst [vmem:[%s418 + $0x16c] sm:$0xf] %v407
      %909 = vst [vmem:[%s418 + $0x178] sm:$0xf] %v408
      %vm910 = vsmask.f32 3328
      %vm911 = vsmask.f32 7440
      %vm912 = vmor %vm910, %vm911
      %v913 = vrot.slane %v524, 4
      %v914 = vrot.slane %v527, 5
      %v915 = vor.u32 %v913, %v914
      %v916 = vrot.slane %v915, 4
      %v917 = vrot.slane %v535, 5
      %v918 = vsel %vm912, %v916, %v917
      %v919 = vrot.slane %v532, 4
      %v920 = vor.u32 %v919, %v917
      %v921 = vrot.slane %v920, 4
      %v922 = vrot.slane %v540, 4
      %v923 = vrot.slane %v543, 5
      %v924 = vor.u32 %v922, %v923
      %v925 = vrot.slane %v924, 4
      %v926 = vrot.slane %v551, 5
      %v927 = vsel %vm912, %v925, %v926
      %v928 = vrot.slane %v548, 4
      %v929 = vor.u32 %v928, %v926
      %v930 = vrot.slane %v929, 4
      %v931 = vrot.slane %v556, 4
      %v932 = vrot.slane %v559, 5
      %v933 = vor.u32 %v931, %v932
      %v934 = vrot.slane %v933, 4
      %v935 = vrot.slane %v567, 5
      %v936 = vsel %vm912, %v934, %v935
      %v937 = vrot.slane %v564, 4
      %v938 = vor.u32 %v937, %v935
      %v939 = vrot.slane %v938, 4
      %v940 = vrot.slane %v572, 4
      %v941 = vrot.slane %v575, 5
      %v942 = vor.u32 %v940, %v941
      %v943 = vrot.slane %v942, 4
      %v944 = vrot.slane %v583, 5
      %v945 = vsel %vm912, %v943, %v944
      %v946 = vrot.slane %v580, 4
      %v947 = vor.u32 %v946, %v944
      %v948 = vrot.slane %v947, 4
      %v949 = vrot.slane %v588, 4
      %v950 = vrot.slane %v591, 5
      %v951 = vor.u32 %v949, %v950
      %v952 = vrot.slane %v951, 4
      %v953 = vrot.slane %v599, 5
      %v954 = vsel %vm912, %v952, %v953
      %v955 = vrot.slane %v596, 4
      %v956 = vor.u32 %v955, %v953
      %v957 = vrot.slane %v956, 4
      %v958 = vrot.slane %v604, 4
      %v959 = vrot.slane %v607, 5
      %v960 = vor.u32 %v958, %v959
      %v961 = vrot.slane %v960, 4
      %v962 = vrot.slane %v615, 5
      %v963 = vsel %vm912, %v961, %v962
      %v964 = vrot.slane %v612, 4
      %v965 = vor.u32 %v964, %v962
      %v966 = vrot.slane %v965, 4
      %v967 = vrot.slane %v620, 4
      %v968 = vrot.slane %v623, 5
      %v969 = vor.u32 %v967, %v968
      %v970 = vrot.slane %v969, 4
      %v971 = vrot.slane %v631, 5
      %v972 = vsel %vm912, %v970, %v971
      %v973 = vrot.slane %v628, 4
      %v974 = vor.u32 %v973, %v971
      %v975 = vrot.slane %v974, 4
      %v976 = vrot.slane %v636, 4
      %v977 = vrot.slane %v639, 5
      %v978 = vor.u32 %v976, %v977
      %v979 = vrot.slane %v978, 4
      %v980 = vrot.slane %v647, 5
      %v981 = vsel %vm912, %v979, %v980
      %v982 = vrot.slane %v644, 4
      %v983 = vor.u32 %v982, %v980
      %v984 = vrot.slane %v983, 4
      %v985 = vrot.slane %v652, 4
      %v986 = vrot.slane %v655, 5
      %v987 = vor.u32 %v985, %v986
      %v988 = vrot.slane %v987, 4
      %v989 = vrot.slane %v663, 5
      %v990 = vsel %vm912, %v988, %v989
      %v991 = vrot.slane %v660, 4
      %v992 = vor.u32 %v991, %v989
      %v993 = vrot.slane %v992, 4
      %v994 = vrot.slane %v668, 4
      %v995 = vrot.slane %v671, 5
      %v996 = vor.u32 %v994, %v995
      %v997 = vrot.slane %v996, 4
      %v998 = vrot.slane %v679, 5
      %v999 = vsel %vm912, %v997, %v998
      %v1000 = vrot.slane %v676, 4
      %v1001 = vor.u32 %v1000, %v998
      %v1002 = vrot.slane %v1001, 4
      %v1003 = vrot.slane %v684, 4
      %v1004 = vrot.slane %v687, 5
      %v1005 = vor.u32 %v1003, %v1004
      %v1006 = vrot.slane %v1005, 4
      %v1007 = vrot.slane %v695, 5
      %v1008 = vsel %vm912, %v1006, %v1007
      %v1009 = vrot.slane %v692, 4
      %v1010 = vor.u32 %v1009, %v1007
      %v1011 = vrot.slane %v1010, 4
      %v1012 = vrot.slane %v700, 4
      %v1013 = vrot.slane %v703, 5
      %v1014 = vor.u32 %v1012, %v1013
      %v1015 = vrot.slane %v1014, 4
      %v1016 = vrot.slane %v711, 5
      %v1017 = vsel %vm912, %v1015, %v1016
      %v1018 = vrot.slane %v708, 4
      %v1019 = vor.u32 %v1018, %v1016
      %v1020 = vrot.slane %v1019, 4
      %v1021 = vrot.slane %v716, 4
      %v1022 = vrot.slane %v719, 5
      %v1023 = vor.u32 %v1021, %v1022
      %v1024 = vrot.slane %v1023, 4
      %v1025 = vrot.slane %v727, 5
      %v1026 = vsel %vm912, %v1024, %v1025
      %v1027 = vrot.slane %v724, 4
      %v1028 = vor.u32 %v1027, %v1025
      %v1029 = vrot.slane %v1028, 4
      %v1030 = vrot.slane %v732, 4
      %v1031 = vrot.slane %v735, 5
      %v1032 = vor.u32 %v1030, %v1031
      %v1033 = vrot.slane %v1032, 4
      %v1034 = vrot.slane %v743, 5
      %v1035 = vsel %vm912, %v1033, %v1034
      %v1036 = vrot.slane %v740, 4
      %v1037 = vor.u32 %v1036, %v1034
      %v1038 = vrot.slane %v1037, 4
      %v1039 = vrot.slane %v748, 4
      %v1040 = vrot.slane %v751, 5
      %v1041 = vor.u32 %v1039, %v1040
      %v1042 = vrot.slane %v1041, 4
      %v1043 = vrot.slane %v759, 5
      %v1044 = vsel %vm912, %v1042, %v1043
      %v1045 = vrot.slane %v756, 4
      %v1046 = vor.u32 %v1045, %v1043
      %v1047 = vrot.slane %v1046, 4
      %v1048 = vrot.slane %v764, 4
      %v1049 = vrot.slane %v767, 5
      %v1050 = vor.u32 %v1048, %v1049
      %v1051 = vrot.slane %v1050, 4
      %v1052 = vrot.slane %v775, 5
      %v1053 = vsel %vm912, %v1051, %v1052
      %v1054 = vrot.slane %v772, 4
      %v1055 = vor.u32 %v1054, %v1052
      %v1056 = vrot.slane %v1055, 4
      %1089 = vst [vmem:[%s418 + $0x8] sm:$0xf] %v918
      %vm1090 = vmand %vm811, %vm910
      %v1091 = vld [vmem:[%s418 + $0x14] sm:$0xf]
      %v1092 = vsel %vm1090, %v921, %v1091
      %1093 = vst [vmem:[%s418 + $0x14] sm:$0xf] %v1092
      %1094 = vst [vmem:[%s418 + $0x20] sm:$0xf] %v927
      %v1095 = vld [vmem:[%s418 + $0x2c] sm:$0xf]
      %v1096 = vsel %vm1090, %v930, %v1095
      %1097 = vst [vmem:[%s418 + $0x2c] sm:$0xf] %v1096
      %1098 = vst [vmem:[%s418 + $0x38] sm:$0xf] %v936
      %v1099 = vld [vmem:[%s418 + $0x44] sm:$0xf]
      %v1100 = vsel %vm1090, %v939, %v1099
      %1101 = vst [vmem:[%s418 + $0x44] sm:$0xf] %v1100
      %1102 = vst [vmem:[%s418 + $0x50] sm:$0xf] %v945
      %v1103 = vld [vmem:[%s418 + $0x5c] sm:$0xf]
      %v1104 = vsel %vm1090, %v948, %v1103
      %1105 = vst [vmem:[%s418 + $0x5c] sm:$0xf] %v1104
      %1106 = vst [vmem:[%s418 + $0x68] sm:$0xf] %v954
      %v1107 = vld [vmem:[%s418 + $0x74] sm:$0xf]
      %v1108 = vsel %vm1090, %v957, %v1107
      %1109 = vst [vmem:[%s418 + $0x74] sm:$0xf] %v1108
      %1110 = vst [vmem:[%s418 + $0x80] sm:$0xf] %v963
      %v1111 = vld [vmem:[%s418 + $0x8c] sm:$0xf]
      %v1112 = vsel %vm1090, %v966, %v1111
      %1113 = vst [vmem:[%s418 + $0x8c] sm:$0xf] %v1112
      %1114 = vst [vmem:[%s418 + $0x98] sm:$0xf] %v972
      %v1115 = vld [vmem:[%s418 + $0xa4] sm:$0xf]
      %v1116 = vsel %vm1090, %v975, %v1115
      %1117 = vst [vmem:[%s418 + $0xa4] sm:$0xf] %v1116
      %1118 = vst [vmem:[%s418 + $0xb0] sm:$0xf] %v981
      %v1119 = vld [vmem:[%s418 + $0xbc] sm:$0xf]
      %v1120 = vsel %vm1090, %v984, %v1119
      %1121 = vst [vmem:[%s418 + $0xbc] sm:$0xf] %v1120
      %1122 = vst [vmem:[%s418 + $0xc8] sm:$0xf] %v990
      %v1123 = vld [vmem:[%s418 + $0xd4] sm:$0xf]
      %v1124 = vsel %vm1090, %v993, %v1123
      %1125 = vst [vmem:[%s418 + $0xd4] sm:$0xf] %v1124
      %1126 = vst [vmem:[%s418 + $0xe0] sm:$0xf] %v999
      %v1127 = vld [vmem:[%s418 + $0xec] sm:$0xf]
      %v1128 = vsel %vm1090, %v1002, %v1127
      %1129 = vst [vmem:[%s418 + $0xec] sm:$0xf] %v1128
      %1130 = vst [vmem:[%s418 + $0xf8] sm:$0xf] %v1008
      %v1131 = vld [vmem:[%s418 + $0x104] sm:$0xf]
      %v1132 = vsel %vm1090, %v1011, %v1131
      %1133 = vst [vmem:[%s418 + $0x104] sm:$0xf] %v1132
      %1134 = vst [vmem:[%s418 + $0x110] sm:$0xf] %v1017
      %v1135 = vld [vmem:[%s418 + $0x11c] sm:$0xf]
      %v1136 = vsel %vm1090, %v1020, %v1135
      %1137 = vst [vmem:[%s418 + $0x11c] sm:$0xf] %v1136
      %1138 = vst [vmem:[%s418 + $0x128] sm:$0xf] %v1026
      %v1139 = vld [vmem:[%s418 + $0x134] sm:$0xf]
      %v1140 = vsel %vm1090, %v1029, %v1139
      %1141 = vst [vmem:[%s418 + $0x134] sm:$0xf] %v1140
      %1142 = vst [vmem:[%s418 + $0x140] sm:$0xf] %v1035
      %v1143 = vld [vmem:[%s418 + $0x14c] sm:$0xf]
      %v1144 = vsel %vm1090, %v1038, %v1143
      %1145 = vst [vmem:[%s418 + $0x14c] sm:$0xf] %v1144
      %1146 = vst [vmem:[%s418 + $0x158] sm:$0xf] %v1044
      %v1147 = vld [vmem:[%s418 + $0x164] sm:$0xf]
      %v1148 = vsel %vm1090, %v1047, %v1147
      %1149 = vst [vmem:[%s418 + $0x164] sm:$0xf] %v1148
      %1150 = vst [vmem:[%s418 + $0x170] sm:$0xf] %v1053
      %v1151 = vld [vmem:[%s418 + $0x17c] sm:$0xf]
      %v1152 = vsel %vm1090, %v1056, %v1151
      %1153 = vst [vmem:[%s418 + $0x17c] sm:$0xf] %v1152
      %v1154 = vld [vmem:[#allocation2] sm:$0xff]
      %v1155 = vld [vmem:[#allocation2 + $0x8] sm:$0xf]
      %v1156 = vld [vmem:[#allocation2 + $0xc] sm:$0xff]
      %v1157 = vld [vmem:[#allocation2 + $0x14] sm:$0xf]
      %v1158 = vld [vmem:[#allocation2 + $0x18] sm:$0xff]
      %v1159 = vld [vmem:[#allocation2 + $0x20] sm:$0xf]
      %v1160 = vld [vmem:[#allocation2 + $0x24] sm:$0xff]
      %v1161 = vld [vmem:[#allocation2 + $0x2c] sm:$0xf]
      %v1162 = vld [vmem:[#allocation2 + $0x30] sm:$0xff]
      %v1163 = vld [vmem:[#allocation2 + $0x38] sm:$0xf]
      %v1164 = vld [vmem:[#allocation2 + $0x3c] sm:$0xff]
      %v1165 = vld [vmem:[#allocation2 + $0x44] sm:$0xf]
      %v1166 = vld [vmem:[#allocation2 + $0x48] sm:$0xff]
      %v1167 = vld [vmem:[#allocation2 + $0x50] sm:$0xf]
      %v1168 = vld [vmem:[#allocation2 + $0x54] sm:$0xff]
      %v1169 = vld [vmem:[#allocation2 + $0x5c] sm:$0xf]
      %v1170 = vld [vmem:[#allocation2 + $0x60] sm:$0xff]
      %v1171 = vld [vmem:[#allocation2 + $0x68] sm:$0xf]
      %v1172 = vld [vmem:[#allocation2 + $0x6c] sm:$0xff]
      %v1173 = vld [vmem:[#allocation2 + $0x74] sm:$0xf]
      %v1174 = vld [vmem:[#allocation2 + $0x78] sm:$0xff]
      %v1175 = vld [vmem:[#allocation2 + $0x80] sm:$0xf]
      %v1176 = vld [vmem:[#allocation2 + $0x84] sm:$0xff]
      %v1177 = vld [vmem:[#allocation2 + $0x8c] sm:$0xf]
      %v1178 = vld [vmem:[#allocation2 + $0x90] sm:$0xff]
      %v1179 = vld [vmem:[#allocation2 + $0x98] sm:$0xf]
      %v1180 = vld [vmem:[#allocation2 + $0x9c] sm:$0xff]
      %v1181 = vld [vmem:[#allocation2 + $0xa4] sm:$0xf]
      %v1182 = vld [vmem:[#allocation2 + $0xa8] sm:$0xff]
      %v1183 = vld [vmem:[#allocation2 + $0xb0] sm:$0xf]
      %v1184 = vld [vmem:[#allocation2 + $0xb4] sm:$0xff]
      %v1185 = vld [vmem:[#allocation2 + $0xbc] sm:$0xf]
      %v1186 = vld [vmem:[#allocation2 + $0xc0] sm:$0xff]
      %v1187 = vld [vmem:[#allocation2 + $0xc8] sm:$0xf]
      %v1188 = vld [vmem:[#allocation2 + $0xcc] sm:$0xff]
      %v1189 = vld [vmem:[#allocation2 + $0xd4] sm:$0xf]
      %v1190 = vld [vmem:[#allocation2 + $0xd8] sm:$0xff]
      %v1191 = vld [vmem:[#allocation2 + $0xe0] sm:$0xf]
      %v1192 = vld [vmem:[#allocation2 + $0xe4] sm:$0xff]
      %v1193 = vld [vmem:[#allocation2 + $0xec] sm:$0xf]
      %v1194 = vld [vmem:[#allocation2 + $0xf0] sm:$0xff]
      %v1195 = vld [vmem:[#allocation2 + $0xf8] sm:$0xf]
      %v1196 = vld [vmem:[#allocation2 + $0xfc] sm:$0xff]
      %v1197 = vld [vmem:[#allocation2 + $0x104] sm:$0xf]
      %v1198 = vld [vmem:[#allocation2 + $0x108] sm:$0xff]
      %v1199 = vld [vmem:[#allocation2 + $0x110] sm:$0xf]
      %v1200 = vld [vmem:[#allocation2 + $0x114] sm:$0xff]
      %v1201 = vld [vmem:[#allocation2 + $0x11c] sm:$0xf]
      %v1202 = vld [vmem:[#allocation2 + $0x120] sm:$0xff]
      %v1203 = vld [vmem:[#allocation2 + $0x128] sm:$0xf]
      %v1204 = vld [vmem:[#allocation2 + $0x12c] sm:$0xff]
      %v1205 = vld [vmem:[#allocation2 + $0x134] sm:$0xf]
      %v1206 = vld [vmem:[#allocation2 + $0x138] sm:$0xff]
      %v1207 = vld [vmem:[#allocation2 + $0x140] sm:$0xf]
      %v1208 = vld [vmem:[#allocation2 + $0x144] sm:$0xff]
      %v1209 = vld [vmem:[#allocation2 + $0x14c] sm:$0xf]
      %v1210 = vld [vmem:[#allocation2 + $0x150] sm:$0xff]
      %v1211 = vld [vmem:[#allocation2 + $0x158] sm:$0xf]
      %v1212 = vld [vmem:[#allocation2 + $0x15c] sm:$0xff]
      %v1213 = vld [vmem:[#allocation2 + $0x164] sm:$0xf]
      %v1214 = vld [vmem:[#allocation2 + $0x168] sm:$0xff]
      %v1215 = vld [vmem:[#allocation2 + $0x170] sm:$0xf]
      %v1216 = vld [vmem:[#allocation2 + $0x174] sm:$0xff]
      %v1217 = vld [vmem:[#allocation2 + $0x17c] sm:$0xf]
      %v1218 = vld [vmem:[%s2] sm:$0xf]
      %v1219 = vld [vmem:[%s2 + $0x4] sm:$0xf]
      %v1220 = vld [vmem:[%s2 + $0x8] sm:$0xf]
      %v1221 = vld [vmem:[%s2 + $0xc] sm:$0xf]
      %v1222 = vld [vmem:[%s2 + $0x10] sm:$0xf]
      %v1223 = vld [vmem:[%s2 + $0x14] sm:$0xf]
      %v1224 = vld [vmem:[%s2 + $0x18] sm:$0xf]
      %v1225 = vld [vmem:[%s2 + $0x1c] sm:$0xf]
      %v1226 = vld [vmem:[%s2 + $0x20] sm:$0xf]
      %v1227 = vld [vmem:[%s2 + $0x24] sm:$0xf]
      %v1228 = vld [vmem:[%s2 + $0x28] sm:$0xf]
      %v1229 = vld [vmem:[%s2 + $0x2c] sm:$0xf]
      %v1230 = vld [vmem:[%s2 + $0x30] sm:$0xf]
      %v1231 = vld [vmem:[%s2 + $0x34] sm:$0xf]
      %v1232 = vld [vmem:[%s2 + $0x38] sm:$0xf]
      %v1233 = vld [vmem:[%s2 + $0x3c] sm:$0xf]
      %v1234 = vld [vmem:[%s2 + $0x40] sm:$0xf]
      %v1235 = vld [vmem:[%s2 + $0x44] sm:$0xf]
      %v1236 = vld [vmem:[%s2 + $0x48] sm:$0xf]
      %v1237 = vld [vmem:[%s2 + $0x4c] sm:$0xf]
      %v1238 = vld [vmem:[%s2 + $0x50] sm:$0xf]
      %v1239 = vld [vmem:[%s2 + $0x54] sm:$0xf]
      %v1240 = vld [vmem:[%s2 + $0x58] sm:$0xf]
      %v1241 = vld [vmem:[%s2 + $0x5c] sm:$0xf]
      %v1242 = vld [vmem:[%s2 + $0x60] sm:$0xf]
      %v1243 = vld [vmem:[%s2 + $0x64] sm:$0xf]
      %v1244 = vld [vmem:[%s2 + $0x68] sm:$0xf]
      %v1245 = vld [vmem:[%s2 + $0x6c] sm:$0xf]
      %v1246 = vld [vmem:[%s2 + $0x70] sm:$0xf]
      %v1247 = vld [vmem:[%s2 + $0x74] sm:$0xf]
      %v1248 = vld [vmem:[%s2 + $0x78] sm:$0xf]
      %v1249 = vld [vmem:[%s2 + $0x7c] sm:$0xf]
      %v1250 = vld [vmem:[%s2 + $0x80] sm:$0xf]
      %v1251 = vld [vmem:[%s2 + $0x84] sm:$0xf]
      %v1252 = vld [vmem:[%s2 + $0x88] sm:$0xf]
      %v1253 = vld [vmem:[%s2 + $0x8c] sm:$0xf]
      %v1254 = vld [vmem:[%s2 + $0x90] sm:$0xf]
      %v1255 = vld [vmem:[%s2 + $0x94] sm:$0xf]
      %v1256 = vld [vmem:[%s2 + $0x98] sm:$0xf]
      %v1257 = vld [vmem:[%s2 + $0x9c] sm:$0xf]
      %v1258 = vld [vmem:[%s2 + $0xa0] sm:$0xf]
      %v1259 = vld [vmem:[%s2 + $0xa4] sm:$0xf]
      %v1260 = vld [vmem:[%s2 + $0xa8] sm:$0xf]
      %v1261 = vld [vmem:[%s2 + $0xac] sm:$0xf]
      %v1262 = vld [vmem:[%s2 + $0xb0] sm:$0xf]
      %v1263 = vld [vmem:[%s2 + $0xb4] sm:$0xf]
      %v1264 = vld [vmem:[%s2 + $0xb8] sm:$0xf]
      %v1265 = vld [vmem:[%s2 + $0xbc] sm:$0xf]
      %v1266 = vld [vmem:[%s418] sm:$0xff]
      %v1267 = vld [vmem:[%s418 + $0x8] sm:$0xf]
      %v1268 = vld [vmem:[%s418 + $0xc] sm:$0xff]
      %v1269 = vld [vmem:[%s418 + $0x14] sm:$0xf]
      %v1270 = vld [vmem:[%s418 + $0x18] sm:$0xff]
      %v1271 = vld [vmem:[%s418 + $0x20] sm:$0xf]
      %v1272 = vld [vmem:[%s418 + $0x24] sm:$0xff]
      %v1273 = vld [vmem:[%s418 + $0x2c] sm:$0xf]
      %v1274 = vld [vmem:[%s418 + $0x30] sm:$0xff]
      %v1275 = vld [vmem:[%s418 + $0x38] sm:$0xf]
      %v1276 = vld [vmem:[%s418 + $0x3c] sm:$0xff]
      %v1277 = vld [vmem:[%s418 + $0x44] sm:$0xf]
      %v1278 = vld [vmem:[%s418 + $0x48] sm:$0xff]
      %v1279 = vld [vmem:[%s418 + $0x50] sm:$0xf]
      %v1280 = vld [vmem:[%s418 + $0x54] sm:$0xff]
      %v1281 = vld [vmem:[%s418 + $0x5c] sm:$0xf]
      %v1282 = vld [vmem:[%s418 + $0x60] sm:$0xff]
      %v1283 = vld [vmem:[%s418 + $0x68] sm:$0xf]
      %v1284 = vld [vmem:[%s418 + $0x6c] sm:$0xff]
      %v1285 = vld [vmem:[%s418 + $0x74] sm:$0xf]
      %v1286 = vld [vmem:[%s418 + $0x78] sm:$0xff]
      %v1287 = vld [vmem:[%s418 + $0x80] sm:$0xf]
      %v1288 = vld [vmem:[%s418 + $0x84] sm:$0xff]
      %v1289 = vld [vmem:[%s418 + $0x8c] sm:$0xf]
      %v1290 = vld [vmem:[%s418 + $0x90] sm:$0xff]
      %v1291 = vld [vmem:[%s418 + $0x98] sm:$0xf]
      %v1292 = vld [vmem:[%s418 + $0x9c] sm:$0xff]
      %v1293 = vld [vmem:[%s418 + $0xa4] sm:$0xf]
      %v1294 = vld [vmem:[%s418 + $0xa8] sm:$0xff]
      %v1295 = vld [vmem:[%s418 + $0xb0] sm:$0xf]
      %v1296 = vld [vmem:[%s418 + $0xb4] sm:$0xff]
      %v1297 = vld [vmem:[%s418 + $0xbc] sm:$0xf]
      %v1298 = vld [vmem:[%s418 + $0xc0] sm:$0xff]
      %v1299 = vld [vmem:[%s418 + $0xc8] sm:$0xf]
      %v1300 = vld [vmem:[%s418 + $0xcc] sm:$0xff]
      %v1301 = vld [vmem:[%s418 + $0xd4] sm:$0xf]
      %v1302 = vld [vmem:[%s418 + $0xd8] sm:$0xff]
      %v1303 = vld [vmem:[%s418 + $0xe0] sm:$0xf]
      %v1304 = vld [vmem:[%s418 + $0xe4] sm:$0xff]
      %v1305 = vld [vmem:[%s418 + $0xec] sm:$0xf]
      %v1306 = vld [vmem:[%s418 + $0xf0] sm:$0xff]
      %v1307 = vld [vmem:[%s418 + $0xf8] sm:$0xf]
      %v1308 = vld [vmem:[%s418 + $0xfc] sm:$0xff]
      %v1309 = vld [vmem:[%s418 + $0x104] sm:$0xf]
      %v1310 = vld [vmem:[%s418 + $0x108] sm:$0xff]
      %v1311 = vld [vmem:[%s418 + $0x110] sm:$0xf]
      %v1312 = vld [vmem:[%s418 + $0x114] sm:$0xff]
      %v1313 = vld [vmem:[%s418 + $0x11c] sm:$0xf]
      %v1314 = vld [vmem:[%s418 + $0x120] sm:$0xff]
      %v1315 = vld [vmem:[%s418 + $0x128] sm:$0xf]
      %v1316 = vld [vmem:[%s418 + $0x12c] sm:$0xff]
      %v1317 = vld [vmem:[%s418 + $0x134] sm:$0xf]
      %v1318 = vld [vmem:[%s418 + $0x138] sm:$0xff]
      %v1319 = vld [vmem:[%s418 + $0x140] sm:$0xf]
      %v1320 = vld [vmem:[%s418 + $0x144] sm:$0xff]
      %v1321 = vld [vmem:[%s418 + $0x14c] sm:$0xf]
      %v1322 = vld [vmem:[%s418 + $0x150] sm:$0xff]
      %v1323 = vld [vmem:[%s418 + $0x158] sm:$0xf]
      %v1324 = vld [vmem:[%s418 + $0x15c] sm:$0xff]
      %v1325 = vld [vmem:[%s418 + $0x164] sm:$0xf]
      %v1326 = vld [vmem:[%s418 + $0x168] sm:$0xff]
      %v1327 = vld [vmem:[%s418 + $0x170] sm:$0xf]
      %v1328 = vld [vmem:[%s418 + $0x174] sm:$0xff]
      %v1329 = vld [vmem:[%s418 + $0x17c] sm:$0xf]
      %s1330 = scalar_lea.vmem %s2, 192
      %v1331 = vld [vmem:[%s1330] sm:$0xf]
      %v1332 = vld [vmem:[%s1330 + $0x4] sm:$0xf]
      %v1333 = vld [vmem:[%s1330 + $0x8] sm:$0xf]
      %v1334 = vld [vmem:[%s1330 + $0xc] sm:$0xf]
      %v1335 = vld [vmem:[%s1330 + $0x10] sm:$0xf]
      %v1336 = vld [vmem:[%s1330 + $0x14] sm:$0xf]
      %v1337 = vld [vmem:[%s1330 + $0x18] sm:$0xf]
      %v1338 = vld [vmem:[%s1330 + $0x1c] sm:$0xf]
      %v1339 = vld [vmem:[%s1330 + $0x20] sm:$0xf]
      %v1340 = vld [vmem:[%s1330 + $0x24] sm:$0xf]
      %v1341 = vld [vmem:[%s1330 + $0x28] sm:$0xf]
      %v1342 = vld [vmem:[%s1330 + $0x2c] sm:$0xf]
      %v1343 = vld [vmem:[%s1330 + $0x30] sm:$0xf]
      %v1344 = vld [vmem:[%s1330 + $0x34] sm:$0xf]
      %v1345 = vld [vmem:[%s1330 + $0x38] sm:$0xf]
      %v1346 = vld [vmem:[%s1330 + $0x3c] sm:$0xf]
      %v1347 = vld [vmem:[%s1330 + $0x40] sm:$0xf]
      %v1348 = vld [vmem:[%s1330 + $0x44] sm:$0xf]
      %v1349 = vld [vmem:[%s1330 + $0x48] sm:$0xf]
      %v1350 = vld [vmem:[%s1330 + $0x4c] sm:$0xf]
      %v1351 = vld [vmem:[%s1330 + $0x50] sm:$0xf]
      %v1352 = vld [vmem:[%s1330 + $0x54] sm:$0xf]
      %v1353 = vld [vmem:[%s1330 + $0x58] sm:$0xf]
      %v1354 = vld [vmem:[%s1330 + $0x5c] sm:$0xf]
      %v1355 = vld [vmem:[%s1330 + $0x60] sm:$0xf]
      %v1356 = vld [vmem:[%s1330 + $0x64] sm:$0xf]
      %v1357 = vld [vmem:[%s1330 + $0x68] sm:$0xf]
      %v1358 = vld [vmem:[%s1330 + $0x6c] sm:$0xf]
      %v1359 = vld [vmem:[%s1330 + $0x70] sm:$0xf]
      %v1360 = vld [vmem:[%s1330 + $0x74] sm:$0xf]
      %v1361 = vld [vmem:[%s1330 + $0x78] sm:$0xf]
      %v1362 = vld [vmem:[%s1330 + $0x7c] sm:$0xf]
      %v1363 = vld [vmem:[%s1330 + $0x80] sm:$0xf]
      %v1364 = vld [vmem:[%s1330 + $0x84] sm:$0xf]
      %v1365 = vld [vmem:[%s1330 + $0x88] sm:$0xf]
      %v1366 = vld [vmem:[%s1330 + $0x8c] sm:$0xf]
      %v1367 = vld [vmem:[%s1330 + $0x90] sm:$0xf]
      %v1368 = vld [vmem:[%s1330 + $0x94] sm:$0xf]
      %v1369 = vld [vmem:[%s1330 + $0x98] sm:$0xf]
      %v1370 = vld [vmem:[%s1330 + $0x9c] sm:$0xf]
      %v1371 = vld [vmem:[%s1330 + $0xa0] sm:$0xf]
      %v1372 = vld [vmem:[%s1330 + $0xa4] sm:$0xf]
      %v1373 = vld [vmem:[%s1330 + $0xa8] sm:$0xf]
      %v1374 = vld [vmem:[%s1330 + $0xac] sm:$0xf]
      %v1375 = vld [vmem:[%s1330 + $0xb0] sm:$0xf]
      %v1376 = vld [vmem:[%s1330 + $0xb4] sm:$0xf]
      %v1377 = vld [vmem:[%s1330 + $0xb8] sm:$0xf]
      %v1378 = vld [vmem:[%s1330 + $0xbc] sm:$0xf]
      %v1443 = vunpack.c.l.b16 %v1266
      %v1444 = vunpack.c.h.b16 %v1266
      %v1445 = vunpack.c.l.b16 %v1267
      %v1446 = vunpack.c.l.b16 %v1268
      %v1447 = vunpack.c.h.b16 %v1268
      %v1448 = vunpack.c.l.b16 %v1269
      %v1449 = vunpack.c.l.b16 %v1270
      %v1450 = vunpack.c.h.b16 %v1270
      %v1451 = vunpack.c.l.b16 %v1271
      %v1452 = vunpack.c.l.b16 %v1272
      %v1453 = vunpack.c.h.b16 %v1272
      %v1454 = vunpack.c.l.b16 %v1273
      %v1455 = vunpack.c.l.b16 %v1274
      %v1456 = vunpack.c.h.b16 %v1274
      %v1457 = vunpack.c.l.b16 %v1275
      %v1458 = vunpack.c.l.b16 %v1276
      %v1459 = vunpack.c.h.b16 %v1276
      %v1460 = vunpack.c.l.b16 %v1277
      %v1461 = vunpack.c.l.b16 %v1278
      %v1462 = vunpack.c.h.b16 %v1278
      %v1463 = vunpack.c.l.b16 %v1279
      %v1464 = vunpack.c.l.b16 %v1280
      %v1465 = vunpack.c.h.b16 %v1280
      %v1466 = vunpack.c.l.b16 %v1281
      %v1467 = vunpack.c.l.b16 %v1282
      %v1468 = vunpack.c.h.b16 %v1282
      %v1469 = vunpack.c.l.b16 %v1283
      %v1470 = vunpack.c.l.b16 %v1284
      %v1471 = vunpack.c.h.b16 %v1284
      %v1472 = vunpack.c.l.b16 %v1285
      %v1473 = vunpack.c.l.b16 %v1286
      %v1474 = vunpack.c.h.b16 %v1286
      %v1475 = vunpack.c.l.b16 %v1287
      %v1476 = vunpack.c.l.b16 %v1288
      %v1477 = vunpack.c.h.b16 %v1288
      %v1478 = vunpack.c.l.b16 %v1289
      %v1479 = vunpack.c.l.b16 %v1290
      %v1480 = vunpack.c.h.b16 %v1290
      %v1481 = vunpack.c.l.b16 %v1291
      %v1482 = vunpack.c.l.b16 %v1292
      %v1483 = vunpack.c.h.b16 %v1292
      %v1484 = vunpack.c.l.b16 %v1293
      %v1485 = vunpack.c.l.b16 %v1294
      %v1486 = vunpack.c.h.b16 %v1294
      %v1487 = vunpack.c.l.b16 %v1295
      %v1488 = vunpack.c.l.b16 %v1296
      %v1489 = vunpack.c.h.b16 %v1296
      %v1490 = vunpack.c.l.b16 %v1297
      %v1491 = vunpack.c.l.b16 %v1298
      %v1492 = vunpack.c.h.b16 %v1298
      %v1493 = vunpack.c.l.b16 %v1299
      %v1494 = vunpack.c.l.b16 %v1300
      %v1495 = vunpack.c.h.b16 %v1300
      %v1496 = vunpack.c.l.b16 %v1301
      %v1497 = vunpack.c.l.b16 %v1302
      %v1498 = vunpack.c.h.b16 %v1302
      %v1499 = vunpack.c.l.b16 %v1303
      %v1500 = vunpack.c.l.b16 %v1304
      %v1501 = vunpack.c.h.b16 %v1304
      %v1502 = vunpack.c.l.b16 %v1305
      %v1503 = vunpack.c.l.b16 %v1306
      %v1504 = vunpack.c.h.b16 %v1306
      %v1505 = vunpack.c.l.b16 %v1307
      %v1506 = vunpack.c.l.b16 %v1308
      %v1507 = vunpack.c.h.b16 %v1308
      %v1508 = vunpack.c.l.b16 %v1309
      %v1509 = vunpack.c.l.b16 %v1310
      %v1510 = vunpack.c.h.b16 %v1310
      %v1511 = vunpack.c.l.b16 %v1311
      %v1512 = vunpack.c.l.b16 %v1312
      %v1513 = vunpack.c.h.b16 %v1312
      %v1514 = vunpack.c.l.b16 %v1313
      %v1515 = vunpack.c.l.b16 %v1314
      %v1516 = vunpack.c.h.b16 %v1314
      %v1517 = vunpack.c.l.b16 %v1315
      %v1518 = vunpack.c.l.b16 %v1316
      %v1519 = vunpack.c.h.b16 %v1316
      %v1520 = vunpack.c.l.b16 %v1317
      %v1521 = vunpack.c.l.b16 %v1318
      %v1522 = vunpack.c.h.b16 %v1318
      %v1523 = vunpack.c.l.b16 %v1319
      %v1524 = vunpack.c.l.b16 %v1320
      %v1525 = vunpack.c.h.b16 %v1320
      %v1526 = vunpack.c.l.b16 %v1321
      %v1527 = vunpack.c.l.b16 %v1322
      %v1528 = vunpack.c.h.b16 %v1322
      %v1529 = vunpack.c.l.b16 %v1323
      %v1530 = vunpack.c.l.b16 %v1324
      %v1531 = vunpack.c.h.b16 %v1324
      %v1532 = vunpack.c.l.b16 %v1325
      %v1533 = vunpack.c.l.b16 %v1326
      %v1534 = vunpack.c.h.b16 %v1326
      %v1535 = vunpack.c.l.b16 %v1327
      %v1536 = vunpack.c.l.b16 %v1328
      %v1537 = vunpack.c.h.b16 %v1328
      %v1538 = vunpack.c.l.b16 %v1329
      %v1539 = vpack.c.b16 %v1446, %v1443
      %v1540 = vpack.c.b16 %v1447, %v1444
      %v1541 = vpack.c.b16 %v1448, %v1445
      %v1542 = vpack.c.b16 %v1452, %v1449
      %v1543 = vpack.c.b16 %v1453, %v1450
      %v1544 = vpack.c.b16 %v1454, %v1451
      %v1545 = vpack.c.b16 %v1458, %v1455
      %v1546 = vpack.c.b16 %v1459, %v1456
      %v1547 = vpack.c.b16 %v1460, %v1457
      %v1548 = vpack.c.b16 %v1464, %v1461
      %v1549 = vpack.c.b16 %v1465, %v1462
      %v1550 = vpack.c.b16 %v1466, %v1463
      %v1551 = vpack.c.b16 %v1470, %v1467
      %v1552 = vpack.c.b16 %v1471, %v1468
      %v1553 = vpack.c.b16 %v1472, %v1469
      %v1554 = vpack.c.b16 %v1476, %v1473
      %v1555 = vpack.c.b16 %v1477, %v1474
      %v1556 = vpack.c.b16 %v1478, %v1475
      %v1557 = vpack.c.b16 %v1482, %v1479
      %v1558 = vpack.c.b16 %v1483, %v1480
      %v1559 = vpack.c.b16 %v1484, %v1481
      %v1560 = vpack.c.b16 %v1488, %v1485
      %v1561 = vpack.c.b16 %v1489, %v1486
      %v1562 = vpack.c.b16 %v1490, %v1487
      %v1563 = vpack.c.b16 %v1494, %v1491
      %v1564 = vpack.c.b16 %v1495, %v1492
      %v1565 = vpack.c.b16 %v1496, %v1493
      %v1566 = vpack.c.b16 %v1500, %v1497
      %v1567 = vpack.c.b16 %v1501, %v1498
      %v1568 = vpack.c.b16 %v1502, %v1499
      %v1569 = vpack.c.b16 %v1506, %v1503
      %v1570 = vpack.c.b16 %v1507, %v1504
      %v1571 = vpack.c.b16 %v1508, %v1505
      %v1572 = vpack.c.b16 %v1512, %v1509
      %v1573 = vpack.c.b16 %v1513, %v1510
      %v1574 = vpack.c.b16 %v1514, %v1511
      %v1575 = vpack.c.b16 %v1518, %v1515
      %v1576 = vpack.c.b16 %v1519, %v1516
      %v1577 = vpack.c.b16 %v1520, %v1517
      %v1578 = vpack.c.b16 %v1524, %v1521
      %v1579 = vpack.c.b16 %v1525, %v1522
      %v1580 = vpack.c.b16 %v1526, %v1523
      %v1581 = vpack.c.b16 %v1530, %v1527
      %v1582 = vpack.c.b16 %v1531, %v1528
      %v1583 = vpack.c.b16 %v1532, %v1529
      %v1584 = vpack.c.b16 %v1536, %v1533
      %v1585 = vpack.c.b16 %v1537, %v1534
      %v1586 = vpack.c.b16 %v1538, %v1535
      %v1683 = vunpack.c.l.b16 %v1331
      %v1684 = vunpack.c.l.b16 %v1332
      %v1685 = vunpack.c.l.b16 %v1333
      %v1686 = vunpack.c.l.b16 %v1334
      %v1687 = vunpack.c.l.b16 %v1335
      %v1688 = vunpack.c.l.b16 %v1336
      %v1689 = vunpack.c.l.b16 %v1337
      %v1690 = vunpack.c.l.b16 %v1338
      %v1691 = vunpack.c.l.b16 %v1339
      %v1692 = vunpack.c.l.b16 %v1340
      %v1693 = vunpack.c.l.b16 %v1341
      %v1694 = vunpack.c.l.b16 %v1342
      %v1695 = vunpack.c.l.b16 %v1343
      %v1696 = vunpack.c.l.b16 %v1344
      %v1697 = vunpack.c.l.b16 %v1345
      %v1698 = vunpack.c.l.b16 %v1346
      %v1699 = vunpack.c.l.b16 %v1347
      %v1700 = vunpack.c.l.b16 %v1348
      %v1701 = vunpack.c.l.b16 %v1349
      %v1702 = vunpack.c.l.b16 %v1350
      %v1703 = vunpack.c.l.b16 %v1351
      %v1704 = vunpack.c.l.b16 %v1352
      %v1705 = vunpack.c.l.b16 %v1353
      %v1706 = vunpack.c.l.b16 %v1354
      %v1707 = vunpack.c.l.b16 %v1355
      %v1708 = vunpack.c.l.b16 %v1356
      %v1709 = vunpack.c.l.b16 %v1357
      %v1710 = vunpack.c.l.b16 %v1358
      %v1711 = vunpack.c.l.b16 %v1359
      %v1712 = vunpack.c.l.b16 %v1360
      %v1713 = vunpack.c.l.b16 %v1361
      %v1714 = vunpack.c.l.b16 %v1362
      %v1715 = vunpack.c.l.b16 %v1363
      %v1716 = vunpack.c.l.b16 %v1364
      %v1717 = vunpack.c.l.b16 %v1365
      %v1718 = vunpack.c.l.b16 %v1366
      %v1719 = vunpack.c.l.b16 %v1367
      %v1720 = vunpack.c.l.b16 %v1368
      %v1721 = vunpack.c.l.b16 %v1369
      %v1722 = vunpack.c.l.b16 %v1370
      %v1723 = vunpack.c.l.b16 %v1371
      %v1724 = vunpack.c.l.b16 %v1372
      %v1725 = vunpack.c.l.b16 %v1373
      %v1726 = vunpack.c.l.b16 %v1374
      %v1727 = vunpack.c.l.b16 %v1375
      %v1728 = vunpack.c.l.b16 %v1376
      %v1729 = vunpack.c.l.b16 %v1377
      %v1730 = vunpack.c.l.b16 %v1378
      %v1731 = vpack.c.b16 %v1684, %v1683
      %v1732 = vpack.c.b16 %v1686, %v1685
      %v1733 = vpack.c.b16 %v1688, %v1687
      %v1734 = vpack.c.b16 %v1690, %v1689
      %v1735 = vpack.c.b16 %v1692, %v1691
      %v1736 = vpack.c.b16 %v1694, %v1693
      %v1737 = vpack.c.b16 %v1696, %v1695
      %v1738 = vpack.c.b16 %v1698, %v1697
      %v1739 = vpack.c.b16 %v1700, %v1699
      %v1740 = vpack.c.b16 %v1702, %v1701
      %v1741 = vpack.c.b16 %v1704, %v1703
      %v1742 = vpack.c.b16 %v1706, %v1705
      %v1743 = vpack.c.b16 %v1708, %v1707
      %v1744 = vpack.c.b16 %v1710, %v1709
      %v1745 = vpack.c.b16 %v1712, %v1711
      %v1746 = vpack.c.b16 %v1714, %v1713
      %v1747 = vpack.c.b16 %v1716, %v1715
      %v1748 = vpack.c.b16 %v1718, %v1717
      %v1749 = vpack.c.b16 %v1720, %v1719
      %v1750 = vpack.c.b16 %v1722, %v1721
      %v1751 = vpack.c.b16 %v1724, %v1723
      %v1752 = vpack.c.b16 %v1726, %v1725
      %v1753 = vpack.c.b16 %v1728, %v1727
      %v1754 = vpack.c.b16 %v1730, %v1729
      %1779 = vmatpush.bf16.msra.mxu0 %v1738
      %1780 = vmatpush.bf16.msra.mxu0 %v1737
      %1781 = vmatpush.bf16.msra.mxu0 %v1736
      %1782 = vmatpush.bf16.msra.mxu0 %v1735
      %1783 = vmatpush.bf16.msra.mxu0 %v1734
      %1784 = vmatpush.bf16.msra.mxu0 %v1733
      %1785 = vmatpush.bf16.msra.mxu0 %v1732
      %1786 = vmatpush.bf16.msra.mxu0 %v1731
      %1787 = vmatmul.bf16.gmra.mxu0 %v1539
      %v1788 = vpop.f32.mrf.mxu0
      %v1789 = vadd.f32 0.0, %v1788
      %v1790 = vpop.f32.mrf.mxu0
      %v1791 = vadd.f32 0.0, %v1790
      %1792 = vmatmul.bf16.gmra.mxu0 %v1542
      %v1793 = vpop.f32.mrf.mxu0
      %v1794 = vadd.f32 0.0, %v1793
      %v1795 = vpop.f32.mrf.mxu0
      %v1796 = vadd.f32 0.0, %v1795
      %1797 = vmatmul.bf16.gmra.mxu0 %v1545
      %v1798 = vpop.f32.mrf.mxu0
      %v1799 = vadd.f32 0.0, %v1798
      %v1800 = vpop.f32.mrf.mxu0
      %v1801 = vadd.f32 0.0, %v1800
      %1802 = vmatmul.bf16.gmra.mxu0 %v1548
      %v1803 = vpop.f32.mrf.mxu0
      %v1804 = vadd.f32 0.0, %v1803
      %v1805 = vpop.f32.mrf.mxu0
      %v1806 = vadd.f32 0.0, %v1805
      %1807 = vmatmul.bf16.gmra.mxu0 %v1551
      %v1808 = vpop.f32.mrf.mxu0
      %v1809 = vadd.f32 0.0, %v1808
      %v1810 = vpop.f32.mrf.mxu0
      %v1811 = vadd.f32 0.0, %v1810
      %1812 = vmatmul.bf16.gmra.mxu0 %v1554
      %v1813 = vpop.f32.mrf.mxu0
      %v1814 = vadd.f32 0.0, %v1813
      %v1815 = vpop.f32.mrf.mxu0
      %v1816 = vadd.f32 0.0, %v1815
      %1817 = vmatmul.bf16.gmra.mxu0 %v1557
      %v1818 = vpop.f32.mrf.mxu0
      %v1819 = vadd.f32 0.0, %v1818
      %v1820 = vpop.f32.mrf.mxu0
      %v1821 = vadd.f32 0.0, %v1820
      %1822 = vmatmul.bf16.gmra.mxu0 %v1560
      %v1823 = vpop.f32.mrf.mxu0
      %v1824 = vadd.f32 0.0, %v1823
      %v1825 = vpop.f32.mrf.mxu0
      %v1826 = vadd.f32 0.0, %v1825
      %1827 = vmatmul.bf16.gmra.mxu0 %v1563
      %v1828 = vpop.f32.mrf.mxu0
      %v1829 = vadd.f32 0.0, %v1828
      %v1830 = vpop.f32.mrf.mxu0
      %v1831 = vadd.f32 0.0, %v1830
      %1832 = vmatmul.bf16.gmra.mxu0 %v1566
      %v1833 = vpop.f32.mrf.mxu0
      %v1834 = vadd.f32 0.0, %v1833
      %v1835 = vpop.f32.mrf.mxu0
      %v1836 = vadd.f32 0.0, %v1835
      %1837 = vmatmul.bf16.gmra.mxu0 %v1569
      %v1838 = vpop.f32.mrf.mxu0
      %v1839 = vadd.f32 0.0, %v1838
      %v1840 = vpop.f32.mrf.mxu0
      %v1841 = vadd.f32 0.0, %v1840
      %1842 = vmatmul.bf16.gmra.mxu0 %v1572
      %v1843 = vpop.f32.mrf.mxu0
      %v1844 = vadd.f32 0.0, %v1843
      %v1845 = vpop.f32.mrf.mxu0
      %v1846 = vadd.f32 0.0, %v1845
      %1847 = vmatmul.bf16.gmra.mxu0 %v1575
      %v1848 = vpop.f32.mrf.mxu0
      %v1849 = vadd.f32 0.0, %v1848
      %v1850 = vpop.f32.mrf.mxu0
      %v1851 = vadd.f32 0.0, %v1850
      %1852 = vmatmul.bf16.gmra.mxu0 %v1578
      %v1853 = vpop.f32.mrf.mxu0
      %v1854 = vadd.f32 0.0, %v1853
      %v1855 = vpop.f32.mrf.mxu0
      %v1856 = vadd.f32 0.0, %v1855
      %1857 = vmatmul.bf16.gmra.mxu0 %v1581
      %v1858 = vpop.f32.mrf.mxu0
      %v1859 = vadd.f32 0.0, %v1858
      %v1860 = vpop.f32.mrf.mxu0
      %v1861 = vadd.f32 0.0, %v1860
      %1862 = vmatmul.bf16.gmra.mxu0 %v1584
      %v1863 = vpop.f32.mrf.mxu0
      %v1864 = vadd.f32 0.0, %v1863
      %v1865 = vpop.f32.mrf.mxu0
      %v1866 = vadd.f32 0.0, %v1865
      %1867 = vdwg.mxu0
      %1868 = vmatpush.bf16.msra.mxu0 %v1746
      %1869 = vmatpush.bf16.msra.mxu0 %v1745
      %1870 = vmatpush.bf16.msra.mxu0 %v1744
      %1871 = vmatpush.bf16.msra.mxu0 %v1743
      %1872 = vmatpush.bf16.msra.mxu0 %v1742
      %1873 = vmatpush.bf16.msra.mxu0 %v1741
      %1874 = vmatpush.bf16.msra.mxu0 %v1740
      %1875 = vmatpush.bf16.msra.mxu0 %v1739
      %1876 = vmatmul.bf16.gmra.mxu0 %v1540
      %v1877 = vpop.f32.mrf.mxu0
      %v1878 = vadd.f32 %v1789, %v1877
      %v1879 = vpop.f32.mrf.mxu0
      %v1880 = vadd.f32 %v1791, %v1879
      %1881 = vmatmul.bf16.gmra.mxu0 %v1543
      %v1882 = vpop.f32.mrf.mxu0
      %v1883 = vadd.f32 %v1794, %v1882
      %v1884 = vpop.f32.mrf.mxu0
      %v1885 = vadd.f32 %v1796, %v1884
      %1886 = vmatmul.bf16.gmra.mxu0 %v1546
      %v1887 = vpop.f32.mrf.mxu0
      %v1888 = vadd.f32 %v1799, %v1887
      %v1889 = vpop.f32.mrf.mxu0
      %v1890 = vadd.f32 %v1801, %v1889
      %1891 = vmatmul.bf16.gmra.mxu0 %v1549
      %v1892 = vpop.f32.mrf.mxu0
      %v1893 = vadd.f32 %v1804, %v1892
      %v1894 = vpop.f32.mrf.mxu0
      %v1895 = vadd.f32 %v1806, %v1894
      %1896 = vmatmul.bf16.gmra.mxu0 %v1552
      %v1897 = vpop.f32.mrf.mxu0
      %v1898 = vadd.f32 %v1809, %v1897
      %v1899 = vpop.f32.mrf.mxu0
      %v1900 = vadd.f32 %v1811, %v1899
      %1901 = vmatmul.bf16.gmra.mxu0 %v1555
      %v1902 = vpop.f32.mrf.mxu0
      %v1903 = vadd.f32 %v1814, %v1902
      %v1904 = vpop.f32.mrf.mxu0
      %v1905 = vadd.f32 %v1816, %v1904
      %1906 = vmatmul.bf16.gmra.mxu0 %v1558
      %v1907 = vpop.f32.mrf.mxu0
      %v1908 = vadd.f32 %v1819, %v1907
      %v1909 = vpop.f32.mrf.mxu0
      %v1910 = vadd.f32 %v1821, %v1909
      %1911 = vmatmul.bf16.gmra.mxu0 %v1561
      %v1912 = vpop.f32.mrf.mxu0
      %v1913 = vadd.f32 %v1824, %v1912
      %v1914 = vpop.f32.mrf.mxu0
      %v1915 = vadd.f32 %v1826, %v1914
      %1916 = vmatmul.bf16.gmra.mxu0 %v1564
      %v1917 = vpop.f32.mrf.mxu0
      %v1918 = vadd.f32 %v1829, %v1917
      %v1919 = vpop.f32.mrf.mxu0
      %v1920 = vadd.f32 %v1831, %v1919
      %1921 = vmatmul.bf16.gmra.mxu0 %v1567
      %v1922 = vpop.f32.mrf.mxu0
      %v1923 = vadd.f32 %v1834, %v1922
      %v1924 = vpop.f32.mrf.mxu0
      %v1925 = vadd.f32 %v1836, %v1924
      %1926 = vmatmul.bf16.gmra.mxu0 %v1570
      %v1927 = vpop.f32.mrf.mxu0
      %v1928 = vadd.f32 %v1839, %v1927
      %v1929 = vpop.f32.mrf.mxu0
      %v1930 = vadd.f32 %v1841, %v1929
      %1931 = vmatmul.bf16.gmra.mxu0 %v1573
      %v1932 = vpop.f32.mrf.mxu0
      %v1933 = vadd.f32 %v1844, %v1932
      %v1934 = vpop.f32.mrf.mxu0
      %v1935 = vadd.f32 %v1846, %v1934
      %1936 = vmatmul.bf16.gmra.mxu0 %v1576
      %v1937 = vpop.f32.mrf.mxu0
      %v1938 = vadd.f32 %v1849, %v1937
      %v1939 = vpop.f32.mrf.mxu0
      %v1940 = vadd.f32 %v1851, %v1939
      %1941 = vmatmul.bf16.gmra.mxu0 %v1579
      %v1942 = vpop.f32.mrf.mxu0
      %v1943 = vadd.f32 %v1854, %v1942
      %v1944 = vpop.f32.mrf.mxu0
      %v1945 = vadd.f32 %v1856, %v1944
      %1946 = vmatmul.bf16.gmra.mxu0 %v1582
      %v1947 = vpop.f32.mrf.mxu0
      %v1948 = vadd.f32 %v1859, %v1947
      %v1949 = vpop.f32.mrf.mxu0
      %v1950 = vadd.f32 %v1861, %v1949
      %1951 = vmatmul.bf16.gmra.mxu0 %v1585
      %v1952 = vpop.f32.mrf.mxu0
      %v1953 = vadd.f32 %v1864, %v1952
      %v1954 = vpop.f32.mrf.mxu0
      %v1955 = vadd.f32 %v1866, %v1954
      %1956 = vdwg.mxu0
      %1957 = vmatpush.bf16.msra.mxu0 %v1754
      %1958 = vmatpush.bf16.msra.mxu0 %v1753
      %1959 = vmatpush.bf16.msra.mxu0 %v1752
      %1960 = vmatpush.bf16.msra.mxu0 %v1751
      %1961 = vmatpush.bf16.msra.mxu0 %v1750
      %1962 = vmatpush.bf16.msra.mxu0 %v1749
      %1963 = vmatpush.bf16.msra.mxu0 %v1748
      %1964 = vmatpush.bf16.msra.mxu0 %v1747
      %1965 = vmatmul.bf16.gmra.mxu0 %v1541
      %v1966 = vpop.f32.mrf.mxu0
      %v1967 = vadd.f32 %v1878, %v1966
      %v1968 = vpop.f32.mrf.mxu0
      %v1969 = vadd.f32 %v1880, %v1968
      %1970 = vmatmul.bf16.gmra.mxu0 %v1544
      %v1971 = vpop.f32.mrf.mxu0
      %v1972 = vadd.f32 %v1883, %v1971
      %v1973 = vpop.f32.mrf.mxu0
      %v1974 = vadd.f32 %v1885, %v1973
      %1975 = vmatmul.bf16.gmra.mxu0 %v1547
      %v1976 = vpop.f32.mrf.mxu0
      %v1977 = vadd.f32 %v1888, %v1976
      %v1978 = vpop.f32.mrf.mxu0
      %v1979 = vadd.f32 %v1890, %v1978
      %1980 = vmatmul.bf16.gmra.mxu0 %v1550
      %v1981 = vpop.f32.mrf.mxu0
      %v1982 = vadd.f32 %v1893, %v1981
      %v1983 = vpop.f32.mrf.mxu0
      %v1984 = vadd.f32 %v1895, %v1983
      %1985 = vmatmul.bf16.gmra.mxu0 %v1553
      %v1986 = vpop.f32.mrf.mxu0
      %v1987 = vadd.f32 %v1898, %v1986
      %v1988 = vpop.f32.mrf.mxu0
      %v1989 = vadd.f32 %v1900, %v1988
      %1990 = vmatmul.bf16.gmra.mxu0 %v1556
      %v1991 = vpop.f32.mrf.mxu0
      %v1992 = vadd.f32 %v1903, %v1991
      %v1993 = vpop.f32.mrf.mxu0
      %v1994 = vadd.f32 %v1905, %v1993
      %1995 = vmatmul.bf16.gmra.mxu0 %v1559
      %v1996 = vpop.f32.mrf.mxu0
      %v1997 = vadd.f32 %v1908, %v1996
      %v1998 = vpop.f32.mrf.mxu0
      %v1999 = vadd.f32 %v1910, %v1998
      %2000 = vmatmul.bf16.gmra.mxu0 %v1562
      %v2001 = vpop.f32.mrf.mxu0
      %v2002 = vadd.f32 %v1913, %v2001
      %v2003 = vpop.f32.mrf.mxu0
      %v2004 = vadd.f32 %v1915, %v2003
      %2005 = vmatmul.bf16.gmra.mxu0 %v1565
      %v2006 = vpop.f32.mrf.mxu0
      %v2007 = vadd.f32 %v1918, %v2006
      %v2008 = vpop.f32.mrf.mxu0
      %v2009 = vadd.f32 %v1920, %v2008
      %2010 = vmatmul.bf16.gmra.mxu0 %v1568
      %v2011 = vpop.f32.mrf.mxu0
      %v2012 = vadd.f32 %v1923, %v2011
      %v2013 = vpop.f32.mrf.mxu0
      %v2014 = vadd.f32 %v1925, %v2013
      %2015 = vmatmul.bf16.gmra.mxu0 %v1571
      %v2016 = vpop.f32.mrf.mxu0
      %v2017 = vadd.f32 %v1928, %v2016
      %v2018 = vpop.f32.mrf.mxu0
      %v2019 = vadd.f32 %v1930, %v2018
      %2020 = vmatmul.bf16.gmra.mxu0 %v1574
      %v2021 = vpop.f32.mrf.mxu0
      %v2022 = vadd.f32 %v1933, %v2021
      %v2023 = vpop.f32.mrf.mxu0
      %v2024 = vadd.f32 %v1935, %v2023
      %2025 = vmatmul.bf16.gmra.mxu0 %v1577
      %v2026 = vpop.f32.mrf.mxu0
      %v2027 = vadd.f32 %v1938, %v2026
      %v2028 = vpop.f32.mrf.mxu0
      %v2029 = vadd.f32 %v1940, %v2028
      %2030 = vmatmul.bf16.gmra.mxu0 %v1580
      %v2031 = vpop.f32.mrf.mxu0
      %v2032 = vadd.f32 %v1943, %v2031
      %v2033 = vpop.f32.mrf.mxu0
      %v2034 = vadd.f32 %v1945, %v2033
      %2035 = vmatmul.bf16.gmra.mxu0 %v1583
      %v2036 = vpop.f32.mrf.mxu0
      %v2037 = vadd.f32 %v1948, %v2036
      %v2038 = vpop.f32.mrf.mxu0
      %v2039 = vadd.f32 %v1950, %v2038
      %2040 = vmatmul.bf16.gmra.mxu0 %v1586
      %v2041 = vpop.f32.mrf.mxu0
      %v2042 = vadd.f32 %v1953, %v2041
      %v2043 = vpop.f32.mrf.mxu0
      %v2044 = vadd.f32 %v1955, %v2043
      %2045 = vdwg.mxu0
      %v2110 = vunpack.c.l.b16 %v1154
      %v2111 = vunpack.c.h.b16 %v1154
      %v2112 = vunpack.c.l.b16 %v1155
      %v2113 = vunpack.c.l.b16 %v1156
      %v2114 = vunpack.c.h.b16 %v1156
      %v2115 = vunpack.c.l.b16 %v1157
      %v2116 = vunpack.c.l.b16 %v1158
      %v2117 = vunpack.c.h.b16 %v1158
      %v2118 = vunpack.c.l.b16 %v1159
      %v2119 = vunpack.c.l.b16 %v1160
      %v2120 = vunpack.c.h.b16 %v1160
      %v2121 = vunpack.c.l.b16 %v1161
      %v2122 = vunpack.c.l.b16 %v1162
      %v2123 = vunpack.c.h.b16 %v1162
      %v2124 = vunpack.c.l.b16 %v1163
      %v2125 = vunpack.c.l.b16 %v1164
      %v2126 = vunpack.c.h.b16 %v1164
      %v2127 = vunpack.c.l.b16 %v1165
      %v2128 = vunpack.c.l.b16 %v1166
      %v2129 = vunpack.c.h.b16 %v1166
      %v2130 = vunpack.c.l.b16 %v1167
      %v2131 = vunpack.c.l.b16 %v1168
      %v2132 = vunpack.c.h.b16 %v1168
      %v2133 = vunpack.c.l.b16 %v1169
      %v2134 = vunpack.c.l.b16 %v1170
      %v2135 = vunpack.c.h.b16 %v1170
      %v2136 = vunpack.c.l.b16 %v1171
      %v2137 = vunpack.c.l.b16 %v1172
      %v2138 = vunpack.c.h.b16 %v1172
      %v2139 = vunpack.c.l.b16 %v1173
      %v2140 = vunpack.c.l.b16 %v1174
      %v2141 = vunpack.c.h.b16 %v1174
      %v2142 = vunpack.c.l.b16 %v1175
      %v2143 = vunpack.c.l.b16 %v1176
      %v2144 = vunpack.c.h.b16 %v1176
      %v2145 = vunpack.c.l.b16 %v1177
      %v2146 = vunpack.c.l.b16 %v1178
      %v2147 = vunpack.c.h.b16 %v1178
      %v2148 = vunpack.c.l.b16 %v1179
      %v2149 = vunpack.c.l.b16 %v1180
      %v2150 = vunpack.c.h.b16 %v1180
      %v2151 = vunpack.c.l.b16 %v1181
      %v2152 = vunpack.c.l.b16 %v1182
      %v2153 = vunpack.c.h.b16 %v1182
      %v2154 = vunpack.c.l.b16 %v1183
      %v2155 = vunpack.c.l.b16 %v1184
      %v2156 = vunpack.c.h.b16 %v1184
      %v2157 = vunpack.c.l.b16 %v1185
      %v2158 = vunpack.c.l.b16 %v1186
      %v2159 = vunpack.c.h.b16 %v1186
      %v2160 = vunpack.c.l.b16 %v1187
      %v2161 = vunpack.c.l.b16 %v1188
      %v2162 = vunpack.c.h.b16 %v1188
      %v2163 = vunpack.c.l.b16 %v1189
      %v2164 = vunpack.c.l.b16 %v1190
      %v2165 = vunpack.c.h.b16 %v1190
      %v2166 = vunpack.c.l.b16 %v1191
      %v2167 = vunpack.c.l.b16 %v1192
      %v2168 = vunpack.c.h.b16 %v1192
      %v2169 = vunpack.c.l.b16 %v1193
      %v2170 = vunpack.c.l.b16 %v1194
      %v2171 = vunpack.c.h.b16 %v1194
      %v2172 = vunpack.c.l.b16 %v1195
      %v2173 = vunpack.c.l.b16 %v1196
      %v2174 = vunpack.c.h.b16 %v1196
      %v2175 = vunpack.c.l.b16 %v1197
      %v2176 = vunpack.c.l.b16 %v1198
      %v2177 = vunpack.c.h.b16 %v1198
      %v2178 = vunpack.c.l.b16 %v1199
      %v2179 = vunpack.c.l.b16 %v1200
      %v2180 = vunpack.c.h.b16 %v1200
      %v2181 = vunpack.c.l.b16 %v1201
      %v2182 = vunpack.c.l.b16 %v1202
      %v2183 = vunpack.c.h.b16 %v1202
      %v2184 = vunpack.c.l.b16 %v1203
      %v2185 = vunpack.c.l.b16 %v1204
      %v2186 = vunpack.c.h.b16 %v1204
      %v2187 = vunpack.c.l.b16 %v1205
      %v2188 = vunpack.c.l.b16 %v1206
      %v2189 = vunpack.c.h.b16 %v1206
      %v2190 = vunpack.c.l.b16 %v1207
      %v2191 = vunpack.c.l.b16 %v1208
      %v2192 = vunpack.c.h.b16 %v1208
      %v2193 = vunpack.c.l.b16 %v1209
      %v2194 = vunpack.c.l.b16 %v1210
      %v2195 = vunpack.c.h.b16 %v1210
      %v2196 = vunpack.c.l.b16 %v1211
      %v2197 = vunpack.c.l.b16 %v1212
      %v2198 = vunpack.c.h.b16 %v1212
      %v2199 = vunpack.c.l.b16 %v1213
      %v2200 = vunpack.c.l.b16 %v1214
      %v2201 = vunpack.c.h.b16 %v1214
      %v2202 = vunpack.c.l.b16 %v1215
      %v2203 = vunpack.c.l.b16 %v1216
      %v2204 = vunpack.c.h.b16 %v1216
      %v2205 = vunpack.c.l.b16 %v1217
      %v2206 = vpack.c.b16 %v2113, %v2110
      %v2207 = vpack.c.b16 %v2114, %v2111
      %v2208 = vpack.c.b16 %v2115, %v2112
      %v2209 = vpack.c.b16 %v2119, %v2116
      %v2210 = vpack.c.b16 %v2120, %v2117
      %v2211 = vpack.c.b16 %v2121, %v2118
      %v2212 = vpack.c.b16 %v2125, %v2122
      %v2213 = vpack.c.b16 %v2126, %v2123
      %v2214 = vpack.c.b16 %v2127, %v2124
      %v2215 = vpack.c.b16 %v2131, %v2128
      %v2216 = vpack.c.b16 %v2132, %v2129
      %v2217 = vpack.c.b16 %v2133, %v2130
      %v2218 = vpack.c.b16 %v2137, %v2134
      %v2219 = vpack.c.b16 %v2138, %v2135
      %v2220 = vpack.c.b16 %v2139, %v2136
      %v2221 = vpack.c.b16 %v2143, %v2140
      %v2222 = vpack.c.b16 %v2144, %v2141
      %v2223 = vpack.c.b16 %v2145, %v2142
      %v2224 = vpack.c.b16 %v2149, %v2146
      %v2225 = vpack.c.b16 %v2150, %v2147
      %v2226 = vpack.c.b16 %v2151, %v2148
      %v2227 = vpack.c.b16 %v2155, %v2152
      %v2228 = vpack.c.b16 %v2156, %v2153
      %v2229 = vpack.c.b16 %v2157, %v2154
      %v2230 = vpack.c.b16 %v2161, %v2158
      %v2231 = vpack.c.b16 %v2162, %v2159
      %v2232 = vpack.c.b16 %v2163, %v2160
      %v2233 = vpack.c.b16 %v2167, %v2164
      %v2234 = vpack.c.b16 %v2168, %v2165
      %v2235 = vpack.c.b16 %v2169, %v2166
      %v2236 = vpack.c.b16 %v2173, %v2170
      %v2237 = vpack.c.b16 %v2174, %v2171
      %v2238 = vpack.c.b16 %v2175, %v2172
      %v2239 = vpack.c.b16 %v2179, %v2176
      %v2240 = vpack.c.b16 %v2180, %v2177
      %v2241 = vpack.c.b16 %v2181, %v2178
      %v2242 = vpack.c.b16 %v2185, %v2182
      %v2243 = vpack.c.b16 %v2186, %v2183
      %v2244 = vpack.c.b16 %v2187, %v2184
      %v2245 = vpack.c.b16 %v2191, %v2188
      %v2246 = vpack.c.b16 %v2192, %v2189
      %v2247 = vpack.c.b16 %v2193, %v2190
      %v2248 = vpack.c.b16 %v2197, %v2194
      %v2249 = vpack.c.b16 %v2198, %v2195
      %v2250 = vpack.c.b16 %v2199, %v2196
      %v2251 = vpack.c.b16 %v2203, %v2200
      %v2252 = vpack.c.b16 %v2204, %v2201
      %v2253 = vpack.c.b16 %v2205, %v2202
      %v2350 = vunpack.c.l.b16 %v1218
      %v2351 = vunpack.c.l.b16 %v1219
      %v2352 = vunpack.c.l.b16 %v1220
      %v2353 = vunpack.c.l.b16 %v1221
      %v2354 = vunpack.c.l.b16 %v1222
      %v2355 = vunpack.c.l.b16 %v1223
      %v2356 = vunpack.c.l.b16 %v1224
      %v2357 = vunpack.c.l.b16 %v1225
      %v2358 = vunpack.c.l.b16 %v1226
      %v2359 = vunpack.c.l.b16 %v1227
      %v2360 = vunpack.c.l.b16 %v1228
      %v2361 = vunpack.c.l.b16 %v1229
      %v2362 = vunpack.c.l.b16 %v1230
      %v2363 = vunpack.c.l.b16 %v1231
      %v2364 = vunpack.c.l.b16 %v1232
      %v2365 = vunpack.c.l.b16 %v1233
      %v2366 = vunpack.c.l.b16 %v1234
      %v2367 = vunpack.c.l.b16 %v1235
      %v2368 = vunpack.c.l.b16 %v1236
      %v2369 = vunpack.c.l.b16 %v1237
      %v2370 = vunpack.c.l.b16 %v1238
      %v2371 = vunpack.c.l.b16 %v1239
      %v2372 = vunpack.c.l.b16 %v1240
      %v2373 = vunpack.c.l.b16 %v1241
      %v2374 = vunpack.c.l.b16 %v1242
      %v2375 = vunpack.c.l.b16 %v1243
      %v2376 = vunpack.c.l.b16 %v1244
      %v2377 = vunpack.c.l.b16 %v1245
      %v2378 = vunpack.c.l.b16 %v1246
      %v2379 = vunpack.c.l.b16 %v1247
      %v2380 = vunpack.c.l.b16 %v1248
      %v2381 = vunpack.c.l.b16 %v1249
      %v2382 = vunpack.c.l.b16 %v1250
      %v2383 = vunpack.c.l.b16 %v1251
      %v2384 = vunpack.c.l.b16 %v1252
      %v2385 = vunpack.c.l.b16 %v1253
      %v2386 = vunpack.c.l.b16 %v1254
      %v2387 = vunpack.c.l.b16 %v1255
      %v2388 = vunpack.c.l.b16 %v1256
      %v2389 = vunpack.c.l.b16 %v1257
      %v2390 = vunpack.c.l.b16 %v1258
      %v2391 = vunpack.c.l.b16 %v1259
      %v2392 = vunpack.c.l.b16 %v1260
      %v2393 = vunpack.c.l.b16 %v1261
      %v2394 = vunpack.c.l.b16 %v1262
      %v2395 = vunpack.c.l.b16 %v1263
      %v2396 = vunpack.c.l.b16 %v1264
      %v2397 = vunpack.c.l.b16 %v1265
      %v2398 = vpack.c.b16 %v2351, %v2350
      %v2399 = vpack.c.b16 %v2353, %v2352
      %v2400 = vpack.c.b16 %v2355, %v2354
      %v2401 = vpack.c.b16 %v2357, %v2356
      %v2402 = vpack.c.b16 %v2359, %v2358
      %v2403 = vpack.c.b16 %v2361, %v2360
      %v2404 = vpack.c.b16 %v2363, %v2362
      %v2405 = vpack.c.b16 %v2365, %v2364
      %v2406 = vpack.c.b16 %v2367, %v2366
      %v2407 = vpack.c.b16 %v2369, %v2368
      %v2408 = vpack.c.b16 %v2371, %v2370
      %v2409 = vpack.c.b16 %v2373, %v2372
      %v2410 = vpack.c.b16 %v2375, %v2374
      %v2411 = vpack.c.b16 %v2377, %v2376
      %v2412 = vpack.c.b16 %v2379, %v2378
      %v2413 = vpack.c.b16 %v2381, %v2380
      %v2414 = vpack.c.b16 %v2383, %v2382
      %v2415 = vpack.c.b16 %v2385, %v2384
      %v2416 = vpack.c.b16 %v2387, %v2386
      %v2417 = vpack.c.b16 %v2389, %v2388
      %v2418 = vpack.c.b16 %v2391, %v2390
      %v2419 = vpack.c.b16 %v2393, %v2392
      %v2420 = vpack.c.b16 %v2395, %v2394
      %v2421 = vpack.c.b16 %v2397, %v2396
      %2446 = vmatpush.bf16.msra.mxu0 %v2405
      %2447 = vmatpush.bf16.msra.mxu0 %v2404
      %2448 = vmatpush.bf16.msra.mxu0 %v2403
      %2449 = vmatpush.bf16.msra.mxu0 %v2402
      %2450 = vmatpush.bf16.msra.mxu0 %v2401
      %2451 = vmatpush.bf16.msra.mxu0 %v2400
      %2452 = vmatpush.bf16.msra.mxu0 %v2399
      %2453 = vmatpush.bf16.msra.mxu0 %v2398
      %2454 = vmatmul.bf16.gmra.mxu0 %v2206
      %v2455 = vpop.f32.mrf.mxu0
      %v2456 = vadd.f32 %v1967, %v2455
      %v2457 = vpop.f32.mrf.mxu0
      %v2458 = vadd.f32 %v1969, %v2457
      %2459 = vmatmul.bf16.gmra.mxu0 %v2209
      %v2460 = vpop.f32.mrf.mxu0
      %v2461 = vadd.f32 %v1972, %v2460
      %v2462 = vpop.f32.mrf.mxu0
      %v2463 = vadd.f32 %v1974, %v2462
      %2464 = vmatmul.bf16.gmra.mxu0 %v2212
      %v2465 = vpop.f32.mrf.mxu0
      %v2466 = vadd.f32 %v1977, %v2465
      %v2467 = vpop.f32.mrf.mxu0
      %v2468 = vadd.f32 %v1979, %v2467
      %2469 = vmatmul.bf16.gmra.mxu0 %v2215
      %v2470 = vpop.f32.mrf.mxu0
      %v2471 = vadd.f32 %v1982, %v2470
      %v2472 = vpop.f32.mrf.mxu0
      %v2473 = vadd.f32 %v1984, %v2472
      %2474 = vmatmul.bf16.gmra.mxu0 %v2218
      %v2475 = vpop.f32.mrf.mxu0
      %v2476 = vadd.f32 %v1987, %v2475
      %v2477 = vpop.f32.mrf.mxu0
      %v2478 = vadd.f32 %v1989, %v2477
      %2479 = vmatmul.bf16.gmra.mxu0 %v2221
      %v2480 = vpop.f32.mrf.mxu0
      %v2481 = vadd.f32 %v1992, %v2480
      %v2482 = vpop.f32.mrf.mxu0
      %v2483 = vadd.f32 %v1994, %v2482
      %2484 = vmatmul.bf16.gmra.mxu0 %v2224
      %v2485 = vpop.f32.mrf.mxu0
      %v2486 = vadd.f32 %v1997, %v2485
      %v2487 = vpop.f32.mrf.mxu0
      %v2488 = vadd.f32 %v1999, %v2487
      %2489 = vmatmul.bf16.gmra.mxu0 %v2227
      %v2490 = vpop.f32.mrf.mxu0
      %v2491 = vadd.f32 %v2002, %v2490
      %v2492 = vpop.f32.mrf.mxu0
      %v2493 = vadd.f32 %v2004, %v2492
      %2494 = vmatmul.bf16.gmra.mxu0 %v2230
      %v2495 = vpop.f32.mrf.mxu0
      %v2496 = vadd.f32 %v2007, %v2495
      %v2497 = vpop.f32.mrf.mxu0
      %v2498 = vadd.f32 %v2009, %v2497
      %2499 = vmatmul.bf16.gmra.mxu0 %v2233
      %v2500 = vpop.f32.mrf.mxu0
      %v2501 = vadd.f32 %v2012, %v2500
      %v2502 = vpop.f32.mrf.mxu0
      %v2503 = vadd.f32 %v2014, %v2502
      %2504 = vmatmul.bf16.gmra.mxu0 %v2236
      %v2505 = vpop.f32.mrf.mxu0
      %v2506 = vadd.f32 %v2017, %v2505
      %v2507 = vpop.f32.mrf.mxu0
      %v2508 = vadd.f32 %v2019, %v2507
      %2509 = vmatmul.bf16.gmra.mxu0 %v2239
      %v2510 = vpop.f32.mrf.mxu0
      %v2511 = vadd.f32 %v2022, %v2510
      %v2512 = vpop.f32.mrf.mxu0
      %v2513 = vadd.f32 %v2024, %v2512
      %2514 = vmatmul.bf16.gmra.mxu0 %v2242
      %v2515 = vpop.f32.mrf.mxu0
      %v2516 = vadd.f32 %v2027, %v2515
      %v2517 = vpop.f32.mrf.mxu0
      %v2518 = vadd.f32 %v2029, %v2517
      %2519 = vmatmul.bf16.gmra.mxu0 %v2245
      %v2520 = vpop.f32.mrf.mxu0
      %v2521 = vadd.f32 %v2032, %v2520
      %v2522 = vpop.f32.mrf.mxu0
      %v2523 = vadd.f32 %v2034, %v2522
      %2524 = vmatmul.bf16.gmra.mxu0 %v2248
      %v2525 = vpop.f32.mrf.mxu0
      %v2526 = vadd.f32 %v2037, %v2525
      %v2527 = vpop.f32.mrf.mxu0
      %v2528 = vadd.f32 %v2039, %v2527
      %2529 = vmatmul.bf16.gmra.mxu0 %v2251
      %v2530 = vpop.f32.mrf.mxu0
      %v2531 = vadd.f32 %v2042, %v2530
      %v2532 = vpop.f32.mrf.mxu0
      %v2533 = vadd.f32 %v2044, %v2532
      %2534 = vdwg.mxu0
      %2535 = vmatpush.bf16.msra.mxu0 %v2413
      %2536 = vmatpush.bf16.msra.mxu0 %v2412
      %2537 = vmatpush.bf16.msra.mxu0 %v2411
      %2538 = vmatpush.bf16.msra.mxu0 %v2410
      %2539 = vmatpush.bf16.msra.mxu0 %v2409
      %2540 = vmatpush.bf16.msra.mxu0 %v2408
      %2541 = vmatpush.bf16.msra.mxu0 %v2407
      %2542 = vmatpush.bf16.msra.mxu0 %v2406
      %2543 = vmatmul.bf16.gmra.mxu0 %v2207
      %v2544 = vpop.f32.mrf.mxu0
      %v2545 = vadd.f32 %v2456, %v2544
      %v2546 = vpop.f32.mrf.mxu0
      %v2547 = vadd.f32 %v2458, %v2546
      %2548 = vmatmul.bf16.gmra.mxu0 %v2210
      %v2549 = vpop.f32.mrf.mxu0
      %v2550 = vadd.f32 %v2461, %v2549
      %v2551 = vpop.f32.mrf.mxu0
      %v2552 = vadd.f32 %v2463, %v2551
      %2553 = vmatmul.bf16.gmra.mxu0 %v2213
      %v2554 = vpop.f32.mrf.mxu0
      %v2555 = vadd.f32 %v2466, %v2554
      %v2556 = vpop.f32.mrf.mxu0
      %v2557 = vadd.f32 %v2468, %v2556
      %2558 = vmatmul.bf16.gmra.mxu0 %v2216
      %v2559 = vpop.f32.mrf.mxu0
      %v2560 = vadd.f32 %v2471, %v2559
      %v2561 = vpop.f32.mrf.mxu0
      %v2562 = vadd.f32 %v2473, %v2561
      %2563 = vmatmul.bf16.gmra.mxu0 %v2219
      %v2564 = vpop.f32.mrf.mxu0
      %v2565 = vadd.f32 %v2476, %v2564
      %v2566 = vpop.f32.mrf.mxu0
      %v2567 = vadd.f32 %v2478, %v2566
      %2568 = vmatmul.bf16.gmra.mxu0 %v2222
      %v2569 = vpop.f32.mrf.mxu0
      %v2570 = vadd.f32 %v2481, %v2569
      %v2571 = vpop.f32.mrf.mxu0
      %v2572 = vadd.f32 %v2483, %v2571
      %2573 = vmatmul.bf16.gmra.mxu0 %v2225
      %v2574 = vpop.f32.mrf.mxu0
      %v2575 = vadd.f32 %v2486, %v2574
      %v2576 = vpop.f32.mrf.mxu0
      %v2577 = vadd.f32 %v2488, %v2576
      %2578 = vmatmul.bf16.gmra.mxu0 %v2228
      %v2579 = vpop.f32.mrf.mxu0
      %v2580 = vadd.f32 %v2491, %v2579
      %v2581 = vpop.f32.mrf.mxu0
      %v2582 = vadd.f32 %v2493, %v2581
      %2583 = vmatmul.bf16.gmra.mxu0 %v2231
      %v2584 = vpop.f32.mrf.mxu0
      %v2585 = vadd.f32 %v2496, %v2584
      %v2586 = vpop.f32.mrf.mxu0
      %v2587 = vadd.f32 %v2498, %v2586
      %2588 = vmatmul.bf16.gmra.mxu0 %v2234
      %v2589 = vpop.f32.mrf.mxu0
      %v2590 = vadd.f32 %v2501, %v2589
      %v2591 = vpop.f32.mrf.mxu0
      %v2592 = vadd.f32 %v2503, %v2591
      %2593 = vmatmul.bf16.gmra.mxu0 %v2237
      %v2594 = vpop.f32.mrf.mxu0
      %v2595 = vadd.f32 %v2506, %v2594
      %v2596 = vpop.f32.mrf.mxu0
      %v2597 = vadd.f32 %v2508, %v2596
      %2598 = vmatmul.bf16.gmra.mxu0 %v2240
      %v2599 = vpop.f32.mrf.mxu0
      %v2600 = vadd.f32 %v2511, %v2599
      %v2601 = vpop.f32.mrf.mxu0
      %v2602 = vadd.f32 %v2513, %v2601
      %2603 = vmatmul.bf16.gmra.mxu0 %v2243
      %v2604 = vpop.f32.mrf.mxu0
      %v2605 = vadd.f32 %v2516, %v2604
      %v2606 = vpop.f32.mrf.mxu0
      %v2607 = vadd.f32 %v2518, %v2606
      %2608 = vmatmul.bf16.gmra.mxu0 %v2246
      %v2609 = vpop.f32.mrf.mxu0
      %v2610 = vadd.f32 %v2521, %v2609
      %v2611 = vpop.f32.mrf.mxu0
      %v2612 = vadd.f32 %v2523, %v2611
      %2613 = vmatmul.bf16.gmra.mxu0 %v2249
      %v2614 = vpop.f32.mrf.mxu0
      %v2615 = vadd.f32 %v2526, %v2614
      %v2616 = vpop.f32.mrf.mxu0
      %v2617 = vadd.f32 %v2528, %v2616
      %2618 = vmatmul.bf16.gmra.mxu0 %v2252
      %v2619 = vpop.f32.mrf.mxu0
      %v2620 = vadd.f32 %v2531, %v2619
      %v2621 = vpop.f32.mrf.mxu0
      %v2622 = vadd.f32 %v2533, %v2621
      %2623 = vdwg.mxu0
      %2624 = vmatpush.bf16.msra.mxu0 %v2421
      %2625 = vmatpush.bf16.msra.mxu0 %v2420
      %2626 = vmatpush.bf16.msra.mxu0 %v2419
      %2627 = vmatpush.bf16.msra.mxu0 %v2418
      %2628 = vmatpush.bf16.msra.mxu0 %v2417
      %2629 = vmatpush.bf16.msra.mxu0 %v2416
      %2630 = vmatpush.bf16.msra.mxu0 %v2415
      %2631 = vmatpush.bf16.msra.mxu0 %v2414
      %2632 = vmatmul.bf16.gmra.mxu0 %v2208
      %v2633 = vpop.f32.mrf.mxu0
      %v2634 = vadd.f32 %v2545, %v2633
      %v2635 = vpop.f32.mrf.mxu0
      %v2636 = vadd.f32 %v2547, %v2635
      %2637 = vmatmul.bf16.gmra.mxu0 %v2211
      %v2638 = vpop.f32.mrf.mxu0
      %v2639 = vadd.f32 %v2550, %v2638
      %v2640 = vpop.f32.mrf.mxu0
      %v2641 = vadd.f32 %v2552, %v2640
      %2642 = vmatmul.bf16.gmra.mxu0 %v2214
      %v2643 = vpop.f32.mrf.mxu0
      %v2644 = vadd.f32 %v2555, %v2643
      %v2645 = vpop.f32.mrf.mxu0
      %v2646 = vadd.f32 %v2557, %v2645
      %2647 = vmatmul.bf16.gmra.mxu0 %v2217
      %v2648 = vpop.f32.mrf.mxu0
      %v2649 = vadd.f32 %v2560, %v2648
      %v2650 = vpop.f32.mrf.mxu0
      %v2651 = vadd.f32 %v2562, %v2650
      %2652 = vmatmul.bf16.gmra.mxu0 %v2220
      %v2653 = vpop.f32.mrf.mxu0
      %v2654 = vadd.f32 %v2565, %v2653
      %v2655 = vpop.f32.mrf.mxu0
      %v2656 = vadd.f32 %v2567, %v2655
      %2657 = vmatmul.bf16.gmra.mxu0 %v2223
      %v2658 = vpop.f32.mrf.mxu0
      %v2659 = vadd.f32 %v2570, %v2658
      %v2660 = vpop.f32.mrf.mxu0
      %v2661 = vadd.f32 %v2572, %v2660
      %2662 = vmatmul.bf16.gmra.mxu0 %v2226
      %v2663 = vpop.f32.mrf.mxu0
      %v2664 = vadd.f32 %v2575, %v2663
      %v2665 = vpop.f32.mrf.mxu0
      %v2666 = vadd.f32 %v2577, %v2665
      %2667 = vmatmul.bf16.gmra.mxu0 %v2229
      %v2668 = vpop.f32.mrf.mxu0
      %v2669 = vadd.f32 %v2580, %v2668
      %v2670 = vpop.f32.mrf.mxu0
      %v2671 = vadd.f32 %v2582, %v2670
      %2672 = vmatmul.bf16.gmra.mxu0 %v2232
      %v2673 = vpop.f32.mrf.mxu0
      %v2674 = vadd.f32 %v2585, %v2673
      %v2675 = vpop.f32.mrf.mxu0
      %v2676 = vadd.f32 %v2587, %v2675
      %2677 = vmatmul.bf16.gmra.mxu0 %v2235
      %v2678 = vpop.f32.mrf.mxu0
      %v2679 = vadd.f32 %v2590, %v2678
      %v2680 = vpop.f32.mrf.mxu0
      %v2681 = vadd.f32 %v2592, %v2680
      %2682 = vmatmul.bf16.gmra.mxu0 %v2238
      %v2683 = vpop.f32.mrf.mxu0
      %v2684 = vadd.f32 %v2595, %v2683
      %v2685 = vpop.f32.mrf.mxu0
      %v2686 = vadd.f32 %v2597, %v2685
      %2687 = vmatmul.bf16.gmra.mxu0 %v2241
      %v2688 = vpop.f32.mrf.mxu0
      %v2689 = vadd.f32 %v2600, %v2688
      %v2690 = vpop.f32.mrf.mxu0
      %v2691 = vadd.f32 %v2602, %v2690
      %2692 = vmatmul.bf16.gmra.mxu0 %v2244
      %v2693 = vpop.f32.mrf.mxu0
      %v2694 = vadd.f32 %v2605, %v2693
      %v2695 = vpop.f32.mrf.mxu0
      %v2696 = vadd.f32 %v2607, %v2695
      %2697 = vmatmul.bf16.gmra.mxu0 %v2247
      %v2698 = vpop.f32.mrf.mxu0
      %v2699 = vadd.f32 %v2610, %v2698
      %v2700 = vpop.f32.mrf.mxu0
      %v2701 = vadd.f32 %v2612, %v2700
      %2702 = vmatmul.bf16.gmra.mxu0 %v2250
      %v2703 = vpop.f32.mrf.mxu0
      %v2704 = vadd.f32 %v2615, %v2703
      %v2705 = vpop.f32.mrf.mxu0
      %v2706 = vadd.f32 %v2617, %v2705
      %2707 = vmatmul.bf16.gmra.mxu0 %v2253
      %v2708 = vpop.f32.mrf.mxu0
      %v2709 = vadd.f32 %v2620, %v2708
      %v2710 = vpop.f32.mrf.mxu0
      %v2711 = vadd.f32 %v2622, %v2710
      %2712 = vdwg.mxu0
      %s2713 = scalar_lea.vmem [#allocation2], 48
      %v2714 = vld [vmem:[%s2713] sm:$0xff]
      %v2715 = vld [vmem:[%s2713 + $0x8] sm:$0xf]
      %v2716 = vld [vmem:[%s2713 + $0xc] sm:$0xff]
      %v2717 = vld [vmem:[%s2713 + $0x14] sm:$0xf]
      %v2718 = vld [vmem:[%s2713 + $0x18] sm:$0xff]
      %v2719 = vld [vmem:[%s2713 + $0x20] sm:$0xf]
      %v2720 = vld [vmem:[%s2713 + $0x24] sm:$0xff]
      %v2721 = vld [vmem:[%s2713 + $0x2c] sm:$0xf]
      %v2722 = vld [vmem:[%s2713 + $0x30] sm:$0xff]
      %v2723 = vld [vmem:[%s2713 + $0x38] sm:$0xf]
      %v2724 = vld [vmem:[%s2713 + $0x3c] sm:$0xff]
      %v2725 = vld [vmem:[%s2713 + $0x44] sm:$0xf]
      %v2726 = vld [vmem:[%s2713 + $0x48] sm:$0xff]
      %v2727 = vld [vmem:[%s2713 + $0x50] sm:$0xf]
      %v2728 = vld [vmem:[%s2713 + $0x54] sm:$0xff]
      %v2729 = vld [vmem:[%s2713 + $0x5c] sm:$0xf]
      %v2730 = vld [vmem:[%s2713 + $0x60] sm:$0xff]
      %v2731 = vld [vmem:[%s2713 + $0x68] sm:$0xf]
      %v2732 = vld [vmem:[%s2713 + $0x6c] sm:$0xff]
      %v2733 = vld [vmem:[%s2713 + $0x74] sm:$0xf]
      %v2734 = vld [vmem:[%s2713 + $0x78] sm:$0xff]
      %v2735 = vld [vmem:[%s2713 + $0x80] sm:$0xf]
      %v2736 = vld [vmem:[%s2713 + $0x84] sm:$0xff]
      %v2737 = vld [vmem:[%s2713 + $0x8c] sm:$0xf]
      %v2738 = vld [vmem:[%s2713 + $0x90] sm:$0xff]
      %v2739 = vld [vmem:[%s2713 + $0x98] sm:$0xf]
      %v2740 = vld [vmem:[%s2713 + $0x9c] sm:$0xff]
      %v2741 = vld [vmem:[%s2713 + $0xa4] sm:$0xf]
      %v2742 = vld [vmem:[%s2713 + $0xa8] sm:$0xff]
      %v2743 = vld [vmem:[%s2713 + $0xb0] sm:$0xf]
      %v2744 = vld [vmem:[%s2713 + $0xb4] sm:$0xff]
      %v2745 = vld [vmem:[%s2713 + $0xbc] sm:$0xf]
      %v2746 = vld [vmem:[%s2713 + $0xc0] sm:$0xff]
      %v2747 = vld [vmem:[%s2713 + $0xc8] sm:$0xf]
      %v2748 = vld [vmem:[%s2713 + $0xcc] sm:$0xff]
      %v2749 = vld [vmem:[%s2713 + $0xd4] sm:$0xf]
      %v2750 = vld [vmem:[%s2713 + $0xd8] sm:$0xff]
      %v2751 = vld [vmem:[%s2713 + $0xe0] sm:$0xf]
      %v2752 = vld [vmem:[%s2713 + $0xe4] sm:$0xff]
      %v2753 = vld [vmem:[%s2713 + $0xec] sm:$0xf]
      %v2754 = vld [vmem:[%s2713 + $0xf0] sm:$0xff]
      %v2755 = vld [vmem:[%s2713 + $0xf8] sm:$0xf]
      %v2756 = vld [vmem:[%s2713 + $0xfc] sm:$0xff]
      %v2757 = vld [vmem:[%s2713 + $0x104] sm:$0xf]
      %v2758 = vld [vmem:[%s2713 + $0x108] sm:$0xff]
      %v2759 = vld [vmem:[%s2713 + $0x110] sm:$0xf]
      %v2760 = vld [vmem:[%s2713 + $0x114] sm:$0xff]
      %v2761 = vld [vmem:[%s2713 + $0x11c] sm:$0xf]
      %v2762 = vld [vmem:[%s2713 + $0x120] sm:$0xff]
      %v2763 = vld [vmem:[%s2713 + $0x128] sm:$0xf]
      %v2764 = vld [vmem:[%s2713 + $0x12c] sm:$0xff]
      %v2765 = vld [vmem:[%s2713 + $0x134] sm:$0xf]
      %v2766 = vld [vmem:[%s2713 + $0x138] sm:$0xff]
      %v2767 = vld [vmem:[%s2713 + $0x140] sm:$0xf]
      %v2768 = vld [vmem:[%s2713 + $0x144] sm:$0xff]
      %v2769 = vld [vmem:[%s2713 + $0x14c] sm:$0xf]
      %v2770 = vld [vmem:[%s2713 + $0x150] sm:$0xff]
      %v2771 = vld [vmem:[%s2713 + $0x158] sm:$0xf]
      %v2772 = vld [vmem:[%s2713 + $0x15c] sm:$0xff]
      %v2773 = vld [vmem:[%s2713 + $0x164] sm:$0xf]
      %v2774 = vld [vmem:[%s2713 + $0x168] sm:$0xff]
      %v2775 = vld [vmem:[%s2713 + $0x170] sm:$0xf]
      %v2776 = vld [vmem:[%s2713 + $0x174] sm:$0xff]
      %v2777 = vld [vmem:[%s2713 + $0x17c] sm:$0xf]
      %s2778 = scalar_lea.vmem %s2, 384
      %v2779 = vld [vmem:[%s2778] sm:$0xf]
      %v2780 = vld [vmem:[%s2778 + $0x4] sm:$0xf]
      %v2781 = vld [vmem:[%s2778 + $0x8] sm:$0xf]
      %v2782 = vld [vmem:[%s2778 + $0xc] sm:$0xf]
      %v2783 = vld [vmem:[%s2778 + $0x10] sm:$0xf]
      %v2784 = vld [vmem:[%s2778 + $0x14] sm:$0xf]
      %v2785 = vld [vmem:[%s2778 + $0x18] sm:$0xf]
      %v2786 = vld [vmem:[%s2778 + $0x1c] sm:$0xf]
      %v2787 = vld [vmem:[%s2778 + $0x20] sm:$0xf]
      %v2788 = vld [vmem:[%s2778 + $0x24] sm:$0xf]
      %v2789 = vld [vmem:[%s2778 + $0x28] sm:$0xf]
      %v2790 = vld [vmem:[%s2778 + $0x2c] sm:$0xf]
      %v2791 = vld [vmem:[%s2778 + $0x30] sm:$0xf]
      %v2792 = vld [vmem:[%s2778 + $0x34] sm:$0xf]
      %v2793 = vld [vmem:[%s2778 + $0x38] sm:$0xf]
      %v2794 = vld [vmem:[%s2778 + $0x3c] sm:$0xf]
      %v2795 = vld [vmem:[%s2778 + $0x40] sm:$0xf]
      %v2796 = vld [vmem:[%s2778 + $0x44] sm:$0xf]
      %v2797 = vld [vmem:[%s2778 + $0x48] sm:$0xf]
      %v2798 = vld [vmem:[%s2778 + $0x4c] sm:$0xf]
      %v2799 = vld [vmem:[%s2778 + $0x50] sm:$0xf]
      %v2800 = vld [vmem:[%s2778 + $0x54] sm:$0xf]
      %v2801 = vld [vmem:[%s2778 + $0x58] sm:$0xf]
      %v2802 = vld [vmem:[%s2778 + $0x5c] sm:$0xf]
      %v2803 = vld [vmem:[%s2778 + $0x60] sm:$0xf]
      %v2804 = vld [vmem:[%s2778 + $0x64] sm:$0xf]
      %v2805 = vld [vmem:[%s2778 + $0x68] sm:$0xf]
      %v2806 = vld [vmem:[%s2778 + $0x6c] sm:$0xf]
      %v2807 = vld [vmem:[%s2778 + $0x70] sm:$0xf]
      %v2808 = vld [vmem:[%s2778 + $0x74] sm:$0xf]
      %v2809 = vld [vmem:[%s2778 + $0x78] sm:$0xf]
      %v2810 = vld [vmem:[%s2778 + $0x7c] sm:$0xf]
      %v2811 = vld [vmem:[%s2778 + $0x80] sm:$0xf]
      %v2812 = vld [vmem:[%s2778 + $0x84] sm:$0xf]
      %v2813 = vld [vmem:[%s2778 + $0x88] sm:$0xf]
      %v2814 = vld [vmem:[%s2778 + $0x8c] sm:$0xf]
      %v2815 = vld [vmem:[%s2778 + $0x90] sm:$0xf]
      %v2816 = vld [vmem:[%s2778 + $0x94] sm:$0xf]
      %v2817 = vld [vmem:[%s2778 + $0x98] sm:$0xf]
      %v2818 = vld [vmem:[%s2778 + $0x9c] sm:$0xf]
      %v2819 = vld [vmem:[%s2778 + $0xa0] sm:$0xf]
      %v2820 = vld [vmem:[%s2778 + $0xa4] sm:$0xf]
      %v2821 = vld [vmem:[%s2778 + $0xa8] sm:$0xf]
      %v2822 = vld [vmem:[%s2778 + $0xac] sm:$0xf]
      %v2823 = vld [vmem:[%s2778 + $0xb0] sm:$0xf]
      %v2824 = vld [vmem:[%s2778 + $0xb4] sm:$0xf]
      %v2825 = vld [vmem:[%s2778 + $0xb8] sm:$0xf]
      %v2826 = vld [vmem:[%s2778 + $0xbc] sm:$0xf]
      %v2891 = vunpack.c.l.b16 %v2714
      %v2892 = vunpack.c.h.b16 %v2714
      %v2893 = vunpack.c.l.b16 %v2715
      %v2894 = vunpack.c.l.b16 %v2716
      %v2895 = vunpack.c.h.b16 %v2716
      %v2896 = vunpack.c.l.b16 %v2717
      %v2897 = vunpack.c.l.b16 %v2718
      %v2898 = vunpack.c.h.b16 %v2718
      %v2899 = vunpack.c.l.b16 %v2719
      %v2900 = vunpack.c.l.b16 %v2720
      %v2901 = vunpack.c.h.b16 %v2720
      %v2902 = vunpack.c.l.b16 %v2721
      %v2903 = vunpack.c.l.b16 %v2722
      %v2904 = vunpack.c.h.b16 %v2722
      %v2905 = vunpack.c.l.b16 %v2723
      %v2906 = vunpack.c.l.b16 %v2724
      %v2907 = vunpack.c.h.b16 %v2724
      %v2908 = vunpack.c.l.b16 %v2725
      %v2909 = vunpack.c.l.b16 %v2726
      %v2910 = vunpack.c.h.b16 %v2726
      %v2911 = vunpack.c.l.b16 %v2727
      %v2912 = vunpack.c.l.b16 %v2728
      %v2913 = vunpack.c.h.b16 %v2728
      %v2914 = vunpack.c.l.b16 %v2729
      %v2915 = vunpack.c.l.b16 %v2730
      %v2916 = vunpack.c.h.b16 %v2730
      %v2917 = vunpack.c.l.b16 %v2731
      %v2918 = vunpack.c.l.b16 %v2732
      %v2919 = vunpack.c.h.b16 %v2732
      %v2920 = vunpack.c.l.b16 %v2733
      %v2921 = vunpack.c.l.b16 %v2734
      %v2922 = vunpack.c.h.b16 %v2734
      %v2923 = vunpack.c.l.b16 %v2735
      %v2924 = vunpack.c.l.b16 %v2736
      %v2925 = vunpack.c.h.b16 %v2736
      %v2926 = vunpack.c.l.b16 %v2737
      %v2927 = vunpack.c.l.b16 %v2738
      %v2928 = vunpack.c.h.b16 %v2738
      %v2929 = vunpack.c.l.b16 %v2739
      %v2930 = vunpack.c.l.b16 %v2740
      %v2931 = vunpack.c.h.b16 %v2740
      %v2932 = vunpack.c.l.b16 %v2741
      %v2933 = vunpack.c.l.b16 %v2742
      %v2934 = vunpack.c.h.b16 %v2742
      %v2935 = vunpack.c.l.b16 %v2743
      %v2936 = vunpack.c.l.b16 %v2744
      %v2937 = vunpack.c.h.b16 %v2744
      %v2938 = vunpack.c.l.b16 %v2745
      %v2939 = vunpack.c.l.b16 %v2746
      %v2940 = vunpack.c.h.b16 %v2746
      %v2941 = vunpack.c.l.b16 %v2747
      %v2942 = vunpack.c.l.b16 %v2748
      %v2943 = vunpack.c.h.b16 %v2748
      %v2944 = vunpack.c.l.b16 %v2749
      %v2945 = vunpack.c.l.b16 %v2750
      %v2946 = vunpack.c.h.b16 %v2750
      %v2947 = vunpack.c.l.b16 %v2751
      %v2948 = vunpack.c.l.b16 %v2752
      %v2949 = vunpack.c.h.b16 %v2752
      %v2950 = vunpack.c.l.b16 %v2753
      %v2951 = vunpack.c.l.b16 %v2754
      %v2952 = vunpack.c.h.b16 %v2754
      %v2953 = vunpack.c.l.b16 %v2755
      %v2954 = vunpack.c.l.b16 %v2756
      %v2955 = vunpack.c.h.b16 %v2756
      %v2956 = vunpack.c.l.b16 %v2757
      %v2957 = vunpack.c.l.b16 %v2758
      %v2958 = vunpack.c.h.b16 %v2758
      %v2959 = vunpack.c.l.b16 %v2759
      %v2960 = vunpack.c.l.b16 %v2760
      %v2961 = vunpack.c.h.b16 %v2760
      %v2962 = vunpack.c.l.b16 %v2761
      %v2963 = vunpack.c.l.b16 %v2762
      %v2964 = vunpack.c.h.b16 %v2762
      %v2965 = vunpack.c.l.b16 %v2763
      %v2966 = vunpack.c.l.b16 %v2764
      %v2967 = vunpack.c.h.b16 %v2764
      %v2968 = vunpack.c.l.b16 %v2765
      %v2969 = vunpack.c.l.b16 %v2766
      %v2970 = vunpack.c.h.b16 %v2766
      %v2971 = vunpack.c.l.b16 %v2767
      %v2972 = vunpack.c.l.b16 %v2768
      %v2973 = vunpack.c.h.b16 %v2768
      %v2974 = vunpack.c.l.b16 %v2769
      %v2975 = vunpack.c.l.b16 %v2770
      %v2976 = vunpack.c.h.b16 %v2770
      %v2977 = vunpack.c.l.b16 %v2771
      %v2978 = vunpack.c.l.b16 %v2772
      %v2979 = vunpack.c.h.b16 %v2772
      %v2980 = vunpack.c.l.b16 %v2773
      %v2981 = vunpack.c.l.b16 %v2774
      %v2982 = vunpack.c.h.b16 %v2774
      %v2983 = vunpack.c.l.b16 %v2775
      %v2984 = vunpack.c.l.b16 %v2776
      %v2985 = vunpack.c.h.b16 %v2776
      %v2986 = vunpack.c.l.b16 %v2777
      %v2987 = vpack.c.b16 %v2894, %v2891
      %v2988 = vpack.c.b16 %v2895, %v2892
      %v2989 = vpack.c.b16 %v2896, %v2893
      %v2990 = vpack.c.b16 %v2900, %v2897
      %v2991 = vpack.c.b16 %v2901, %v2898
      %v2992 = vpack.c.b16 %v2902, %v2899
      %v2993 = vpack.c.b16 %v2906, %v2903
      %v2994 = vpack.c.b16 %v2907, %v2904
      %v2995 = vpack.c.b16 %v2908, %v2905
      %v2996 = vpack.c.b16 %v2912, %v2909
      %v2997 = vpack.c.b16 %v2913, %v2910
      %v2998 = vpack.c.b16 %v2914, %v2911
      %v2999 = vpack.c.b16 %v2918, %v2915
      %v3000 = vpack.c.b16 %v2919, %v2916
      %v3001 = vpack.c.b16 %v2920, %v2917
      %v3002 = vpack.c.b16 %v2924, %v2921
      %v3003 = vpack.c.b16 %v2925, %v2922
      %v3004 = vpack.c.b16 %v2926, %v2923
      %v3005 = vpack.c.b16 %v2930, %v2927
      %v3006 = vpack.c.b16 %v2931, %v2928
      %v3007 = vpack.c.b16 %v2932, %v2929
      %v3008 = vpack.c.b16 %v2936, %v2933
      %v3009 = vpack.c.b16 %v2937, %v2934
      %v3010 = vpack.c.b16 %v2938, %v2935
      %v3011 = vpack.c.b16 %v2942, %v2939
      %v3012 = vpack.c.b16 %v2943, %v2940
      %v3013 = vpack.c.b16 %v2944, %v2941
      %v3014 = vpack.c.b16 %v2948, %v2945
      %v3015 = vpack.c.b16 %v2949, %v2946
      %v3016 = vpack.c.b16 %v2950, %v2947
      %v3017 = vpack.c.b16 %v2954, %v2951
      %v3018 = vpack.c.b16 %v2955, %v2952
      %v3019 = vpack.c.b16 %v2956, %v2953
      %v3020 = vpack.c.b16 %v2960, %v2957
      %v3021 = vpack.c.b16 %v2961, %v2958
      %v3022 = vpack.c.b16 %v2962, %v2959
      %v3023 = vpack.c.b16 %v2966, %v2963
      %v3024 = vpack.c.b16 %v2967, %v2964
      %v3025 = vpack.c.b16 %v2968, %v2965
      %v3026 = vpack.c.b16 %v2972, %v2969
      %v3027 = vpack.c.b16 %v2973, %v2970
      %v3028 = vpack.c.b16 %v2974, %v2971
      %v3029 = vpack.c.b16 %v2978, %v2975
      %v3030 = vpack.c.b16 %v2979, %v2976
      %v3031 = vpack.c.b16 %v2980, %v2977
      %v3032 = vpack.c.b16 %v2984, %v2981
      %v3033 = vpack.c.b16 %v2985, %v2982
      %v3034 = vpack.c.b16 %v2986, %v2983
      %v3131 = vunpack.c.l.b16 %v2779
      %v3132 = vunpack.c.l.b16 %v2780
      %v3133 = vunpack.c.l.b16 %v2781
      %v3134 = vunpack.c.l.b16 %v2782
      %v3135 = vunpack.c.l.b16 %v2783
      %v3136 = vunpack.c.l.b16 %v2784
      %v3137 = vunpack.c.l.b16 %v2785
      %v3138 = vunpack.c.l.b16 %v2786
      %v3139 = vunpack.c.l.b16 %v2787
      %v3140 = vunpack.c.l.b16 %v2788
      %v3141 = vunpack.c.l.b16 %v2789
      %v3142 = vunpack.c.l.b16 %v2790
      %v3143 = vunpack.c.l.b16 %v2791
      %v3144 = vunpack.c.l.b16 %v2792
      %v3145 = vunpack.c.l.b16 %v2793
      %v3146 = vunpack.c.l.b16 %v2794
      %v3147 = vunpack.c.l.b16 %v2795
      %v3148 = vunpack.c.l.b16 %v2796
      %v3149 = vunpack.c.l.b16 %v2797
      %v3150 = vunpack.c.l.b16 %v2798
      %v3151 = vunpack.c.l.b16 %v2799
      %v3152 = vunpack.c.l.b16 %v2800
      %v3153 = vunpack.c.l.b16 %v2801
      %v3154 = vunpack.c.l.b16 %v2802
      %v3155 = vunpack.c.l.b16 %v2803
      %v3156 = vunpack.c.l.b16 %v2804
      %v3157 = vunpack.c.l.b16 %v2805
      %v3158 = vunpack.c.l.b16 %v2806
      %v3159 = vunpack.c.l.b16 %v2807
      %v3160 = vunpack.c.l.b16 %v2808
      %v3161 = vunpack.c.l.b16 %v2809
      %v3162 = vunpack.c.l.b16 %v2810
      %v3163 = vunpack.c.l.b16 %v2811
      %v3164 = vunpack.c.l.b16 %v2812
      %v3165 = vunpack.c.l.b16 %v2813
      %v3166 = vunpack.c.l.b16 %v2814
      %v3167 = vunpack.c.l.b16 %v2815
      %v3168 = vunpack.c.l.b16 %v2816
      %v3169 = vunpack.c.l.b16 %v2817
      %v3170 = vunpack.c.l.b16 %v2818
      %v3171 = vunpack.c.l.b16 %v2819
      %v3172 = vunpack.c.l.b16 %v2820
      %v3173 = vunpack.c.l.b16 %v2821
      %v3174 = vunpack.c.l.b16 %v2822
      %v3175 = vunpack.c.l.b16 %v2823
      %v3176 = vunpack.c.l.b16 %v2824
      %v3177 = vunpack.c.l.b16 %v2825
      %v3178 = vunpack.c.l.b16 %v2826
      %v3179 = vpack.c.b16 %v3132, %v3131
      %v3180 = vpack.c.b16 %v3134, %v3133
      %v3181 = vpack.c.b16 %v3136, %v3135
      %v3182 = vpack.c.b16 %v3138, %v3137
      %v3183 = vpack.c.b16 %v3140, %v3139
      %v3184 = vpack.c.b16 %v3142, %v3141
      %v3185 = vpack.c.b16 %v3144, %v3143
      %v3186 = vpack.c.b16 %v3146, %v3145
      %v3187 = vpack.c.b16 %v3148, %v3147
      %v3188 = vpack.c.b16 %v3150, %v3149
      %v3189 = vpack.c.b16 %v3152, %v3151
      %v3190 = vpack.c.b16 %v3154, %v3153
      %v3191 = vpack.c.b16 %v3156, %v3155
      %v3192 = vpack.c.b16 %v3158, %v3157
      %v3193 = vpack.c.b16 %v3160, %v3159
      %v3194 = vpack.c.b16 %v3162, %v3161
      %v3195 = vpack.c.b16 %v3164, %v3163
      %v3196 = vpack.c.b16 %v3166, %v3165
      %v3197 = vpack.c.b16 %v3168, %v3167
      %v3198 = vpack.c.b16 %v3170, %v3169
      %v3199 = vpack.c.b16 %v3172, %v3171
      %v3200 = vpack.c.b16 %v3174, %v3173
      %v3201 = vpack.c.b16 %v3176, %v3175
      %v3202 = vpack.c.b16 %v3178, %v3177
      %3227 = vmatpush.bf16.msra.mxu0 %v3186
      %3228 = vmatpush.bf16.msra.mxu0 %v3185
      %3229 = vmatpush.bf16.msra.mxu0 %v3184
      %3230 = vmatpush.bf16.msra.mxu0 %v3183
      %3231 = vmatpush.bf16.msra.mxu0 %v3182
      %3232 = vmatpush.bf16.msra.mxu0 %v3181
      %3233 = vmatpush.bf16.msra.mxu0 %v3180
      %3234 = vmatpush.bf16.msra.mxu0 %v3179
      %3235 = vmatmul.bf16.gmra.mxu0 %v2987
      %v3236 = vpop.f32.mrf.mxu0
      %v3237 = vadd.f32 0.0, %v3236
      %v3238 = vpop.f32.mrf.mxu0
      %v3239 = vadd.f32 0.0, %v3238
      %3240 = vmatmul.bf16.gmra.mxu0 %v2990
      %v3241 = vpop.f32.mrf.mxu0
      %v3242 = vadd.f32 0.0, %v3241
      %v3243 = vpop.f32.mrf.mxu0
      %v3244 = vadd.f32 0.0, %v3243
      %3245 = vmatmul.bf16.gmra.mxu0 %v2993
      %v3246 = vpop.f32.mrf.mxu0
      %v3247 = vadd.f32 0.0, %v3246
      %v3248 = vpop.f32.mrf.mxu0
      %v3249 = vadd.f32 0.0, %v3248
      %3250 = vmatmul.bf16.gmra.mxu0 %v2996
      %v3251 = vpop.f32.mrf.mxu0
      %v3252 = vadd.f32 0.0, %v3251
      %v3253 = vpop.f32.mrf.mxu0
      %v3254 = vadd.f32 0.0, %v3253
      %3255 = vmatmul.bf16.gmra.mxu0 %v2999
      %v3256 = vpop.f32.mrf.mxu0
      %v3257 = vadd.f32 0.0, %v3256
      %v3258 = vpop.f32.mrf.mxu0
      %v3259 = vadd.f32 0.0, %v3258
      %3260 = vmatmul.bf16.gmra.mxu0 %v3002
      %v3261 = vpop.f32.mrf.mxu0
      %v3262 = vadd.f32 0.0, %v3261
      %v3263 = vpop.f32.mrf.mxu0
      %v3264 = vadd.f32 0.0, %v3263
      %3265 = vmatmul.bf16.gmra.mxu0 %v3005
      %v3266 = vpop.f32.mrf.mxu0
      %v3267 = vadd.f32 0.0, %v3266
      %v3268 = vpop.f32.mrf.mxu0
      %v3269 = vadd.f32 0.0, %v3268
      %3270 = vmatmul.bf16.gmra.mxu0 %v3008
      %v3271 = vpop.f32.mrf.mxu0
      %v3272 = vadd.f32 0.0, %v3271
      %v3273 = vpop.f32.mrf.mxu0
      %v3274 = vadd.f32 0.0, %v3273
      %3275 = vmatmul.bf16.gmra.mxu0 %v3011
      %v3276 = vpop.f32.mrf.mxu0
      %v3277 = vadd.f32 0.0, %v3276
      %v3278 = vpop.f32.mrf.mxu0
      %v3279 = vadd.f32 0.0, %v3278
      %3280 = vmatmul.bf16.gmra.mxu0 %v3014
      %v3281 = vpop.f32.mrf.mxu0
      %v3282 = vadd.f32 0.0, %v3281
      %v3283 = vpop.f32.mrf.mxu0
      %v3284 = vadd.f32 0.0, %v3283
      %3285 = vmatmul.bf16.gmra.mxu0 %v3017
      %v3286 = vpop.f32.mrf.mxu0
      %v3287 = vadd.f32 0.0, %v3286
      %v3288 = vpop.f32.mrf.mxu0
      %v3289 = vadd.f32 0.0, %v3288
      %3290 = vmatmul.bf16.gmra.mxu0 %v3020
      %v3291 = vpop.f32.mrf.mxu0
      %v3292 = vadd.f32 0.0, %v3291
      %v3293 = vpop.f32.mrf.mxu0
      %v3294 = vadd.f32 0.0, %v3293
      %3295 = vmatmul.bf16.gmra.mxu0 %v3023
      %v3296 = vpop.f32.mrf.mxu0
      %v3297 = vadd.f32 0.0, %v3296
      %v3298 = vpop.f32.mrf.mxu0
      %v3299 = vadd.f32 0.0, %v3298
      %3300 = vmatmul.bf16.gmra.mxu0 %v3026
      %v3301 = vpop.f32.mrf.mxu0
      %v3302 = vadd.f32 0.0, %v3301
      %v3303 = vpop.f32.mrf.mxu0
      %v3304 = vadd.f32 0.0, %v3303
      %3305 = vmatmul.bf16.gmra.mxu0 %v3029
      %v3306 = vpop.f32.mrf.mxu0
      %v3307 = vadd.f32 0.0, %v3306
      %v3308 = vpop.f32.mrf.mxu0
      %v3309 = vadd.f32 0.0, %v3308
      %3310 = vmatmul.bf16.gmra.mxu0 %v3032
      %v3311 = vpop.f32.mrf.mxu0
      %v3312 = vadd.f32 0.0, %v3311
      %v3313 = vpop.f32.mrf.mxu0
      %v3314 = vadd.f32 0.0, %v3313
      %3315 = vdwg.mxu0
      %3316 = vmatpush.bf16.msra.mxu0 %v3194
      %3317 = vmatpush.bf16.msra.mxu0 %v3193
      %3318 = vmatpush.bf16.msra.mxu0 %v3192
      %3319 = vmatpush.bf16.msra.mxu0 %v3191
      %3320 = vmatpush.bf16.msra.mxu0 %v3190
      %3321 = vmatpush.bf16.msra.mxu0 %v3189
      %3322 = vmatpush.bf16.msra.mxu0 %v3188
      %3323 = vmatpush.bf16.msra.mxu0 %v3187
      %3324 = vmatmul.bf16.gmra.mxu0 %v2988
      %v3325 = vpop.f32.mrf.mxu0
      %v3326 = vadd.f32 %v3237, %v3325
      %v3327 = vpop.f32.mrf.mxu0
      %v3328 = vadd.f32 %v3239, %v3327
      %3329 = vmatmul.bf16.gmra.mxu0 %v2991
      %v3330 = vpop.f32.mrf.mxu0
      %v3331 = vadd.f32 %v3242, %v3330
      %v3332 = vpop.f32.mrf.mxu0
      %v3333 = vadd.f32 %v3244, %v3332
      %3334 = vmatmul.bf16.gmra.mxu0 %v2994
      %v3335 = vpop.f32.mrf.mxu0
      %v3336 = vadd.f32 %v3247, %v3335
      %v3337 = vpop.f32.mrf.mxu0
      %v3338 = vadd.f32 %v3249, %v3337
      %3339 = vmatmul.bf16.gmra.mxu0 %v2997
      %v3340 = vpop.f32.mrf.mxu0
      %v3341 = vadd.f32 %v3252, %v3340
      %v3342 = vpop.f32.mrf.mxu0
      %v3343 = vadd.f32 %v3254, %v3342
      %3344 = vmatmul.bf16.gmra.mxu0 %v3000
      %v3345 = vpop.f32.mrf.mxu0
      %v3346 = vadd.f32 %v3257, %v3345
      %v3347 = vpop.f32.mrf.mxu0
      %v3348 = vadd.f32 %v3259, %v3347
      %3349 = vmatmul.bf16.gmra.mxu0 %v3003
      %v3350 = vpop.f32.mrf.mxu0
      %v3351 = vadd.f32 %v3262, %v3350
      %v3352 = vpop.f32.mrf.mxu0
      %v3353 = vadd.f32 %v3264, %v3352
      %3354 = vmatmul.bf16.gmra.mxu0 %v3006
      %v3355 = vpop.f32.mrf.mxu0
      %v3356 = vadd.f32 %v3267, %v3355
      %v3357 = vpop.f32.mrf.mxu0
      %v3358 = vadd.f32 %v3269, %v3357
      %3359 = vmatmul.bf16.gmra.mxu0 %v3009
      %v3360 = vpop.f32.mrf.mxu0
      %v3361 = vadd.f32 %v3272, %v3360
      %v3362 = vpop.f32.mrf.mxu0
      %v3363 = vadd.f32 %v3274, %v3362
      %3364 = vmatmul.bf16.gmra.mxu0 %v3012
      %v3365 = vpop.f32.mrf.mxu0
      %v3366 = vadd.f32 %v3277, %v3365
      %v3367 = vpop.f32.mrf.mxu0
      %v3368 = vadd.f32 %v3279, %v3367
      %3369 = vmatmul.bf16.gmra.mxu0 %v3015
      %v3370 = vpop.f32.mrf.mxu0
      %v3371 = vadd.f32 %v3282, %v3370
      %v3372 = vpop.f32.mrf.mxu0
      %v3373 = vadd.f32 %v3284, %v3372
      %3374 = vmatmul.bf16.gmra.mxu0 %v3018
      %v3375 = vpop.f32.mrf.mxu0
      %v3376 = vadd.f32 %v3287, %v3375
      %v3377 = vpop.f32.mrf.mxu0
      %v3378 = vadd.f32 %v3289, %v3377
      %3379 = vmatmul.bf16.gmra.mxu0 %v3021
      %v3380 = vpop.f32.mrf.mxu0
      %v3381 = vadd.f32 %v3292, %v3380
      %v3382 = vpop.f32.mrf.mxu0
      %v3383 = vadd.f32 %v3294, %v3382
      %3384 = vmatmul.bf16.gmra.mxu0 %v3024
      %v3385 = vpop.f32.mrf.mxu0
      %v3386 = vadd.f32 %v3297, %v3385
      %v3387 = vpop.f32.mrf.mxu0
      %v3388 = vadd.f32 %v3299, %v3387
      %3389 = vmatmul.bf16.gmra.mxu0 %v3027
      %v3390 = vpop.f32.mrf.mxu0
      %v3391 = vadd.f32 %v3302, %v3390
      %v3392 = vpop.f32.mrf.mxu0
      %v3393 = vadd.f32 %v3304, %v3392
      %3394 = vmatmul.bf16.gmra.mxu0 %v3030
      %v3395 = vpop.f32.mrf.mxu0
      %v3396 = vadd.f32 %v3307, %v3395
      %v3397 = vpop.f32.mrf.mxu0
      %v3398 = vadd.f32 %v3309, %v3397
      %3399 = vmatmul.bf16.gmra.mxu0 %v3033
      %v3400 = vpop.f32.mrf.mxu0
      %v3401 = vadd.f32 %v3312, %v3400
      %v3402 = vpop.f32.mrf.mxu0
      %v3403 = vadd.f32 %v3314, %v3402
      %3404 = vdwg.mxu0
      %3405 = vmatpush.bf16.msra.mxu0 %v3202
      %3406 = vmatpush.bf16.msra.mxu0 %v3201
      %3407 = vmatpush.bf16.msra.mxu0 %v3200
      %3408 = vmatpush.bf16.msra.mxu0 %v3199
      %3409 = vmatpush.bf16.msra.mxu0 %v3198
      %3410 = vmatpush.bf16.msra.mxu0 %v3197
      %3411 = vmatpush.bf16.msra.mxu0 %v3196
      %3412 = vmatpush.bf16.msra.mxu0 %v3195
      %3413 = vmatmul.bf16.gmra.mxu0 %v2989
      %v3414 = vpop.f32.mrf.mxu0
      %v3415 = vadd.f32 %v3326, %v3414
      %v3416 = vpop.f32.mrf.mxu0
      %v3417 = vadd.f32 %v3328, %v3416
      %3418 = vmatmul.bf16.gmra.mxu0 %v2992
      %v3419 = vpop.f32.mrf.mxu0
      %v3420 = vadd.f32 %v3331, %v3419
      %v3421 = vpop.f32.mrf.mxu0
      %v3422 = vadd.f32 %v3333, %v3421
      %3423 = vmatmul.bf16.gmra.mxu0 %v2995
      %v3424 = vpop.f32.mrf.mxu0
      %v3425 = vadd.f32 %v3336, %v3424
      %v3426 = vpop.f32.mrf.mxu0
      %v3427 = vadd.f32 %v3338, %v3426
      %3428 = vmatmul.bf16.gmra.mxu0 %v2998
      %v3429 = vpop.f32.mrf.mxu0
      %v3430 = vadd.f32 %v3341, %v3429
      %v3431 = vpop.f32.mrf.mxu0
      %v3432 = vadd.f32 %v3343, %v3431
      %3433 = vmatmul.bf16.gmra.mxu0 %v3001
      %v3434 = vpop.f32.mrf.mxu0
      %v3435 = vadd.f32 %v3346, %v3434
      %v3436 = vpop.f32.mrf.mxu0
      %v3437 = vadd.f32 %v3348, %v3436
      %3438 = vmatmul.bf16.gmra.mxu0 %v3004
      %v3439 = vpop.f32.mrf.mxu0
      %v3440 = vadd.f32 %v3351, %v3439
      %v3441 = vpop.f32.mrf.mxu0
      %v3442 = vadd.f32 %v3353, %v3441
      %3443 = vmatmul.bf16.gmra.mxu0 %v3007
      %v3444 = vpop.f32.mrf.mxu0
      %v3445 = vadd.f32 %v3356, %v3444
      %v3446 = vpop.f32.mrf.mxu0
      %v3447 = vadd.f32 %v3358, %v3446
      %3448 = vmatmul.bf16.gmra.mxu0 %v3010
      %v3449 = vpop.f32.mrf.mxu0
      %v3450 = vadd.f32 %v3361, %v3449
      %v3451 = vpop.f32.mrf.mxu0
      %v3452 = vadd.f32 %v3363, %v3451
      %3453 = vmatmul.bf16.gmra.mxu0 %v3013
      %v3454 = vpop.f32.mrf.mxu0
      %v3455 = vadd.f32 %v3366, %v3454
      %v3456 = vpop.f32.mrf.mxu0
      %v3457 = vadd.f32 %v3368, %v3456
      %3458 = vmatmul.bf16.gmra.mxu0 %v3016
      %v3459 = vpop.f32.mrf.mxu0
      %v3460 = vadd.f32 %v3371, %v3459
      %v3461 = vpop.f32.mrf.mxu0
      %v3462 = vadd.f32 %v3373, %v3461
      %3463 = vmatmul.bf16.gmra.mxu0 %v3019
      %v3464 = vpop.f32.mrf.mxu0
      %v3465 = vadd.f32 %v3376, %v3464
      %v3466 = vpop.f32.mrf.mxu0
      %v3467 = vadd.f32 %v3378, %v3466
      %3468 = vmatmul.bf16.gmra.mxu0 %v3022
      %v3469 = vpop.f32.mrf.mxu0
      %v3470 = vadd.f32 %v3381, %v3469
      %v3471 = vpop.f32.mrf.mxu0
      %v3472 = vadd.f32 %v3383, %v3471
      %3473 = vmatmul.bf16.gmra.mxu0 %v3025
      %v3474 = vpop.f32.mrf.mxu0
      %v3475 = vadd.f32 %v3386, %v3474
      %v3476 = vpop.f32.mrf.mxu0
      %v3477 = vadd.f32 %v3388, %v3476
      %3478 = vmatmul.bf16.gmra.mxu0 %v3028
      %v3479 = vpop.f32.mrf.mxu0
      %v3480 = vadd.f32 %v3391, %v3479
      %v3481 = vpop.f32.mrf.mxu0
      %v3482 = vadd.f32 %v3393, %v3481
      %3483 = vmatmul.bf16.gmra.mxu0 %v3031
      %v3484 = vpop.f32.mrf.mxu0
      %v3485 = vadd.f32 %v3396, %v3484
      %v3486 = vpop.f32.mrf.mxu0
      %v3487 = vadd.f32 %v3398, %v3486
      %3488 = vmatmul.bf16.gmra.mxu0 %v3034
      %v3489 = vpop.f32.mrf.mxu0
      %v3490 = vadd.f32 %v3401, %v3489
      %v3491 = vpop.f32.mrf.mxu0
      %v3492 = vadd.f32 %v3403, %v3491
      %3493 = vdwg.mxu0
      %v3494 = vadd.f32 %v2634, %v3415
      %v3495 = vadd.f32 %v2636, %v3417
      %v3496 = vadd.f32 %v2639, %v3420
      %v3497 = vadd.f32 %v2641, %v3422
      %v3498 = vadd.f32 %v2644, %v3425
      %v3499 = vadd.f32 %v2646, %v3427
      %v3500 = vadd.f32 %v2649, %v3430
      %v3501 = vadd.f32 %v2651, %v3432
      %v3502 = vadd.f32 %v2654, %v3435
      %v3503 = vadd.f32 %v2656, %v3437
      %v3504 = vadd.f32 %v2659, %v3440
      %v3505 = vadd.f32 %v2661, %v3442
      %v3506 = vadd.f32 %v2664, %v3445
      %v3507 = vadd.f32 %v2666, %v3447
      %v3508 = vadd.f32 %v2669, %v3450
      %v3509 = vadd.f32 %v2671, %v3452
      %v3510 = vadd.f32 %v2674, %v3455
      %v3511 = vadd.f32 %v2676, %v3457
      %v3512 = vadd.f32 %v2679, %v3460
      %v3513 = vadd.f32 %v2681, %v3462
      %v3514 = vadd.f32 %v2684, %v3465
      %v3515 = vadd.f32 %v2686, %v3467
      %v3516 = vadd.f32 %v2689, %v3470
      %v3517 = vadd.f32 %v2691, %v3472
      %v3518 = vadd.f32 %v2694, %v3475
      %v3519 = vadd.f32 %v2696, %v3477
      %v3520 = vadd.f32 %v2699, %v3480
      %v3521 = vadd.f32 %v2701, %v3482
      %v3522 = vadd.f32 %v2704, %v3485
      %v3523 = vadd.f32 %v2706, %v3487
      %v3524 = vadd.f32 %v2709, %v3490
      %v3525 = vadd.f32 %v2711, %v3492
      %v3526 = vpack.c.bf16 %v3494, %v3494
      %v3527 = vpack.c.bf16 %v3495, %v3495
      %v3528 = vpack.c.bf16 %v3496, %v3496
      %v3529 = vpack.c.bf16 %v3497, %v3497
      %v3530 = vpack.c.bf16 %v3498, %v3498
      %v3531 = vpack.c.bf16 %v3499, %v3499
      %v3532 = vpack.c.bf16 %v3500, %v3500
      %v3533 = vpack.c.bf16 %v3501, %v3501
      %v3534 = vpack.c.bf16 %v3502, %v3502
      %v3535 = vpack.c.bf16 %v3503, %v3503
      %v3536 = vpack.c.bf16 %v3504, %v3504
      %v3537 = vpack.c.bf16 %v3505, %v3505
      %v3538 = vpack.c.bf16 %v3506, %v3506
      %v3539 = vpack.c.bf16 %v3507, %v3507
      %v3540 = vpack.c.bf16 %v3508, %v3508
      %v3541 = vpack.c.bf16 %v3509, %v3509
      %v3542 = vpack.c.bf16 %v3510, %v3510
      %v3543 = vpack.c.bf16 %v3511, %v3511
      %v3544 = vpack.c.bf16 %v3512, %v3512
      %v3545 = vpack.c.bf16 %v3513, %v3513
      %v3546 = vpack.c.bf16 %v3514, %v3514
      %v3547 = vpack.c.bf16 %v3515, %v3515
      %v3548 = vpack.c.bf16 %v3516, %v3516
      %v3549 = vpack.c.bf16 %v3517, %v3517
      %v3550 = vpack.c.bf16 %v3518, %v3518
      %v3551 = vpack.c.bf16 %v3519, %v3519
      %v3552 = vpack.c.bf16 %v3520, %v3520
      %v3553 = vpack.c.bf16 %v3521, %v3521
      %v3554 = vpack.c.bf16 %v3522, %v3522
      %v3555 = vpack.c.bf16 %v3523, %v3523
      %v3556 = vpack.c.bf16 %v3524, %v3524
      %v3557 = vpack.c.bf16 %v3525, %v3525
      %3558 = vst [vmem:[%s206] sm:$0xf] %v3526
      %3559 = vst [vmem:[%s206 + $0x4] sm:$0xf] %v3527
      %3560 = vst [vmem:[%s206 + $0x8] sm:$0xf] %v3528
      %3561 = vst [vmem:[%s206 + $0xc] sm:$0xf] %v3529
      %3562 = vst [vmem:[%s206 + $0x10] sm:$0xf] %v3530
      %3563 = vst [vmem:[%s206 + $0x14] sm:$0xf] %v3531
      %3564 = vst [vmem:[%s206 + $0x18] sm:$0xf] %v3532
      %3565 = vst [vmem:[%s206 + $0x1c] sm:$0xf] %v3533
      %3566 = vst [vmem:[%s206 + $0x20] sm:$0xf] %v3534
      %3567 = vst [vmem:[%s206 + $0x24] sm:$0xf] %v3535
      %3568 = vst [vmem:[%s206 + $0x28] sm:$0xf] %v3536
      %3569 = vst [vmem:[%s206 + $0x2c] sm:$0xf] %v3537
      %3570 = vst [vmem:[%s206 + $0x30] sm:$0xf] %v3538
      %3571 = vst [vmem:[%s206 + $0x34] sm:$0xf] %v3539
      %3572 = vst [vmem:[%s206 + $0x38] sm:$0xf] %v3540
      %3573 = vst [vmem:[%s206 + $0x3c] sm:$0xf] %v3541
      %3574 = vst [vmem:[%s206 + $0x40] sm:$0xf] %v3542
      %3575 = vst [vmem:[%s206 + $0x44] sm:$0xf] %v3543
      %3576 = vst [vmem:[%s206 + $0x48] sm:$0xf] %v3544
      %3577 = vst [vmem:[%s206 + $0x4c] sm:$0xf] %v3545
      %3578 = vst [vmem:[%s206 + $0x50] sm:$0xf] %v3546
      %3579 = vst [vmem:[%s206 + $0x54] sm:$0xf] %v3547
      %3580 = vst [vmem:[%s206 + $0x58] sm:$0xf] %v3548
      %3581 = vst [vmem:[%s206 + $0x5c] sm:$0xf] %v3549
      %3582 = vst [vmem:[%s206 + $0x60] sm:$0xf] %v3550
      %3583 = vst [vmem:[%s206 + $0x64] sm:$0xf] %v3551
      %3584 = vst [vmem:[%s206 + $0x68] sm:$0xf] %v3552
      %3585 = vst [vmem:[%s206 + $0x6c] sm:$0xf] %v3553
      %3586 = vst [vmem:[%s206 + $0x70] sm:$0xf] %v3554
      %3587 = vst [vmem:[%s206 + $0x74] sm:$0xf] %v3555
      %3588 = vst [vmem:[%s206 + $0x78] sm:$0xf] %v3556
      %3589 = vst [vmem:[%s206 + $0x7c] sm:$0xf] %v3557
      %v3590 = vadd.f32 %v3494, %v3495
      %v3591 = vadd.f32 %v3590, %v3496
      %v3592 = vadd.f32 %v3591, %v3497
      %v3593 = vadd.f32 %v3592, %v3498
      %v3594 = vadd.f32 %v3593, %v3499
      %v3595 = vadd.f32 %v3594, %v3500
      %v3596 = vadd.f32 %v3595, %v3501
      %v3597 = vadd.f32 %v3596, %v3502
      %v3598 = vadd.f32 %v3597, %v3503
      %v3599 = vadd.f32 %v3598, %v3504
      %v3600 = vadd.f32 %v3599, %v3505
      %v3601 = vadd.f32 %v3600, %v3506
      %v3602 = vadd.f32 %v3601, %v3507
      %v3603 = vadd.f32 %v3602, %v3508
      %v3604 = vadd.f32 %v3603, %v3509
      %v3605 = vadd.f32 %v3604, %v3510
      %v3606 = vadd.f32 %v3605, %v3511
      %v3607 = vadd.f32 %v3606, %v3512
      %v3608 = vadd.f32 %v3607, %v3513
      %v3609 = vadd.f32 %v3608, %v3514
      %v3610 = vadd.f32 %v3609, %v3515
      %v3611 = vadd.f32 %v3610, %v3516
      %v3612 = vadd.f32 %v3611, %v3517
      %v3613 = vadd.f32 %v3612, %v3518
      %v3614 = vadd.f32 %v3613, %v3519
      %v3615 = vadd.f32 %v3614, %v3520
      %v3616 = vadd.f32 %v3615, %v3521
      %v3617 = vadd.f32 %v3616, %v3522
      %v3618 = vadd.f32 %v3617, %v3523
      %v3619 = vadd.f32 %v3618, %v3524
      %v3620 = vadd.f32 %v3619, %v3525
      %v3621 = vrot.slane %v3620, 4
      %v3622 = vadd.f32 %v3620, %v3621
      %v3623 = vrot.slane %v3622, 2
      %v3624 = vadd.f32 %v3622, %v3623
      %v3625 = vrot.slane %v3624, 1
      %v3626 = vadd.f32 %v3624, %v3625
      %v3627 = vmul.f32 %v3494, %v3494
      %v3628 = vmul.f32 %v3495, %v3495
      %v3629 = vmul.f32 %v3496, %v3496
      %v3630 = vmul.f32 %v3497, %v3497
      %v3631 = vmul.f32 %v3498, %v3498
      %v3632 = vmul.f32 %v3499, %v3499
      %v3633 = vmul.f32 %v3500, %v3500
      %v3634 = vmul.f32 %v3501, %v3501
      %v3635 = vmul.f32 %v3502, %v3502
      %v3636 = vmul.f32 %v3503, %v3503
      %v3637 = vmul.f32 %v3504, %v3504
      %v3638 = vmul.f32 %v3505, %v3505
      %v3639 = vmul.f32 %v3506, %v3506
      %v3640 = vmul.f32 %v3507, %v3507
      %v3641 = vmul.f32 %v3508, %v3508
      %v3642 = vmul.f32 %v3509, %v3509
      %v3643 = vmul.f32 %v3510, %v3510
      %v3644 = vmul.f32 %v3511, %v3511
      %v3645 = vmul.f32 %v3512, %v3512
      %v3646 = vmul.f32 %v3513, %v3513
      %v3647 = vmul.f32 %v3514, %v3514
      %v3648 = vmul.f32 %v3515, %v3515
      %v3649 = vmul.f32 %v3516, %v3516
      %v3650 = vmul.f32 %v3517, %v3517
      %v3651 = vmul.f32 %v3518, %v3518
      %v3652 = vmul.f32 %v3519, %v3519
      %v3653 = vmul.f32 %v3520, %v3520
      %v3654 = vmul.f32 %v3521, %v3521
      %v3655 = vmul.f32 %v3522, %v3522
      %v3656 = vmul.f32 %v3523, %v3523
      %v3657 = vmul.f32 %v3524, %v3524
      %v3658 = vmul.f32 %v3525, %v3525
      %v3659 = vadd.f32 %v3627, %v3628
      %v3660 = vadd.f32 %v3659, %v3629
      %v3661 = vadd.f32 %v3660, %v3630
      %v3662 = vadd.f32 %v3661, %v3631
      %v3663 = vadd.f32 %v3662, %v3632
      %v3664 = vadd.f32 %v3663, %v3633
      %v3665 = vadd.f32 %v3664, %v3634
      %v3666 = vadd.f32 %v3665, %v3635
      %v3667 = vadd.f32 %v3666, %v3636
      %v3668 = vadd.f32 %v3667, %v3637
      %v3669 = vadd.f32 %v3668, %v3638
      %v3670 = vadd.f32 %v3669, %v3639
      %v3671 = vadd.f32 %v3670, %v3640
      %v3672 = vadd.f32 %v3671, %v3641
      %v3673 = vadd.f32 %v3672, %v3642
      %v3674 = vadd.f32 %v3673, %v3643
      %v3675 = vadd.f32 %v3674, %v3644
      %v3676 = vadd.f32 %v3675, %v3645
      %v3677 = vadd.f32 %v3676, %v3646
      %v3678 = vadd.f32 %v3677, %v3647
      %v3679 = vadd.f32 %v3678, %v3648
      %v3680 = vadd.f32 %v3679, %v3649
      %v3681 = vadd.f32 %v3680, %v3650
      %v3682 = vadd.f32 %v3681, %v3651
      %v3683 = vadd.f32 %v3682, %v3652
      %v3684 = vadd.f32 %v3683, %v3653
      %v3685 = vadd.f32 %v3684, %v3654
      %v3686 = vadd.f32 %v3685, %v3655
      %v3687 = vadd.f32 %v3686, %v3656
      %v3688 = vadd.f32 %v3687, %v3657
      %v3689 = vadd.f32 %v3688, %v3658
      %v3690 = vrot.slane %v3689, 4
      %v3691 = vadd.f32 %v3689, %v3690
      %v3692 = vrot.slane %v3691, 2
      %v3693 = vadd.f32 %v3691, %v3692
      %v3694 = vrot.slane %v3693, 1
      %v3695 = vadd.f32 %v3693, %v3694
      %vm3696 = vcmask 1040384
      %v3697 = vsel %vm3696, %v3626, %v3695
      %3698 = vst [vmem:[%s211] sm:$0x3] %v3697
      %s3699 = smul.u32 32, %s16
      %p3700 = scmp.lt.s32.totalorder %s3699, 63
      %s3701 = scalar_select %p3700, %s3699, 63
      %s3702 = smul.addr %s3701, 4
      %s3703 = scalar_lea.vmem %s3, %s3702
      %p3704 = scmp.lt.s32.totalorder %s16, 1
      %s3705 = scalar_select %p3704, %s16, 1
      %s3706 = smul.addr %s3705, 2
      %s3707 = scalar_lea.vmem %s4, %s3706
      // Predicated region
      $region33: #{mock_residual_block_forward.4} parent=31 // pred_check
        %p3708 = pneg %p102
      $region34: #{mock_residual_block_forward.4} parent=31 // pred_check_branch
        %3710 = sbr.rel (%p3708) target = $region36
      $region35: #{mock_residual_block_forward.4} parent=31 // pred_region
        %s3711 = smul.u32 32, %s16
      $region36: #{mock_residual_block_forward.4} parent=31 // pred_fallthru
        _
      // Predicated region
      $region37: #{mock_residual_block_forward.4} parent=31 // pred_check
        %p3712 = pneg %p128
      $region38: #{mock_residual_block_forward.4} parent=31 // pred_check_branch
        %3714 = sbr.rel (%p3712) target = $region40
      $region39: #{mock_residual_block_forward.4} parent=31 // pred_region
        _
      $region40: #{mock_residual_block_forward.4} parent=31 // pred_fallthru
        _
    $region32: #{mock_residual_block_forward.4} parent=5 // pred_fallthru
      _
    %p3715 = scmp.le.s32.totalorder 2, %s11
    // Predicated region
    $region41: #{mock_residual_block_forward.4} parent=5 // pred_check
      %p3716 = pneg %p3715
    $region42: #{mock_residual_block_forward.4} parent=5 // pred_check_branch
      %3718 = sbr.rel (%p3716) target = $region44
    $region43: #{mock_residual_block_forward.4} parent=5 // pred_region
      %s3719 = ssub.s32 %s11, 2
      // Predicated region
      $region45: #{mock_residual_block_forward.4} parent=43 // pred_check
        %p3720 = pneg %p108
      $region46: #{mock_residual_block_forward.4} parent=43 // pred_check_branch
        %3722 = sbr.rel (%p3720) target = $region48
      $region47: #{mock_residual_block_forward.4} parent=43 // pred_region
        %s3723 = smul.u32 32, %s17
        %p3724 = scmp.lt.s32.totalorder %s3723, 63
        %s3725 = scalar_select %p3724, %s3723, 63
        %s3726 = smul.addr %s3725, 4
        %s3727 = scalar_lea.vmem %s3, %s3726
      $region48: #{mock_residual_block_forward.4} parent=43 // pred_fallthru
        _
      // Predicated region
      $region49: #{mock_residual_block_forward.4} parent=43 // pred_check
        %p3728 = pneg %p134
      $region50: #{mock_residual_block_forward.4} parent=43 // pred_check_branch
        %3730 = sbr.rel (%p3728) target = $region52
      $region51: #{mock_residual_block_forward.4} parent=43 // pred_region
        %p3731 = scmp.lt.s32.totalorder %s17, 1
        %s3732 = scalar_select %p3731, %s17, 1
        %s3733 = smul.addr %s3732, 2
        %s3734 = scalar_lea.vmem %s4, %s3733
      $region52: #{mock_residual_block_forward.4} parent=43 // pred_fallthru
        _
    $region44: #{mock_residual_block_forward.4} parent=5 // pred_fallthru
      _
  $region6: #{mock_residual_block_forward.4} parent=0 // loop_footer
    %s15 = sadd.s32 1, %s11
  $region7: #{mock_residual_block_forward.4} parent=0 // loop_footer_branch
    %10 = sbr.rel target = $region3
  $region8: #{mock_residual_block_forward.4} parent=0 // loop_exit
    _

</llo_original>
